<compile_context>
chip_gen: v5e
topology: v5e:2x2
jax: 0.10.0
libtpu: 0.0.40
codegen_flags: <defaults>
</compile_context>

<pallas_src>
import jax
import jax.numpy as jnp
from jax.experimental import pallas as pl
from jax.experimental.pallas import tpu as pltpu


# ------------------------------ helpers -------------------------------------

def _round_up(n, m):
    return ((n + m - 1) // m) * m


# ----------------------------- Pallas kernel --------------------------------
#
# Packed parameter layout (all offsets static, 128-lane / 8-sublane aligned):
#   w_fp1  : (FP_PAD, 512)   bf16   fingerprint Linear1 (rows >= fp_size are 0)
#   w_img1 : (IMG_PAD, 1024) bf16   image Linear1
#   w_mid  : (1536, 256)     bf16   rows   0:512  = fw2 (BN512 folded)
#                                   rows 512:1536 = iw2 (BN1024 folded)
#   w_k256 : (256, 640)      bf16   cols   0:128  = fw3 (BN256 folded)
#                                   cols 128:256  = iw3 (BN256 folded)
#                                   cols 256:512  = hw1 (fused K=256 head Linear)
#                                   cols 512:640  = hw2 (BN256 folded)
#   w_k128 : (128, 256)      bf16   cols   0:128  = hw3 (64 outs zero-padded to 128)
#                                   cols 128:256  = hw4 slab (rows 0:64, col 0)
#   bias   : (16, 1024)      f32    rows: fb1 fb2 fb3 ib1 ib2 ib3 hb1 hb2
#                                   hb3(pad->128) hb4(lane 0)

def _mixed_input_kernel(fp_ref, img_ref,
                        wfp1_ref, wimg1_ref, wmid_ref, wk256_ref, wk128_ref,
                        b_ref, out_ref):
    def mm(x, w):
        # bf16 x bf16 MXU matmul, f32 accumulation.
        return jnp.dot(x, w, preferred_element_type=jnp.float32)

    def act(a):
        # ReLU in f32, back to bf16 for the next MXU pass.
        return jnp.maximum(a, 0.0).astype(jnp.bfloat16)

    def bias(row, width):
        return b_ref[row:row + 1, 0:width]            # (1, width) f32, 128-aligned

    # Inputs arrive f32 (no wrapper-side cast pass); cast on the VPU here.
    fp = fp_ref[...].astype(jnp.bfloat16)             # (TB, FP_PAD)
    img = img_ref[...].astype(jnp.bfloat16)           # (TB, IMG_PAD)

    # Fingerprint branch: Linear+ReLU x3 (BN folded, Dropout = id in eval).
    f = act(mm(fp, wfp1_ref[...]) + bias(0, 512))
    f = act(mm(f, wmid_ref[0:512, :]) + bias(1, 256))
    f = act(mm(f, wk256_ref[:, 0:128]) + bias(2, 128))

    # Image branch.
    g = act(mm(img, wimg1_ref[...]) + bias(3, 1024))
    g = act(mm(g, wmid_ref[512:1536, :]) + bias(4, 256))
    g = act(mm(g, wk256_ref[:, 128:256]) + bias(5, 128))

    # Head: torch.cat((f, g), dim=1) is a cheap 128-aligned lane concat; the first
    # head Linear runs as a single K=256 MXU pass against the fused hw1 slab.
    c = jnp.concatenate([f, g], axis=-1)                           # (TB, 256)
    h = act(mm(c, wk256_ref[:, 256:512]) + bias(6, 256))
    h = act(mm(h, wk256_ref[:, 512:640]) + bias(7, 128))
    h = act(mm(h, wk128_ref[:, 0:128]) + bias(8, 128))             # lanes 64+ are 0

    # Final Linear(64, 1) as a lane-dense MXU pass: (TB,128)@(128,128); only
    # column 0 is real, the wrapper slices [:, :1].
    out = mm(h, wk128_ref[:, 128:256]) + bias(9, 128)
    out_ref[...] = out.astype(out_ref.dtype)


def mixed_input_forward(fingerprint, image, packed, *, tile_b=512):
    w_fp1, w_img1, w_mid, w_k256, w_k128, bias = packed
    fp_pad, img_pad = w_fp1.shape[0], w_img1.shape[0]
    batch = fingerprint.shape[0]

    # Batch tile: multiple of 16 (bf16 sublane packing), adaptive so small batches
    # don't over-pad and large batches amortize the ~0.35us per-grid-step overhead.
    tb = min(_round_up(tile_b, 16), _round_up(batch, 16))
    b_pad = _round_up(batch, tb)

    # Pad only when actually needed (single jnp.pad per input, no dtype cast here).
    fp = fingerprint
    if fp.shape != (b_pad, fp_pad):
        fp = jnp.pad(fp, ((0, b_pad - batch), (0, fp_pad - fp.shape[1])))
    im = image
    if im.shape != (b_pad, img_pad):
        im = jnp.pad(im, ((0, b_pad - batch), (0, img_pad - im.shape[1])))

    grid = (b_pad // tb,)
    batch_spec = lambda cols: pl.BlockSpec((tb, cols), lambda i: (i, 0))
    # Constant block index -> weights DMA'd once, VMEM-resident across tiles.
    const_spec = lambda arr: pl.BlockSpec(arr.shape, lambda i: (0, 0))

    out = pl.pallas_call(
        _mixed_input_kernel,
        out_shape=jax.ShapeDtypeStruct((b_pad, 128), jnp.float32),
        grid=grid,
        in_specs=[
            batch_spec(fp_pad), batch_spec(img_pad),
            const_spec(w_fp1), const_spec(w_img1), const_spec(w_mid),
            const_spec(w_k256), const_spec(w_k128), const_spec(bias),
        ],
        out_specs=pl.BlockSpec((tb, 128), lambda i: (i, 0)),
        compiler_params=pltpu.CompilerParams(
            dimension_semantics=("parallel",),   # shard batch tiles across TCs
        ),
    )(fp, im, w_fp1, w_img1, w_mid, w_k256, w_k128, bias)
    return out[:batch, :1]


# ------------------------- parameter construction ---------------------------

def build_raw_params(key, fp_size, img_size):
    """Raw (unfolded) PyTorch-style parameters: Linear (in,out)/(out,) + BN stats."""
    keys = list(jax.random.split(key, 16))
    it = iter(keys)

    def linear(fan_in, fan_out):
        kw, kb = jax.random.split(next(it))
        bound = fan_in ** -0.5
        w = jax.random.uniform(kw, (fan_in, fan_out), jnp.float32, -bound, bound)
        b = jax.random.uniform(kb, (fan_out,), jnp.float32, -bound, bound)
        return w, b

    def bn(dim):
        kg, kb, km, kv = jax.random.split(next(it), 4)
        gamma = 1.0 + 0.1 * jax.random.normal(kg, (dim,), jnp.float32)
        beta = 0.1 * jax.random.normal(kb, (dim,), jnp.float32)
        mean = 0.1 * jax.random.normal(km, (dim,), jnp.float32)
        var = 1.0 + 0.2 * jax.random.uniform(kv, (dim,), jnp.float32)
        return gamma, beta, mean, var

    return dict(
        fw1=linear(fp_size, 512), bn_f1=bn(512),
        fw2=linear(512, 256),     bn_f2=bn(256),
        fw3=linear(256, 128),
        iw1=linear(img_size, 1024), bn_i1=bn(1024),
        iw2=linear(1024, 256),      bn_i2=bn(256),
        iw3=linear(256, 128),
        hw1=linear(256, 256), bn_h1=bn(256),
        hw2=linear(256, 128),
        hw3=linear(128, 64),
        hw4=linear(64, 1),
    )


def _fold_bn_into_next_linear(bn, w, b, eps=1e-5):
    """Eval BN(x) = s*x + t; Linear(BN(x)) = x @ (s[:,None]*W) + (t @ W + b)."""
    gamma, beta, mean, var = bn
    s = gamma / jnp.sqrt(var + eps)
    t = beta - s * mean
    return s[:, None] * w, t @ w + b


def pack_params(raw):
    """Fold BN, pad to lane tiles, quantize weights to bf16, pack into slabs."""
    fw1, fb1 = raw["fw1"]
    fw2, fb2 = _fold_bn_into_next_linear(raw["bn_f1"], *raw["fw2"])
    fw3, fb3 = _fold_bn_into_next_linear(raw["bn_f2"], *raw["fw3"])
    iw1, ib1 = raw["iw1"]
    iw2, ib2 = _fold_bn_into_next_linear(raw["bn_i1"], *raw["iw2"])
    iw3, ib3 = _fold_bn_into_next_linear(raw["bn_i2"], *raw["iw3"])
    hw1, hb1 = raw["hw1"]
    hw2, hb2 = _fold_bn_into_next_linear(raw["bn_h1"], *raw["hw2"])
    hw3, hb3 = raw["hw3"]
    hw4, hb4 = raw["hw4"]

    fp_size, img_size = fw1.shape[0], iw1.shape[0]
    fp_pad, img_pad = _round_up(fp_size, 128), _round_up(img_size, 128)
    bf16 = jnp.bfloat16

    w_fp1 = jnp.zeros((fp_pad, 512), bf16).at[:fp_size].set(fw1.astype(bf16))
    w_img1 = jnp.zeros((img_pad, 1024), bf16).at[:img_size].set(iw1.astype(bf16))
    w_mid = jnp.concatenate([fw2, iw2], axis=0).astype(bf16)              # (1536, 256)
    # fw3 | iw3 | hw1 (fused K=256 head Linear) | hw2  ->  (256, 640)
    w_k256 = jnp.concatenate([fw3, iw3, hw1, hw2], axis=1).astype(bf16)
    # hw3 (64 outs zero-padded to 128) | hw4 slab (col 0, rows 0:64)  ->  (128, 256)
    w_k128 = jnp.zeros((128, 256), bf16)
    w_k128 = w_k128.at[:, 0:64].set(hw3.astype(bf16))
    w_k128 = w_k128.at[0:64, 128:129].set(hw4.astype(bf16))

    bias = jnp.zeros((16, 1024), jnp.float32)
    rows = [fb1, fb2, fb3, ib1, ib2, ib3, hb1, hb2, hb3, hb4]
    for r, v in enumerate(rows):
        bias = bias.at[r, :v.shape[0]].set(v.astype(jnp.float32))

    return (w_fp1, w_img1, w_mid, w_k256, w_k128, bias)


# ------------------------------- references ---------------------------------

def reference_forward_packed(fingerprint, image, packed):
    """Plain-JAX mirror of the kernel math (same bf16 slabs, f32 accumulation)."""
    w_fp1, w_img1, w_mid, w_k256, w_k128, bias = packed

    def pad_feat(x, cols):
        return jnp.pad(x, ((0, 0), (0, cols - x.shape[1])))

    fp = pad_feat(fingerprint, w_fp1.shape[0]).astype(jnp.bfloat16)
    img = pad_feat(image, w_img1.shape[0]).astype(jnp.bfloat16)
    mm = lambda x, w: jnp.dot(x, w, preferred_element_type=jnp.float32)
    act = lambda a: jnp.maximum(a, 0.0).astype(jnp.bfloat16)
    b = lambda r, n: bias[r:r + 1, :n]

    f = act(mm(fp, w_fp1) + b(0, 512))
    f = act(mm(f, w_mid[:512]) + b(1, 256))
    f = act(mm(f, w_k256[:, :128]) + b(2, 128))
    g = act(mm(img, w_img1) + b(3, 1024))
    g = act(mm(g, w_mid[512:]) + b(4, 256))
    g = act(mm(g, w_k256[:, 128:256]) + b(5, 128))
    c = jnp.concatenate([f, g], axis=-1)
    h = act(mm(c, w_k256[:, 256:512]) + b(6, 256))
    h = act(mm(h, w_k256[:, 512:640]) + b(7, 128))
    h = act(mm(h, w_k128[:, 0:128]) + b(8, 128))
    out = mm(h, w_k128[:, 128:256]) + b(9, 128)
    return out[:, :1]


def reference_forward_unfolded(fingerprint, image, raw, eps=1e-5):
    """f32 eval-mode forward of the ORIGINAL PyTorch graph (no BN folding)."""
    relu = lambda x: jnp.maximum(x, 0.0)
    lin = lambda x, wb: x @ wb[0] + wb[1]

    def bn(x, p):
        gamma, beta, mean, var = p
        return (x - mean) / jnp.sqrt(var + eps) * gamma + beta

    f = relu(lin(fingerprint, raw["fw1"]))
    f = bn(f, raw["bn_f1"])                   # Dropout(0.2) = identity in eval
    f = relu(lin(f, raw["fw2"]))
    f = bn(f, raw["bn_f2"])
    f = relu(lin(f, raw["fw3"]))

    g = relu(lin(image, raw["iw1"]))
    g = bn(g, raw["bn_i1"])
    g = relu(lin(g, raw["iw2"]))
    g = bn(g, raw["bn_i2"])
    g = relu(lin(g, raw["iw3"]))

    c = jnp.concatenate([f, g], axis=1)
    h = relu(lin(c, raw["hw1"]))
    h = bn(h, raw["bn_h1"])
    h = relu(lin(h, raw["hw2"]))
    h = relu(lin(h, raw["hw3"]))
    return lin(h, raw["hw4"])


# ----------------------------------- main ------------------------------------

if __name__ == "__main__":
    batch = 8
    fingerprint_size = 167      # MACCS key count
    image_feature_size = 256

    root = jax.random.PRNGKey(0)
    k_fp, k_img, k_params = jax.random.split(root, 3)

    fingerprint = jax.random.uniform(k_fp, (batch, fingerprint_size), jnp.float32)
    image = jax.random.normal(k_img, (batch, image_feature_size), jnp.float32)

    raw = build_raw_params(k_params, fingerprint_size, image_feature_size)
    packed = pack_params(raw)

    out = jax.block_until_ready(mixed_input_forward(fingerprint, image, packed))
    assert out.shape == (batch, 1)

    # Check 1 (tight): Pallas kernel vs identical bf16/f32-accum math in plain JAX.
    ref_packed = reference_forward_packed(fingerprint, image, packed)
    assert jnp.allclose(out, ref_packed, atol=2e-3, rtol=2e-3), \
        "mismatch vs packed bf16 reference"

    # Check 2 (semantic): vs the unfolded f32 eval-mode PyTorch graph
    # (validates the BN fold + bf16 quantization, looser tolerance for bf16).
    ref_f32 = reference_forward_unfolded(fingerprint, image, raw)
    assert jnp.allclose(out, ref_f32, atol=5e-2, rtol=5e-2), \
        "mismatch vs unfolded f32 reference"

    print("KERNEL_OK")
</pallas_src>

<mosaic_0001>
module attributes {stable_mosaic.version = 11 : i64} {
  func.func @_mixed_input_kernel(%arg0: i32, %arg1: memref<16x256xf32, #tpu.memory_space<vmem>>, %arg2: memref<16x256xf32, #tpu.memory_space<vmem>>, %arg3: memref<256x512xbf16, #tpu.memory_space<vmem>>, %arg4: memref<256x1024xbf16, #tpu.memory_space<vmem>>, %arg5: memref<1536x256xbf16, #tpu.memory_space<vmem>>, %arg6: memref<256x640xbf16, #tpu.memory_space<vmem>>, %arg7: memref<128x256xbf16, #tpu.memory_space<vmem>>, %arg8: memref<16x1024xf32, #tpu.memory_space<vmem>>, %arg9: memref<16x128xf32, #tpu.memory_space<vmem>>) attributes {dimension_semantics = [#tpu.dimension_semantics<parallel>], iteration_bounds = array<i64: 1>, scalar_prefetch = 0 : i64, scratch_operands = 0 : i64, tpu.core_type = #tpu.core_type<tc>, window_params = [{transform_indices = @transform_0, window_bounds = array<i64: 16, 256>}, {transform_indices = @transform_1, window_bounds = array<i64: 16, 256>}, {pipeline_mode = #tpu.pipeline_mode<synchronous>, transform_indices = @transform_2, window_bounds = array<i64: 256, 512>}, {pipeline_mode = #tpu.pipeline_mode<synchronous>, transform_indices = @transform_3, window_bounds = array<i64: 256, 1024>}, {pipeline_mode = #tpu.pipeline_mode<synchronous>, transform_indices = @transform_4, window_bounds = array<i64: 1536, 256>}, {pipeline_mode = #tpu.pipeline_mode<synchronous>, transform_indices = @transform_5, window_bounds = array<i64: 256, 640>}, {pipeline_mode = #tpu.pipeline_mode<synchronous>, transform_indices = @transform_6, window_bounds = array<i64: 128, 256>}, {pipeline_mode = #tpu.pipeline_mode<synchronous>, transform_indices = @transform_7, window_bounds = array<i64: 16, 1024>}, {transform_indices = @transform_8, window_bounds = array<i64: 16, 128>}]} {
    %c0 = arith.constant 0 : index
    %c0_0 = arith.constant 0 : index
    %0 = vector.load %arg1[%c0, %c0_0] : memref<16x256xf32, #tpu.memory_space<vmem>>, vector<16x256xf32>
    %1 = arith.truncf %0 : vector<16x256xf32> to vector<16x256xbf16>
    %c0_1 = arith.constant 0 : index
    %c0_2 = arith.constant 0 : index
    %2 = vector.load %arg2[%c0_1, %c0_2] : memref<16x256xf32, #tpu.memory_space<vmem>>, vector<16x256xf32>
    %3 = arith.truncf %2 : vector<16x256xf32> to vector<16x256xbf16>
    %c0_3 = arith.constant 0 : index
    %c0_4 = arith.constant 0 : index
    %4 = vector.load %arg3[%c0_3, %c0_4] : memref<256x512xbf16, #tpu.memory_space<vmem>>, vector<256x512xbf16>
    %cst = arith.constant dense<0.000000e+00> : vector<16x512xf32>
    %5 = tpu.matmul %1, %4, %cst {dimension_numbers = #tpu.dot_dimension_numbers<[1], [0], [0], [1], [0, 0, 1, 1], [], []>} : vector<16x256xbf16>, vector<256x512xbf16>, vector<16x512xf32> -> vector<16x512xf32>
    %c0_5 = arith.constant 0 : index
    %c0_6 = arith.constant 0 : index
    %6 = vector.load %arg8[%c0_5, %c0_6] : memref<16x1024xf32, #tpu.memory_space<vmem>>, vector<1x512xf32>
    %7 = vector.broadcast %6 : vector<1x512xf32> to vector<16x512xf32>
    %8 = arith.addf %5, %7 : vector<16x512xf32>
    %cst_7 = arith.constant 0.000000e+00 : f32
    %9 = vector.broadcast %cst_7 : f32 to vector<16x512xf32>
    %10 = arith.maximumf %8, %9 : vector<16x512xf32>
    %11 = arith.truncf %10 : vector<16x512xf32> to vector<16x512xbf16>
    %c0_8 = arith.constant 0 : index
    %c0_9 = arith.constant 0 : index
    %12 = vector.load %arg5[%c0_8, %c0_9] : memref<1536x256xbf16, #tpu.memory_space<vmem>>, vector<512x256xbf16>
    %cst_10 = arith.constant dense<0.000000e+00> : vector<16x256xf32>
    %13 = tpu.matmul %11, %12, %cst_10 {dimension_numbers = #tpu.dot_dimension_numbers<[1], [0], [0], [1], [0, 0, 1, 1], [], []>} : vector<16x512xbf16>, vector<512x256xbf16>, vector<16x256xf32> -> vector<16x256xf32>
    %c1 = arith.constant 1 : index
    %c0_11 = arith.constant 0 : index
    %14 = vector.load %arg8[%c1, %c0_11] : memref<16x1024xf32, #tpu.memory_space<vmem>>, vector<1x256xf32>
    %15 = vector.broadcast %14 : vector<1x256xf32> to vector<16x256xf32>
    %16 = arith.addf %13, %15 : vector<16x256xf32>
    %cst_12 = arith.constant 0.000000e+00 : f32
    %17 = vector.broadcast %cst_12 : f32 to vector<16x256xf32>
    %18 = arith.maximumf %16, %17 : vector<16x256xf32>
    %19 = arith.truncf %18 : vector<16x256xf32> to vector<16x256xbf16>
    %c0_13 = arith.constant 0 : index
    %c0_14 = arith.constant 0 : index
    %20 = vector.load %arg6[%c0_13, %c0_14] : memref<256x640xbf16, #tpu.memory_space<vmem>>, vector<256x128xbf16>
    %cst_15 = arith.constant dense<0.000000e+00> : vector<16x128xf32>
    %21 = tpu.matmul %19, %20, %cst_15 {dimension_numbers = #tpu.dot_dimension_numbers<[1], [0], [0], [1], [0, 0, 1, 1], [], []>} : vector<16x256xbf16>, vector<256x128xbf16>, vector<16x128xf32> -> vector<16x128xf32>
    %c2 = arith.constant 2 : index
    %c0_16 = arith.constant 0 : index
    %22 = vector.load %arg8[%c2, %c0_16] : memref<16x1024xf32, #tpu.memory_space<vmem>>, vector<1x128xf32>
    %23 = vector.broadcast %22 : vector<1x128xf32> to vector<16x128xf32>
    %24 = arith.addf %21, %23 : vector<16x128xf32>
    %cst_17 = arith.constant 0.000000e+00 : f32
    %25 = vector.broadcast %cst_17 : f32 to vector<16x128xf32>
    %26 = arith.maximumf %24, %25 : vector<16x128xf32>
    %27 = arith.truncf %26 : vector<16x128xf32> to vector<16x128xbf16>
    %c0_18 = arith.constant 0 : index
    %c0_19 = arith.constant 0 : index
    %28 = vector.load %arg4[%c0_18, %c0_19] : memref<256x1024xbf16, #tpu.memory_space<vmem>>, vector<256x1024xbf16>
    %cst_20 = arith.constant dense<0.000000e+00> : vector<16x1024xf32>
    %29 = tpu.matmul %3, %28, %cst_20 {dimension_numbers = #tpu.dot_dimension_numbers<[1], [0], [0], [1], [0, 0, 1, 1], [], []>} : vector<16x256xbf16>, vector<256x1024xbf16>, vector<16x1024xf32> -> vector<16x1024xf32>
    %c3 = arith.constant 3 : index
    %c0_21 = arith.constant 0 : index
    %30 = vector.load %arg8[%c3, %c0_21] : memref<16x1024xf32, #tpu.memory_space<vmem>>, vector<1x1024xf32>
    %31 = vector.broadcast %30 : vector<1x1024xf32> to vector<16x1024xf32>
    %32 = arith.addf %29, %31 : vector<16x1024xf32>
    %cst_22 = arith.constant 0.000000e+00 : f32
    %33 = vector.broadcast %cst_22 : f32 to vector<16x1024xf32>
    %34 = arith.maximumf %32, %33 : vector<16x1024xf32>
    %35 = arith.truncf %34 : vector<16x1024xf32> to vector<16x1024xbf16>
    %c512 = arith.constant 512 : index
    %c0_23 = arith.constant 0 : index
    %36 = vector.load %arg5[%c512, %c0_23] : memref<1536x256xbf16, #tpu.memory_space<vmem>>, vector<1024x256xbf16>
    %cst_24 = arith.constant dense<0.000000e+00> : vector<16x256xf32>
    %37 = tpu.matmul %35, %36, %cst_24 {dimension_numbers = #tpu.dot_dimension_numbers<[1], [0], [0], [1], [0, 0, 1, 1], [], []>} : vector<16x1024xbf16>, vector<1024x256xbf16>, vector<16x256xf32> -> vector<16x256xf32>
    %c4 = arith.constant 4 : index
    %c0_25 = arith.constant 0 : index
    %38 = vector.load %arg8[%c4, %c0_25] : memref<16x1024xf32, #tpu.memory_space<vmem>>, vector<1x256xf32>
    %39 = vector.broadcast %38 : vector<1x256xf32> to vector<16x256xf32>
    %40 = arith.addf %37, %39 : vector<16x256xf32>
    %cst_26 = arith.constant 0.000000e+00 : f32
    %41 = vector.broadcast %cst_26 : f32 to vector<16x256xf32>
    %42 = arith.maximumf %40, %41 : vector<16x256xf32>
    %43 = arith.truncf %42 : vector<16x256xf32> to vector<16x256xbf16>
    %c0_27 = arith.constant 0 : index
    %c128 = arith.constant 128 : index
    %44 = vector.load %arg6[%c0_27, %c128] : memref<256x640xbf16, #tpu.memory_space<vmem>>, vector<256x128xbf16>
    %cst_28 = arith.constant dense<0.000000e+00> : vector<16x128xf32>
    %45 = tpu.matmul %43, %44, %cst_28 {dimension_numbers = #tpu.dot_dimension_numbers<[1], [0], [0], [1], [0, 0, 1, 1], [], []>} : vector<16x256xbf16>, vector<256x128xbf16>, vector<16x128xf32> -> vector<16x128xf32>
    %c5 = arith.constant 5 : index
    %c0_29 = arith.constant 0 : index
    %46 = vector.load %arg8[%c5, %c0_29] : memref<16x1024xf32, #tpu.memory_space<vmem>>, vector<1x128xf32>
    %47 = vector.broadcast %46 : vector<1x128xf32> to vector<16x128xf32>
    %48 = arith.addf %45, %47 : vector<16x128xf32>
    %cst_30 = arith.constant 0.000000e+00 : f32
    %49 = vector.broadcast %cst_30 : f32 to vector<16x128xf32>
    %50 = arith.maximumf %48, %49 : vector<16x128xf32>
    %51 = arith.truncf %50 : vector<16x128xf32> to vector<16x128xbf16>
    %52 = tpu.concatenate %27, %51 in 1 : vector<16x128xbf16>, vector<16x128xbf16> -> vector<16x256xbf16>
    %c0_31 = arith.constant 0 : index
    %c256 = arith.constant 256 : index
    %53 = vector.load %arg6[%c0_31, %c256] : memref<256x640xbf16, #tpu.memory_space<vmem>>, vector<256x256xbf16>
    %cst_32 = arith.constant dense<0.000000e+00> : vector<16x256xf32>
    %54 = tpu.matmul %52, %53, %cst_32 {dimension_numbers = #tpu.dot_dimension_numbers<[1], [0], [0], [1], [0, 0, 1, 1], [], []>} : vector<16x256xbf16>, vector<256x256xbf16>, vector<16x256xf32> -> vector<16x256xf32>
    %c6 = arith.constant 6 : index
    %c0_33 = arith.constant 0 : index
    %55 = vector.load %arg8[%c6, %c0_33] : memref<16x1024xf32, #tpu.memory_space<vmem>>, vector<1x256xf32>
    %56 = vector.broadcast %55 : vector<1x256xf32> to vector<16x256xf32>
    %57 = arith.addf %54, %56 : vector<16x256xf32>
    %cst_34 = arith.constant 0.000000e+00 : f32
    %58 = vector.broadcast %cst_34 : f32 to vector<16x256xf32>
    %59 = arith.maximumf %57, %58 : vector<16x256xf32>
    %60 = arith.truncf %59 : vector<16x256xf32> to vector<16x256xbf16>
    %c0_35 = arith.constant 0 : index
    %c512_36 = arith.constant 512 : index
    %61 = vector.load %arg6[%c0_35, %c512_36] : memref<256x640xbf16, #tpu.memory_space<vmem>>, vector<256x128xbf16>
    %cst_37 = arith.constant dense<0.000000e+00> : vector<16x128xf32>
    %62 = tpu.matmul %60, %61, %cst_37 {dimension_numbers = #tpu.dot_dimension_numbers<[1], [0], [0], [1], [0, 0, 1, 1], [], []>} : vector<16x256xbf16>, vector<256x128xbf16>, vector<16x128xf32> -> vector<16x128xf32>
    %c7 = arith.constant 7 : index
    %c0_38 = arith.constant 0 : index
    %63 = vector.load %arg8[%c7, %c0_38] : memref<16x1024xf32, #tpu.memory_space<vmem>>, vector<1x128xf32>
    %64 = vector.broadcast %63 : vector<1x128xf32> to vector<16x128xf32>
    %65 = arith.addf %62, %64 : vector<16x128xf32>
    %cst_39 = arith.constant 0.000000e+00 : f32
    %66 = vector.broadcast %cst_39 : f32 to vector<16x128xf32>
    %67 = arith.maximumf %65, %66 : vector<16x128xf32>
    %68 = arith.truncf %67 : vector<16x128xf32> to vector<16x128xbf16>
    %c0_40 = arith.constant 0 : index
    %c0_41 = arith.constant 0 : index
    %69 = vector.load %arg7[%c0_40, %c0_41] : memref<128x256xbf16, #tpu.memory_space<vmem>>, vector<128x128xbf16>
    %cst_42 = arith.constant dense<0.000000e+00> : vector<16x128xf32>
    %70 = tpu.matmul %68, %69, %cst_42 {dimension_numbers = #tpu.dot_dimension_numbers<[1], [0], [0], [1], [0, 0, 1, 1], [], []>} : vector<16x128xbf16>, vector<128x128xbf16>, vector<16x128xf32> -> vector<16x128xf32>
    %c8 = arith.constant 8 : index
    %c0_43 = arith.constant 0 : index
    %71 = vector.load %arg8[%c8, %c0_43] : memref<16x1024xf32, #tpu.memory_space<vmem>>, vector<1x128xf32>
    %72 = vector.broadcast %71 : vector<1x128xf32> to vector<16x128xf32>
    %73 = arith.addf %70, %72 : vector<16x128xf32>
    %cst_44 = arith.constant 0.000000e+00 : f32
    %74 = vector.broadcast %cst_44 : f32 to vector<16x128xf32>
    %75 = arith.maximumf %73, %74 : vector<16x128xf32>
    %76 = arith.truncf %75 : vector<16x128xf32> to vector<16x128xbf16>
    %c0_45 = arith.constant 0 : index
    %c128_46 = arith.constant 128 : index
    %77 = vector.load %arg7[%c0_45, %c128_46] : memref<128x256xbf16, #tpu.memory_space<vmem>>, vector<128x128xbf16>
    %cst_47 = arith.constant dense<0.000000e+00> : vector<16x128xf32>
    %78 = tpu.matmul %76, %77, %cst_47 {dimension_numbers = #tpu.dot_dimension_numbers<[1], [0], [0], [1], [0, 0, 1, 1], [], []>} : vector<16x128xbf16>, vector<128x128xbf16>, vector<16x128xf32> -> vector<16x128xf32>
    %c9 = arith.constant 9 : index
    %c0_48 = arith.constant 0 : index
    %79 = vector.load %arg8[%c9, %c0_48] : memref<16x1024xf32, #tpu.memory_space<vmem>>, vector<1x128xf32>
    %80 = vector.broadcast %79 : vector<1x128xf32> to vector<16x128xf32>
    %81 = arith.addf %78, %80 : vector<16x128xf32>
    %c0_49 = arith.constant 0 : index
    %c0_50 = arith.constant 0 : index
    %82 = vector.load %arg9[%c0_49, %c0_50] : memref<16x128xf32, #tpu.memory_space<vmem>>, vector<16x128xf32>
    tpu.vector_store %arg9[%c0_49, %c0_50], %81 {strides = array<i32>} : memref<16x128xf32, #tpu.memory_space<vmem>>, vector<16x128xf32>,
    return
  }
  func.func @transform_0(%arg0: i32) -> (i32, i32) {
    %c0_i32 = arith.constant 0 : i32
    %c0_i32_0 = arith.constant 0 : i32
    return %arg0, %c0_i32 : i32, i32
  }
  func.func @transform_1(%arg0: i32) -> (i32, i32) {
    %c0_i32 = arith.constant 0 : i32
    %c0_i32_0 = arith.constant 0 : i32
    return %arg0, %c0_i32 : i32, i32
  }
  func.func @transform_2(%arg0: i32) -> (i32, i32) {
    %c0_i32 = arith.constant 0 : i32
    %c0_i32_0 = arith.constant 0 : i32
    %c0_i32_1 = arith.constant 0 : i32
    return %c0_i32, %c0_i32_0 : i32, i32
  }
  func.func @transform_3(%arg0: i32) -> (i32, i32) {
    %c0_i32 = arith.constant 0 : i32
    %c0_i32_0 = arith.constant 0 : i32
    %c0_i32_1 = arith.constant 0 : i32
    return %c0_i32, %c0_i32_0 : i32, i32
  }
  func.func @transform_4(%arg0: i32) -> (i32, i32) {
    %c0_i32 = arith.constant 0 : i32
    %c0_i32_0 = arith.constant 0 : i32
    %c0_i32_1 = arith.constant 0 : i32
    return %c0_i32, %c0_i32_0 : i32, i32
  }
  func.func @transform_5(%arg0: i32) -> (i32, i32) {
    %c0_i32 = arith.constant 0 : i32
    %c0_i32_0 = arith.constant 0 : i32
    %c0_i32_1 = arith.constant 0 : i32
    return %c0_i32, %c0_i32_0 : i32, i32
  }
  func.func @transform_6(%arg0: i32) -> (i32, i32) {
    %c0_i32 = arith.constant 0 : i32
    %c0_i32_0 = arith.constant 0 : i32
    %c0_i32_1 = arith.constant 0 : i32
    return %c0_i32, %c0_i32_0 : i32, i32
  }
  func.func @transform_7(%arg0: i32) -> (i32, i32) {
    %c0_i32 = arith.constant 0 : i32
    %c0_i32_0 = arith.constant 0 : i32
    %c0_i32_1 = arith.constant 0 : i32
    return %c0_i32, %c0_i32_0 : i32, i32
  }
  func.func @transform_8(%arg0: i32) -> (i32, i32) {
    %c0_i32 = arith.constant 0 : i32
    %c0_i32_0 = arith.constant 0 : i32
    return %arg0, %c0_i32 : i32, i32
  }
}

</mosaic_0001>

<llo_original>
// kernel: tpu_custom_call.1
$region0: #{tpu_custom_call.1}
  #allocation0 [shape = 'u32[]', space=smem, size = 0x4, offset = 0x4, fixed_abs, tag = 'smem constant byte address 0x4 - core index']
  #allocation1 [shape = 'u32[72,128]{1,0:T(1,128)}', space=vmem, size = 0x9000, scoped, tag = 'internal scratch']
  %s0 = inlined_call_operand.hbm [shape: f32[16,256], index: 0, kind: input, shape index: {}]
  %s1 = inlined_call_operand.hbm [shape: f32[16,256], index: 1, kind: input, shape index: {}]
  %s2 = inlined_call_operand.hbm [shape: bf16[256,512], index: 2, kind: input, shape index: {}]
  %s3 = inlined_call_operand.hbm [shape: bf16[256,1024], index: 3, kind: input, shape index: {}]
  %s4 = inlined_call_operand.hbm [shape: bf16[1536,256], index: 4, kind: input, shape index: {}]
  %s5 = inlined_call_operand.hbm [shape: bf16[256,640], index: 5, kind: input, shape index: {}]
  %s6 = inlined_call_operand.hbm [shape: bf16[128,256], index: 6, kind: input, shape index: {}]
  %s7 = inlined_call_operand.hbm [shape: f32[16,1024], index: 7, kind: input, shape index: {}]
  %s8 = inlined_call_operand.hbm [shape: f32[16,128], index: 8, kind: output, shape index: {}]
  %s9 = sld [smem:[#allocation0]]
  $region74: #{tpu_custom_call.1} parent=0
    _
  %s11 = ssub.s32 1, %s9
  %s12 = scalar_select 0, %s11, %s9
  $region1: #{tpu_custom_call.1} parent=0
    #allocation2 [shape = 'u8[16384]{0}', space=vmem, size = 0x4000, scoped, tag = 'input window, operand 0, single buffered']
    #allocation3 [shape = 's32[1]{0}', space=sflag, size = 0x4, scoped, tag = 'scoped memory for tpu_custom_call.1']
    #allocation4 [shape = 's32[1]{0}', space=sflag, size = 0x4, scoped, tag = 'scoped memory for tpu_custom_call.1']
    #allocation5 [shape = 'u8[16384]{0}', space=vmem, size = 0x4000, scoped, tag = 'input window, operand 1, single buffered']
    #allocation6 [shape = 's32[1]{0}', space=sflag, size = 0x4, scoped, tag = 'scoped memory for tpu_custom_call.1']
    #allocation7 [shape = 'u8[262144]{0}', space=vmem, size = 0x40000, scoped, tag = 'input window, operand 2, single buffered']
    #allocation8 [shape = 'u8[524288]{0}', space=vmem, size = 0x80000, scoped, tag = 'input window, operand 3, single buffered']
    #allocation9 [shape = 's32[1]{0}', space=sflag, size = 0x4, scoped, tag = 'scoped memory for tpu_custom_call.1']
    #allocation10 [shape = 'u8[786432]{0}', space=vmem, size = 0xc0000, scoped, tag = 'input window, operand 4, single buffered']
    #allocation11 [shape = 'u8[327680]{0}', space=vmem, size = 0x50000, scoped, tag = 'input window, operand 5, single buffered']
    #allocation12 [shape = 's32[1]{0}', space=sflag, size = 0x4, scoped, tag = 'scoped memory for tpu_custom_call.1']
    #allocation13 [shape = 'u8[65536]{0}', space=vmem, size = 0x10000, scoped, tag = 'input window, operand 6, single buffered']
    #allocation14 [shape = 'u8[65536]{0}', space=vmem, size = 0x10000, scoped, tag = 'input window, operand 7, single buffered']
    #allocation15 [shape = 's32[1]{0}', space=sflag, size = 0x4, scoped, tag = 'scoped memory for tpu_custom_call.1']
    #allocation16 [shape = 'u8[8192]{0}', space=vmem, size = 0x2000, scoped, tag = 'output window, operand 0, single buffered']
    %13 = vsyncpa [#allocation3], 0
    %14 = vsyncpa [#allocation6], 0
    %15 = vsyncpa [#allocation9], 0
    %16 = vsyncpa [#allocation12], 0
    %17 = vsyncpa [#allocation15], 0
    %18 = vsyncpa [#allocation4], 0
    // Predicated region
    $region2: #{tpu_custom_call.1} parent=1 // pred_check
      _
    $region3: #{tpu_custom_call.1} parent=1 // pred_check_branch
      %20 = sbr.rel (0) target = $region5
    $region4: #{tpu_custom_call.1} parent=1 // pred_region
      %22 = vsyncadd [#allocation3], 0
      %s23 = sshll.u32 %s0, 4
      %s24 = int_to_ptr.hbm [resolvable:$true] %s23
      %s25 = sshll.u32 [#allocation2], 4
      %s26 = int_to_ptr.vmem [resolvable:$true] %s25
      %31 = dma.hbm_to_vmem [thread:$0]  %s24, 512, %s26, [#allocation3], 256, 256, 16
    $region5: #{tpu_custom_call.1} parent=1 // pred_fallthru
      _
    // Predicated region
    $region6: #{tpu_custom_call.1} parent=1 // pred_check
      _
    $region7: #{tpu_custom_call.1} parent=1 // pred_check_branch
      %33 = sbr.rel (0) target = $region9
    $region8: #{tpu_custom_call.1} parent=1 // pred_region
      %35 = vsyncadd [#allocation6], 0
      %s36 = sshll.u32 %s1, 4
      %s37 = int_to_ptr.hbm [resolvable:$true] %s36
      %s38 = sshll.u32 [#allocation5], 4
      %s39 = int_to_ptr.vmem [resolvable:$true] %s38
      %44 = dma.hbm_to_vmem [thread:$0]  %s37, 512, %s39, [#allocation6], 256, 256, 16
    $region9: #{tpu_custom_call.1} parent=1 // pred_fallthru
      _
    // Predicated region
    $region10: #{tpu_custom_call.1} parent=1 // pred_check
      _
    $region11: #{tpu_custom_call.1} parent=1 // pred_check_branch
      %46 = sbr.rel (0) target = $region13
    $region12: #{tpu_custom_call.1} parent=1 // pred_region
      %48 = vsyncadd [#allocation6], 0
      %s49 = sshll.u32 %s2, 4
      %s50 = int_to_ptr.hbm [resolvable:$true] %s49
      %s51 = sshll.u32 [#allocation7], 4
      %s52 = int_to_ptr.vmem [resolvable:$true] %s51
      %57 = dma.hbm_to_vmem [thread:$0]  %s50, 8192, %s52, [#allocation6], 256, 256, 16
    $region13: #{tpu_custom_call.1} parent=1 // pred_fallthru
      _
    // Predicated region
    $region14: #{tpu_custom_call.1} parent=1 // pred_check
      _
    $region15: #{tpu_custom_call.1} parent=1 // pred_check_branch
      %59 = sbr.rel (0) target = $region17
    $region16: #{tpu_custom_call.1} parent=1 // pred_region
      %61 = vsyncadd [#allocation9], 0
      %s62 = sshll.u32 %s3, 4
      %s63 = int_to_ptr.hbm [resolvable:$true] %s62
      %s64 = sshll.u32 [#allocation8], 4
      %s65 = int_to_ptr.vmem [resolvable:$true] %s64
      %70 = dma.hbm_to_vmem [thread:$0]  %s63, 16384, %s65, [#allocation9], 512, 512, 32
    $region17: #{tpu_custom_call.1} parent=1 // pred_fallthru
      _
    // Predicated region
    $region18: #{tpu_custom_call.1} parent=1 // pred_check
      _
    $region19: #{tpu_custom_call.1} parent=1 // pred_check_branch
      %72 = sbr.rel (0) target = $region21
    $region20: #{tpu_custom_call.1} parent=1 // pred_region
      %74 = vsyncadd [#allocation9], 0
      %s75 = sshll.u32 %s4, 4
      %s76 = int_to_ptr.hbm [resolvable:$true] %s75
      %s77 = sshll.u32 [#allocation10], 4
      %s78 = int_to_ptr.vmem [resolvable:$true] %s77
      %83 = dma.hbm_to_vmem [thread:$0]  %s76, 24576, %s78, [#allocation9], 128, 128, 8
    $region21: #{tpu_custom_call.1} parent=1 // pred_fallthru
      _
    // Predicated region
    $region22: #{tpu_custom_call.1} parent=1 // pred_check
      _
    $region23: #{tpu_custom_call.1} parent=1 // pred_check_branch
      %85 = sbr.rel (0) target = $region25
    $region24: #{tpu_custom_call.1} parent=1 // pred_region
      %87 = vsyncadd [#allocation12], 0
      %s88 = sshll.u32 %s5, 4
      %s89 = int_to_ptr.hbm [resolvable:$true] %s88
      %s90 = sshll.u32 [#allocation11], 4
      %s91 = int_to_ptr.vmem [resolvable:$true] %s90
      %96 = dma.hbm_to_vmem [thread:$0]  %s89, 10240, %s91, [#allocation12], 320, 320, 20
    $region25: #{tpu_custom_call.1} parent=1 // pred_fallthru
      _
    // Predicated region
    $region26: #{tpu_custom_call.1} parent=1 // pred_check
      _
    $region27: #{tpu_custom_call.1} parent=1 // pred_check_branch
      %98 = sbr.rel (0) target = $region29
    $region28: #{tpu_custom_call.1} parent=1 // pred_region
      %100 = vsyncadd [#allocation12], 0
      %s101 = sshll.u32 %s6, 4
      %s102 = int_to_ptr.hbm [resolvable:$true] %s101
      %s103 = sshll.u32 [#allocation13], 4
      %s104 = int_to_ptr.vmem [resolvable:$true] %s103
      %109 = dma.hbm_to_vmem [thread:$0]  %s102, 2048, %s104, [#allocation12], 128, 128, 8
    $region29: #{tpu_custom_call.1} parent=1 // pred_fallthru
      _
    // Predicated region
    $region30: #{tpu_custom_call.1} parent=1 // pred_check
      _
    $region31: #{tpu_custom_call.1} parent=1 // pred_check_branch
      %111 = sbr.rel (0) target = $region33
    $region32: #{tpu_custom_call.1} parent=1 // pred_region
      %113 = vsyncadd [#allocation15], 0
      %s114 = sshll.u32 %s7, 4
      %s115 = int_to_ptr.hbm [resolvable:$true] %s114
      %s116 = sshll.u32 [#allocation14], 4
      %s117 = int_to_ptr.vmem [resolvable:$true] %s116
      %122 = dma.hbm_to_vmem [thread:$0]  %s115, 2048, %s117, [#allocation15], 1024, 1024, 64
    $region33: #{tpu_custom_call.1} parent=1 // pred_fallthru
      _
    // Predicated region
    $region34: #{tpu_custom_call.1} parent=1 // pred_check
      _
    $region35: #{tpu_custom_call.1} parent=1 // pred_check_branch
      %124 = sbr.rel (0) target = $region37
    $region36: #{tpu_custom_call.1} parent=1 // pred_region
      %126 = dma.done [#allocation3], 512
    $region37: #{tpu_custom_call.1} parent=1 // pred_fallthru
      _
    // Predicated region
    $region38: #{tpu_custom_call.1} parent=1 // pred_check
      _
    $region39: #{tpu_custom_call.1} parent=1 // pred_check_branch
      %128 = sbr.rel (0) target = $region41
    $region40: #{tpu_custom_call.1} parent=1 // pred_region
      %130 = dma.done [#allocation6], 512
    $region41: #{tpu_custom_call.1} parent=1 // pred_fallthru
      _
    // Predicated region
    $region42: #{tpu_custom_call.1} parent=1 // pred_check
      _
    $region43: #{tpu_custom_call.1} parent=1 // pred_check_branch
      %132 = sbr.rel (0) target = $region45
    $region44: #{tpu_custom_call.1} parent=1 // pred_region
      %134 = dma.done [#allocation6], 8192
    $region45: #{tpu_custom_call.1} parent=1 // pred_fallthru
      _
    // Predicated region
    $region46: #{tpu_custom_call.1} parent=1 // pred_check
      _
    $region47: #{tpu_custom_call.1} parent=1 // pred_check_branch
      %136 = sbr.rel (0) target = $region49
    $region48: #{tpu_custom_call.1} parent=1 // pred_region
      %138 = dma.done [#allocation9], 16384
    $region49: #{tpu_custom_call.1} parent=1 // pred_fallthru
      _
    // Predicated region
    $region50: #{tpu_custom_call.1} parent=1 // pred_check
      _
    $region51: #{tpu_custom_call.1} parent=1 // pred_check_branch
      %140 = sbr.rel (0) target = $region53
    $region52: #{tpu_custom_call.1} parent=1 // pred_region
      %142 = dma.done [#allocation9], 24576
    $region53: #{tpu_custom_call.1} parent=1 // pred_fallthru
      _
    // Predicated region
    $region54: #{tpu_custom_call.1} parent=1 // pred_check
      _
    $region55: #{tpu_custom_call.1} parent=1 // pred_check_branch
      %144 = sbr.rel (0) target = $region57
    $region56: #{tpu_custom_call.1} parent=1 // pred_region
      %146 = dma.done [#allocation12], 10240
    $region57: #{tpu_custom_call.1} parent=1 // pred_fallthru
      _
    // Predicated region
    $region58: #{tpu_custom_call.1} parent=1 // pred_check
      _
    $region59: #{tpu_custom_call.1} parent=1 // pred_check_branch
      %148 = sbr.rel (0) target = $region61
    $region60: #{tpu_custom_call.1} parent=1 // pred_region
      %150 = dma.done [#allocation12], 2048
    $region61: #{tpu_custom_call.1} parent=1 // pred_fallthru
      _
    // Predicated region
    $region62: #{tpu_custom_call.1} parent=1 // pred_check
      _
    $region63: #{tpu_custom_call.1} parent=1 // pred_check_branch
      %152 = sbr.rel (0) target = $region65
    $region64: #{tpu_custom_call.1} parent=1 // pred_region
      %154 = dma.done [#allocation15], 2048
    $region65: #{tpu_custom_call.1} parent=1 // pred_fallthru
      _
    %v155 = vld [vmem:[#allocation2] sm:$0xff]
    %v156 = vld [vmem:[#allocation2 + $0x8] sm:$0xff]
    %v157 = vld [vmem:[#allocation2 + $0x10] sm:$0xff]
    %v158 = vld [vmem:[#allocation2 + $0x18] sm:$0xff]
    %v159 = vpack.c.bf16 %v157, %v155
    %v160 = vpack.c.bf16 %v158, %v156
    %v161 = vld [vmem:[#allocation5] sm:$0xff]
    %v162 = vld [vmem:[#allocation5 + $0x8] sm:$0xff]
    %v163 = vld [vmem:[#allocation5 + $0x10] sm:$0xff]
    %v164 = vld [vmem:[#allocation5 + $0x18] sm:$0xff]
    %v165 = vpack.c.bf16 %v163, %v161
    %v166 = vpack.c.bf16 %v164, %v162
    %v167 = vld [vmem:[#allocation7] sm:$0xff]
    %v168 = vld [vmem:[#allocation7 + $0x8] sm:$0xff]
    %v169 = vld [vmem:[#allocation7 + $0x10] sm:$0xff]
    %v170 = vld [vmem:[#allocation7 + $0x18] sm:$0xff]
    %v171 = vld [vmem:[#allocation7 + $0x20] sm:$0xff]
    %v172 = vld [vmem:[#allocation7 + $0x28] sm:$0xff]
    %v173 = vld [vmem:[#allocation7 + $0x30] sm:$0xff]
    %v174 = vld [vmem:[#allocation7 + $0x38] sm:$0xff]
    %v175 = vld [vmem:[#allocation7 + $0x40] sm:$0xff]
    %v176 = vld [vmem:[#allocation7 + $0x48] sm:$0xff]
    %v177 = vld [vmem:[#allocation7 + $0x50] sm:$0xff]
    %v178 = vld [vmem:[#allocation7 + $0x58] sm:$0xff]
    %v179 = vld [vmem:[#allocation7 + $0x60] sm:$0xff]
    %v180 = vld [vmem:[#allocation7 + $0x68] sm:$0xff]
    %v181 = vld [vmem:[#allocation7 + $0x70] sm:$0xff]
    %v182 = vld [vmem:[#allocation7 + $0x78] sm:$0xff]
    %v183 = vld [vmem:[#allocation7 + $0x80] sm:$0xff]
    %v184 = vld [vmem:[#allocation7 + $0x88] sm:$0xff]
    %v185 = vld [vmem:[#allocation7 + $0x90] sm:$0xff]
    %v186 = vld [vmem:[#allocation7 + $0x98] sm:$0xff]
    %v187 = vld [vmem:[#allocation7 + $0xa0] sm:$0xff]
    %v188 = vld [vmem:[#allocation7 + $0xa8] sm:$0xff]
    %v189 = vld [vmem:[#allocation7 + $0xb0] sm:$0xff]
    %v190 = vld [vmem:[#allocation7 + $0xb8] sm:$0xff]
    %v191 = vld [vmem:[#allocation7 + $0xc0] sm:$0xff]
    %v192 = vld [vmem:[#allocation7 + $0xc8] sm:$0xff]
    %v193 = vld [vmem:[#allocation7 + $0xd0] sm:$0xff]
    %v194 = vld [vmem:[#allocation7 + $0xd8] sm:$0xff]
    %v195 = vld [vmem:[#allocation7 + $0xe0] sm:$0xff]
    %v196 = vld [vmem:[#allocation7 + $0xe8] sm:$0xff]
    %v197 = vld [vmem:[#allocation7 + $0xf0] sm:$0xff]
    %v198 = vld [vmem:[#allocation7 + $0xf8] sm:$0xff]
    %v199 = vld [vmem:[#allocation7 + $0x100] sm:$0xff]
    %v200 = vld [vmem:[#allocation7 + $0x108] sm:$0xff]
    %v201 = vld [vmem:[#allocation7 + $0x110] sm:$0xff]
    %v202 = vld [vmem:[#allocation7 + $0x118] sm:$0xff]
    %v203 = vld [vmem:[#allocation7 + $0x120] sm:$0xff]
    %v204 = vld [vmem:[#allocation7 + $0x128] sm:$0xff]
    %v205 = vld [vmem:[#allocation7 + $0x130] sm:$0xff]
    %v206 = vld [vmem:[#allocation7 + $0x138] sm:$0xff]
    %v207 = vld [vmem:[#allocation7 + $0x140] sm:$0xff]
    %v208 = vld [vmem:[#allocation7 + $0x148] sm:$0xff]
    %v209 = vld [vmem:[#allocation7 + $0x150] sm:$0xff]
    %v210 = vld [vmem:[#allocation7 + $0x158] sm:$0xff]
    %v211 = vld [vmem:[#allocation7 + $0x160] sm:$0xff]
    %v212 = vld [vmem:[#allocation7 + $0x168] sm:$0xff]
    %v213 = vld [vmem:[#allocation7 + $0x170] sm:$0xff]
    %v214 = vld [vmem:[#allocation7 + $0x178] sm:$0xff]
    %v215 = vld [vmem:[#allocation7 + $0x180] sm:$0xff]
    %v216 = vld [vmem:[#allocation7 + $0x188] sm:$0xff]
    %v217 = vld [vmem:[#allocation7 + $0x190] sm:$0xff]
    %v218 = vld [vmem:[#allocation7 + $0x198] sm:$0xff]
    %v219 = vld [vmem:[#allocation7 + $0x1a0] sm:$0xff]
    %v220 = vld [vmem:[#allocation7 + $0x1a8] sm:$0xff]
    %v221 = vld [vmem:[#allocation7 + $0x1b0] sm:$0xff]
    %v222 = vld [vmem:[#allocation7 + $0x1b8] sm:$0xff]
    %v223 = vld [vmem:[#allocation7 + $0x1c0] sm:$0xff]
    %v224 = vld [vmem:[#allocation7 + $0x1c8] sm:$0xff]
    %v225 = vld [vmem:[#allocation7 + $0x1d0] sm:$0xff]
    %v226 = vld [vmem:[#allocation7 + $0x1d8] sm:$0xff]
    %v227 = vld [vmem:[#allocation7 + $0x1e0] sm:$0xff]
    %v228 = vld [vmem:[#allocation7 + $0x1e8] sm:$0xff]
    %v229 = vld [vmem:[#allocation7 + $0x1f0] sm:$0xff]
    %v230 = vld [vmem:[#allocation7 + $0x1f8] sm:$0xff]
    %v231 = vld [vmem:[#allocation14] ss:$8 sm:$0xf]
    %v233 = vperm.slane %v231, 0
    %v234 = vperm.slane %v231, 1
    %v235 = vperm.slane %v231, 2
    %v236 = vperm.slane %v231, 3
    %v305 = vunpack.c.l.b16 %v167
    %v306 = vunpack.c.h.b16 %v167
    %v307 = vunpack.c.l.b16 %v168
    %v308 = vunpack.c.h.b16 %v168
    %v309 = vunpack.c.l.b16 %v169
    %v310 = vunpack.c.h.b16 %v169
    %v311 = vunpack.c.l.b16 %v170
    %v312 = vunpack.c.h.b16 %v170
    %v313 = vunpack.c.l.b16 %v171
    %v314 = vunpack.c.h.b16 %v171
    %v315 = vunpack.c.l.b16 %v172
    %v316 = vunpack.c.h.b16 %v172
    %v317 = vunpack.c.l.b16 %v173
    %v318 = vunpack.c.h.b16 %v173
    %v319 = vunpack.c.l.b16 %v174
    %v320 = vunpack.c.h.b16 %v174
    %v321 = vunpack.c.l.b16 %v175
    %v322 = vunpack.c.h.b16 %v175
    %v323 = vunpack.c.l.b16 %v176
    %v324 = vunpack.c.h.b16 %v176
    %v325 = vunpack.c.l.b16 %v177
    %v326 = vunpack.c.h.b16 %v177
    %v327 = vunpack.c.l.b16 %v178
    %v328 = vunpack.c.h.b16 %v178
    %v329 = vunpack.c.l.b16 %v179
    %v330 = vunpack.c.h.b16 %v179
    %v331 = vunpack.c.l.b16 %v180
    %v332 = vunpack.c.h.b16 %v180
    %v333 = vunpack.c.l.b16 %v181
    %v334 = vunpack.c.h.b16 %v181
    %v335 = vunpack.c.l.b16 %v182
    %v336 = vunpack.c.h.b16 %v182
    %v337 = vunpack.c.l.b16 %v183
    %v338 = vunpack.c.h.b16 %v183
    %v339 = vunpack.c.l.b16 %v184
    %v340 = vunpack.c.h.b16 %v184
    %v341 = vunpack.c.l.b16 %v185
    %v342 = vunpack.c.h.b16 %v185
    %v343 = vunpack.c.l.b16 %v186
    %v344 = vunpack.c.h.b16 %v186
    %v345 = vunpack.c.l.b16 %v187
    %v346 = vunpack.c.h.b16 %v187
    %v347 = vunpack.c.l.b16 %v188
    %v348 = vunpack.c.h.b16 %v188
    %v349 = vunpack.c.l.b16 %v189
    %v350 = vunpack.c.h.b16 %v189
    %v351 = vunpack.c.l.b16 %v190
    %v352 = vunpack.c.h.b16 %v190
    %v353 = vunpack.c.l.b16 %v191
    %v354 = vunpack.c.h.b16 %v191
    %v355 = vunpack.c.l.b16 %v192
    %v356 = vunpack.c.h.b16 %v192
    %v357 = vunpack.c.l.b16 %v193
    %v358 = vunpack.c.h.b16 %v193
    %v359 = vunpack.c.l.b16 %v194
    %v360 = vunpack.c.h.b16 %v194
    %v361 = vunpack.c.l.b16 %v195
    %v362 = vunpack.c.h.b16 %v195
    %v363 = vunpack.c.l.b16 %v196
    %v364 = vunpack.c.h.b16 %v196
    %v365 = vunpack.c.l.b16 %v197
    %v366 = vunpack.c.h.b16 %v197
    %v367 = vunpack.c.l.b16 %v198
    %v368 = vunpack.c.h.b16 %v198
    %v369 = vunpack.c.l.b16 %v199
    %v370 = vunpack.c.h.b16 %v199
    %v371 = vunpack.c.l.b16 %v200
    %v372 = vunpack.c.h.b16 %v200
    %v373 = vunpack.c.l.b16 %v201
    %v374 = vunpack.c.h.b16 %v201
    %v375 = vunpack.c.l.b16 %v202
    %v376 = vunpack.c.h.b16 %v202
    %v377 = vunpack.c.l.b16 %v203
    %v378 = vunpack.c.h.b16 %v203
    %v379 = vunpack.c.l.b16 %v204
    %v380 = vunpack.c.h.b16 %v204
    %v381 = vunpack.c.l.b16 %v205
    %v382 = vunpack.c.h.b16 %v205
    %v383 = vunpack.c.l.b16 %v206
    %v384 = vunpack.c.h.b16 %v206
    %v385 = vunpack.c.l.b16 %v207
    %v386 = vunpack.c.h.b16 %v207
    %v387 = vunpack.c.l.b16 %v208
    %v388 = vunpack.c.h.b16 %v208
    %v389 = vunpack.c.l.b16 %v209
    %v390 = vunpack.c.h.b16 %v209
    %v391 = vunpack.c.l.b16 %v210
    %v392 = vunpack.c.h.b16 %v210
    %v393 = vunpack.c.l.b16 %v211
    %v394 = vunpack.c.h.b16 %v211
    %v395 = vunpack.c.l.b16 %v212
    %v396 = vunpack.c.h.b16 %v212
    %v397 = vunpack.c.l.b16 %v213
    %v398 = vunpack.c.h.b16 %v213
    %v399 = vunpack.c.l.b16 %v214
    %v400 = vunpack.c.h.b16 %v214
    %v401 = vunpack.c.l.b16 %v215
    %v402 = vunpack.c.h.b16 %v215
    %v403 = vunpack.c.l.b16 %v216
    %v404 = vunpack.c.h.b16 %v216
    %v405 = vunpack.c.l.b16 %v217
    %v406 = vunpack.c.h.b16 %v217
    %v407 = vunpack.c.l.b16 %v218
    %v408 = vunpack.c.h.b16 %v218
    %v409 = vunpack.c.l.b16 %v219
    %v410 = vunpack.c.h.b16 %v219
    %v411 = vunpack.c.l.b16 %v220
    %v412 = vunpack.c.h.b16 %v220
    %v413 = vunpack.c.l.b16 %v221
    %v414 = vunpack.c.h.b16 %v221
    %v415 = vunpack.c.l.b16 %v222
    %v416 = vunpack.c.h.b16 %v222
    %v417 = vunpack.c.l.b16 %v223
    %v418 = vunpack.c.h.b16 %v223
    %v419 = vunpack.c.l.b16 %v224
    %v420 = vunpack.c.h.b16 %v224
    %v421 = vunpack.c.l.b16 %v225
    %v422 = vunpack.c.h.b16 %v225
    %v423 = vunpack.c.l.b16 %v226
    %v424 = vunpack.c.h.b16 %v226
    %v425 = vunpack.c.l.b16 %v227
    %v426 = vunpack.c.h.b16 %v227
    %v427 = vunpack.c.l.b16 %v228
    %v428 = vunpack.c.h.b16 %v228
    %v429 = vunpack.c.l.b16 %v229
    %v430 = vunpack.c.h.b16 %v229
    %v431 = vunpack.c.l.b16 %v230
    %v432 = vunpack.c.h.b16 %v230
    %v433 = vpack.c.b16 %v309, %v305
    %v434 = vpack.c.b16 %v310, %v306
    %v435 = vpack.c.b16 %v311, %v307
    %v436 = vpack.c.b16 %v312, %v308
    %v437 = vpack.c.b16 %v317, %v313
    %v438 = vpack.c.b16 %v318, %v314
    %v439 = vpack.c.b16 %v319, %v315
    %v440 = vpack.c.b16 %v320, %v316
    %v441 = vpack.c.b16 %v325, %v321
    %v442 = vpack.c.b16 %v326, %v322
    %v443 = vpack.c.b16 %v327, %v323
    %v444 = vpack.c.b16 %v328, %v324
    %v445 = vpack.c.b16 %v333, %v329
    %v446 = vpack.c.b16 %v334, %v330
    %v447 = vpack.c.b16 %v335, %v331
    %v448 = vpack.c.b16 %v336, %v332
    %v449 = vpack.c.b16 %v341, %v337
    %v450 = vpack.c.b16 %v342, %v338
    %v451 = vpack.c.b16 %v343, %v339
    %v452 = vpack.c.b16 %v344, %v340
    %v453 = vpack.c.b16 %v349, %v345
    %v454 = vpack.c.b16 %v350, %v346
    %v455 = vpack.c.b16 %v351, %v347
    %v456 = vpack.c.b16 %v352, %v348
    %v457 = vpack.c.b16 %v357, %v353
    %v458 = vpack.c.b16 %v358, %v354
    %v459 = vpack.c.b16 %v359, %v355
    %v460 = vpack.c.b16 %v360, %v356
    %v461 = vpack.c.b16 %v365, %v361
    %v462 = vpack.c.b16 %v366, %v362
    %v463 = vpack.c.b16 %v367, %v363
    %v464 = vpack.c.b16 %v368, %v364
    %v465 = vpack.c.b16 %v373, %v369
    %v466 = vpack.c.b16 %v374, %v370
    %v467 = vpack.c.b16 %v375, %v371
    %v468 = vpack.c.b16 %v376, %v372
    %v469 = vpack.c.b16 %v381, %v377
    %v470 = vpack.c.b16 %v382, %v378
    %v471 = vpack.c.b16 %v383, %v379
    %v472 = vpack.c.b16 %v384, %v380
    %v473 = vpack.c.b16 %v389, %v385
    %v474 = vpack.c.b16 %v390, %v386
    %v475 = vpack.c.b16 %v391, %v387
    %v476 = vpack.c.b16 %v392, %v388
    %v477 = vpack.c.b16 %v397, %v393
    %v478 = vpack.c.b16 %v398, %v394
    %v479 = vpack.c.b16 %v399, %v395
    %v480 = vpack.c.b16 %v400, %v396
    %v481 = vpack.c.b16 %v405, %v401
    %v482 = vpack.c.b16 %v406, %v402
    %v483 = vpack.c.b16 %v407, %v403
    %v484 = vpack.c.b16 %v408, %v404
    %v485 = vpack.c.b16 %v413, %v409
    %v486 = vpack.c.b16 %v414, %v410
    %v487 = vpack.c.b16 %v415, %v411
    %v488 = vpack.c.b16 %v416, %v412
    %v489 = vpack.c.b16 %v421, %v417
    %v490 = vpack.c.b16 %v422, %v418
    %v491 = vpack.c.b16 %v423, %v419
    %v492 = vpack.c.b16 %v424, %v420
    %v493 = vpack.c.b16 %v429, %v425
    %v494 = vpack.c.b16 %v430, %v426
    %v495 = vpack.c.b16 %v431, %v427
    %v496 = vpack.c.b16 %v432, %v428
    %561 = vmatpush.bf16.msra.mxu0 %v461
    %562 = vmatpush.bf16.msra.mxu0 %v457
    %563 = vmatpush.bf16.msra.mxu0 %v453
    %564 = vmatpush.bf16.msra.mxu0 %v449
    %565 = vmatpush.bf16.msra.mxu0 %v445
    %566 = vmatpush.bf16.msra.mxu0 %v441
    %567 = vmatpush.bf16.msra.mxu0 %v437
    %568 = vmatpush.bf16.msra.mxu0 %v433
    %569 = vmatmul.bf16.gmra.mxu0 %v159
    %v570 = vpop.f32.mrf.mxu0
    %v571 = vadd.f32 %v233, %v570
    %v572 = vpop.f32.mrf.mxu0
    %v573 = vadd.f32 %v233, %v572
    %574 = vdwg.mxu0
    %575 = vmatpush.bf16.msra.mxu0 %v493
    %576 = vmatpush.bf16.msra.mxu0 %v489
    %577 = vmatpush.bf16.msra.mxu0 %v485
    %578 = vmatpush.bf16.msra.mxu0 %v481
    %579 = vmatpush.bf16.msra.mxu0 %v477
    %580 = vmatpush.bf16.msra.mxu0 %v473
    %581 = vmatpush.bf16.msra.mxu0 %v469
    %582 = vmatpush.bf16.msra.mxu0 %v465
    %583 = vmatmul.bf16.gmra.mxu0 %v160
    %v584 = vpop.f32.mrf.mxu0
    %v585 = vadd.f32 %v571, %v584
    %v586 = vpop.f32.mrf.mxu0
    %v587 = vadd.f32 %v573, %v586
    %588 = vdwg.mxu0
    %589 = vmatpush.bf16.msra.mxu0 %v462
    %590 = vmatpush.bf16.msra.mxu0 %v458
    %591 = vmatpush.bf16.msra.mxu0 %v454
    %592 = vmatpush.bf16.msra.mxu0 %v450
    %593 = vmatpush.bf16.msra.mxu0 %v446
    %594 = vmatpush.bf16.msra.mxu0 %v442
    %595 = vmatpush.bf16.msra.mxu0 %v438
    %596 = vmatpush.bf16.msra.mxu0 %v434
    %597 = vmatmul.bf16.gmra.mxu0 %v159
    %v598 = vpop.f32.mrf.mxu0
    %v599 = vadd.f32 %v234, %v598
    %v600 = vpop.f32.mrf.mxu0
    %v601 = vadd.f32 %v234, %v600
    %602 = vdwg.mxu0
    %603 = vmatpush.bf16.msra.mxu0 %v494
    %604 = vmatpush.bf16.msra.mxu0 %v490
    %605 = vmatpush.bf16.msra.mxu0 %v486
    %606 = vmatpush.bf16.msra.mxu0 %v482
    %607 = vmatpush.bf16.msra.mxu0 %v478
    %608 = vmatpush.bf16.msra.mxu0 %v474
    %609 = vmatpush.bf16.msra.mxu0 %v470
    %610 = vmatpush.bf16.msra.mxu0 %v466
    %611 = vmatmul.bf16.gmra.mxu0 %v160
    %v612 = vpop.f32.mrf.mxu0
    %v613 = vadd.f32 %v599, %v612
    %v614 = vpop.f32.mrf.mxu0
    %v615 = vadd.f32 %v601, %v614
    %616 = vdwg.mxu0
    %617 = vmatpush.bf16.msra.mxu0 %v463
    %618 = vmatpush.bf16.msra.mxu0 %v459
    %619 = vmatpush.bf16.msra.mxu0 %v455
    %620 = vmatpush.bf16.msra.mxu0 %v451
    %621 = vmatpush.bf16.msra.mxu0 %v447
    %622 = vmatpush.bf16.msra.mxu0 %v443
    %623 = vmatpush.bf16.msra.mxu0 %v439
    %624 = vmatpush.bf16.msra.mxu0 %v435
    %625 = vmatmul.bf16.gmra.mxu0 %v159
    %v626 = vpop.f32.mrf.mxu0
    %v627 = vadd.f32 %v235, %v626
    %v628 = vpop.f32.mrf.mxu0
    %v629 = vadd.f32 %v235, %v628
    %630 = vdwg.mxu0
    %631 = vmatpush.bf16.msra.mxu0 %v495
    %632 = vmatpush.bf16.msra.mxu0 %v491
    %633 = vmatpush.bf16.msra.mxu0 %v487
    %634 = vmatpush.bf16.msra.mxu0 %v483
    %635 = vmatpush.bf16.msra.mxu0 %v479
    %636 = vmatpush.bf16.msra.mxu0 %v475
    %637 = vmatpush.bf16.msra.mxu0 %v471
    %638 = vmatpush.bf16.msra.mxu0 %v467
    %639 = vmatmul.bf16.gmra.mxu0 %v160
    %v640 = vpop.f32.mrf.mxu0
    %v641 = vadd.f32 %v627, %v640
    %v642 = vpop.f32.mrf.mxu0
    %v643 = vadd.f32 %v629, %v642
    %644 = vdwg.mxu0
    %645 = vmatpush.bf16.msra.mxu0 %v464
    %646 = vmatpush.bf16.msra.mxu0 %v460
    %647 = vmatpush.bf16.msra.mxu0 %v456
    %648 = vmatpush.bf16.msra.mxu0 %v452
    %649 = vmatpush.bf16.msra.mxu0 %v448
    %650 = vmatpush.bf16.msra.mxu0 %v444
    %651 = vmatpush.bf16.msra.mxu0 %v440
    %652 = vmatpush.bf16.msra.mxu0 %v436
    %653 = vmatmul.bf16.gmra.mxu0 %v159
    %v654 = vpop.f32.mrf.mxu0
    %v655 = vadd.f32 %v236, %v654
    %v656 = vpop.f32.mrf.mxu0
    %v657 = vadd.f32 %v236, %v656
    %658 = vdwg.mxu0
    %659 = vmatpush.bf16.msra.mxu0 %v496
    %660 = vmatpush.bf16.msra.mxu0 %v492
    %661 = vmatpush.bf16.msra.mxu0 %v488
    %662 = vmatpush.bf16.msra.mxu0 %v484
    %663 = vmatpush.bf16.msra.mxu0 %v480
    %664 = vmatpush.bf16.msra.mxu0 %v476
    %665 = vmatpush.bf16.msra.mxu0 %v472
    %666 = vmatpush.bf16.msra.mxu0 %v468
    %667 = vmatmul.bf16.gmra.mxu0 %v160
    %v668 = vpop.f32.mrf.mxu0
    %v669 = vadd.f32 %v655, %v668
    %v670 = vpop.f32.mrf.mxu0
    %v671 = vadd.f32 %v657, %v670
    %672 = vdwg.mxu0
    %v673 = vmax.f32 %v585, 0.0
    %v674 = vmax.f32 %v613, 0.0
    %v675 = vmax.f32 %v641, 0.0
    %v676 = vmax.f32 %v669, 0.0
    %v677 = vmax.f32 %v587, 0.0
    %v678 = vmax.f32 %v615, 0.0
    %v679 = vmax.f32 %v643, 0.0
    %v680 = vmax.f32 %v671, 0.0
    %v681 = vpack.c.bf16 %v677, %v673
    %v682 = vpack.c.bf16 %v678, %v674
    %v683 = vpack.c.bf16 %v679, %v675
    %v684 = vpack.c.bf16 %v680, %v676
    %v685 = vld [vmem:[#allocation10] sm:$0xff]
    %v686 = vld [vmem:[#allocation10 + $0x8] sm:$0xff]
    %v687 = vld [vmem:[#allocation10 + $0x10] sm:$0xff]
    %v688 = vld [vmem:[#allocation10 + $0x18] sm:$0xff]
    %v689 = vld [vmem:[#allocation10 + $0x20] sm:$0xff]
    %v690 = vld [vmem:[#allocation10 + $0x28] sm:$0xff]
    %v691 = vld [vmem:[#allocation10 + $0x30] sm:$0xff]
    %v692 = vld [vmem:[#allocation10 + $0x38] sm:$0xff]
    %v693 = vld [vmem:[#allocation10 + $0x40] sm:$0xff]
    %v694 = vld [vmem:[#allocation10 + $0x48] sm:$0xff]
    %v695 = vld [vmem:[#allocation10 + $0x50] sm:$0xff]
    %v696 = vld [vmem:[#allocation10 + $0x58] sm:$0xff]
    %v697 = vld [vmem:[#allocation10 + $0x60] sm:$0xff]
    %v698 = vld [vmem:[#allocation10 + $0x68] sm:$0xff]
    %v699 = vld [vmem:[#allocation10 + $0x70] sm:$0xff]
    %v700 = vld [vmem:[#allocation10 + $0x78] sm:$0xff]
    %v701 = vld [vmem:[#allocation10 + $0x80] sm:$0xff]
    %v702 = vld [vmem:[#allocation10 + $0x88] sm:$0xff]
    %v703 = vld [vmem:[#allocation10 + $0x90] sm:$0xff]
    %v704 = vld [vmem:[#allocation10 + $0x98] sm:$0xff]
    %v705 = vld [vmem:[#allocation10 + $0xa0] sm:$0xff]
    %v706 = vld [vmem:[#allocation10 + $0xa8] sm:$0xff]
    %v707 = vld [vmem:[#allocation10 + $0xb0] sm:$0xff]
    %v708 = vld [vmem:[#allocation10 + $0xb8] sm:$0xff]
    %v709 = vld [vmem:[#allocation10 + $0xc0] sm:$0xff]
    %v710 = vld [vmem:[#allocation10 + $0xc8] sm:$0xff]
    %v711 = vld [vmem:[#allocation10 + $0xd0] sm:$0xff]
    %v712 = vld [vmem:[#allocation10 + $0xd8] sm:$0xff]
    %v713 = vld [vmem:[#allocation10 + $0xe0] sm:$0xff]
    %v714 = vld [vmem:[#allocation10 + $0xe8] sm:$0xff]
    %v715 = vld [vmem:[#allocation10 + $0xf0] sm:$0xff]
    %v716 = vld [vmem:[#allocation10 + $0xf8] sm:$0xff]
    %v717 = vld [vmem:[#allocation10 + $0x100] sm:$0xff]
    %v718 = vld [vmem:[#allocation10 + $0x108] sm:$0xff]
    %v719 = vld [vmem:[#allocation10 + $0x110] sm:$0xff]
    %v720 = vld [vmem:[#allocation10 + $0x118] sm:$0xff]
    %v721 = vld [vmem:[#allocation10 + $0x120] sm:$0xff]
    %v722 = vld [vmem:[#allocation10 + $0x128] sm:$0xff]
    %v723 = vld [vmem:[#allocation10 + $0x130] sm:$0xff]
    %v724 = vld [vmem:[#allocation10 + $0x138] sm:$0xff]
    %v725 = vld [vmem:[#allocation10 + $0x140] sm:$0xff]
    %v726 = vld [vmem:[#allocation10 + $0x148] sm:$0xff]
    %v727 = vld [vmem:[#allocation10 + $0x150] sm:$0xff]
    %v728 = vld [vmem:[#allocation10 + $0x158] sm:$0xff]
    %v729 = vld [vmem:[#allocation10 + $0x160] sm:$0xff]
    %v730 = vld [vmem:[#allocation10 + $0x168] sm:$0xff]
    %v731 = vld [vmem:[#allocation10 + $0x170] sm:$0xff]
    %v732 = vld [vmem:[#allocation10 + $0x178] sm:$0xff]
    %v733 = vld [vmem:[#allocation10 + $0x180] sm:$0xff]
    %v734 = vld [vmem:[#allocation10 + $0x188] sm:$0xff]
    %v735 = vld [vmem:[#allocation10 + $0x190] sm:$0xff]
    %v736 = vld [vmem:[#allocation10 + $0x198] sm:$0xff]
    %v737 = vld [vmem:[#allocation10 + $0x1a0] sm:$0xff]
    %v738 = vld [vmem:[#allocation10 + $0x1a8] sm:$0xff]
    %v739 = vld [vmem:[#allocation10 + $0x1b0] sm:$0xff]
    %v740 = vld [vmem:[#allocation10 + $0x1b8] sm:$0xff]
    %v741 = vld [vmem:[#allocation10 + $0x1c0] sm:$0xff]
    %v742 = vld [vmem:[#allocation10 + $0x1c8] sm:$0xff]
    %v743 = vld [vmem:[#allocation10 + $0x1d0] sm:$0xff]
    %v744 = vld [vmem:[#allocation10 + $0x1d8] sm:$0xff]
    %v745 = vld [vmem:[#allocation10 + $0x1e0] sm:$0xff]
    %v746 = vld [vmem:[#allocation10 + $0x1e8] sm:$0xff]
    %v747 = vld [vmem:[#allocation10 + $0x1f0] sm:$0xff]
    %v748 = vld [vmem:[#allocation10 + $0x1f8] sm:$0xff]
    %s749 = scalar_lea.vmem [#allocation14], 1
    %v750 = vld [vmem:[%s749] ss:$8 sm:$0x3]
    %v752 = vperm.slane %v750, 0
    %v753 = vperm.slane %v750, 1
    %v820 = vunpack.c.l.b16 %v685
    %v821 = vunpack.c.h.b16 %v685
    %v822 = vunpack.c.l.b16 %v686
    %v823 = vunpack.c.h.b16 %v686
    %v824 = vunpack.c.l.b16 %v687
    %v825 = vunpack.c.h.b16 %v687
    %v826 = vunpack.c.l.b16 %v688
    %v827 = vunpack.c.h.b16 %v688
    %v828 = vunpack.c.l.b16 %v689
    %v829 = vunpack.c.h.b16 %v689
    %v830 = vunpack.c.l.b16 %v690
    %v831 = vunpack.c.h.b16 %v690
    %v832 = vunpack.c.l.b16 %v691
    %v833 = vunpack.c.h.b16 %v691
    %v834 = vunpack.c.l.b16 %v692
    %v835 = vunpack.c.h.b16 %v692
    %v836 = vunpack.c.l.b16 %v693
    %v837 = vunpack.c.h.b16 %v693
    %v838 = vunpack.c.l.b16 %v694
    %v839 = vunpack.c.h.b16 %v694
    %v840 = vunpack.c.l.b16 %v695
    %v841 = vunpack.c.h.b16 %v695
    %v842 = vunpack.c.l.b16 %v696
    %v843 = vunpack.c.h.b16 %v696
    %v844 = vunpack.c.l.b16 %v697
    %v845 = vunpack.c.h.b16 %v697
    %v846 = vunpack.c.l.b16 %v698
    %v847 = vunpack.c.h.b16 %v698
    %v848 = vunpack.c.l.b16 %v699
    %v849 = vunpack.c.h.b16 %v699
    %v850 = vunpack.c.l.b16 %v700
    %v851 = vunpack.c.h.b16 %v700
    %v852 = vunpack.c.l.b16 %v701
    %v853 = vunpack.c.h.b16 %v701
    %v854 = vunpack.c.l.b16 %v702
    %v855 = vunpack.c.h.b16 %v702
    %v856 = vunpack.c.l.b16 %v703
    %v857 = vunpack.c.h.b16 %v703
    %v858 = vunpack.c.l.b16 %v704
    %v859 = vunpack.c.h.b16 %v704
    %v860 = vunpack.c.l.b16 %v705
    %v861 = vunpack.c.h.b16 %v705
    %v862 = vunpack.c.l.b16 %v706
    %v863 = vunpack.c.h.b16 %v706
    %v864 = vunpack.c.l.b16 %v707
    %v865 = vunpack.c.h.b16 %v707
    %v866 = vunpack.c.l.b16 %v708
    %v867 = vunpack.c.h.b16 %v708
    %v868 = vunpack.c.l.b16 %v709
    %v869 = vunpack.c.h.b16 %v709
    %v870 = vunpack.c.l.b16 %v710
    %v871 = vunpack.c.h.b16 %v710
    %v872 = vunpack.c.l.b16 %v711
    %v873 = vunpack.c.h.b16 %v711
    %v874 = vunpack.c.l.b16 %v712
    %v875 = vunpack.c.h.b16 %v712
    %v876 = vunpack.c.l.b16 %v713
    %v877 = vunpack.c.h.b16 %v713
    %v878 = vunpack.c.l.b16 %v714
    %v879 = vunpack.c.h.b16 %v714
    %v880 = vunpack.c.l.b16 %v715
    %v881 = vunpack.c.h.b16 %v715
    %v882 = vunpack.c.l.b16 %v716
    %v883 = vunpack.c.h.b16 %v716
    %v884 = vunpack.c.l.b16 %v717
    %v885 = vunpack.c.h.b16 %v717
    %v886 = vunpack.c.l.b16 %v718
    %v887 = vunpack.c.h.b16 %v718
    %v888 = vunpack.c.l.b16 %v719
    %v889 = vunpack.c.h.b16 %v719
    %v890 = vunpack.c.l.b16 %v720
    %v891 = vunpack.c.h.b16 %v720
    %v892 = vunpack.c.l.b16 %v721
    %v893 = vunpack.c.h.b16 %v721
    %v894 = vunpack.c.l.b16 %v722
    %v895 = vunpack.c.h.b16 %v722
    %v896 = vunpack.c.l.b16 %v723
    %v897 = vunpack.c.h.b16 %v723
    %v898 = vunpack.c.l.b16 %v724
    %v899 = vunpack.c.h.b16 %v724
    %v900 = vunpack.c.l.b16 %v725
    %v901 = vunpack.c.h.b16 %v725
    %v902 = vunpack.c.l.b16 %v726
    %v903 = vunpack.c.h.b16 %v726
    %v904 = vunpack.c.l.b16 %v727
    %v905 = vunpack.c.h.b16 %v727
    %v906 = vunpack.c.l.b16 %v728
    %v907 = vunpack.c.h.b16 %v728
    %v908 = vunpack.c.l.b16 %v729
    %v909 = vunpack.c.h.b16 %v729
    %v910 = vunpack.c.l.b16 %v730
    %v911 = vunpack.c.h.b16 %v730
    %v912 = vunpack.c.l.b16 %v731
    %v913 = vunpack.c.h.b16 %v731
    %v914 = vunpack.c.l.b16 %v732
    %v915 = vunpack.c.h.b16 %v732
    %v916 = vunpack.c.l.b16 %v733
    %v917 = vunpack.c.h.b16 %v733
    %v918 = vunpack.c.l.b16 %v734
    %v919 = vunpack.c.h.b16 %v734
    %v920 = vunpack.c.l.b16 %v735
    %v921 = vunpack.c.h.b16 %v735
    %v922 = vunpack.c.l.b16 %v736
    %v923 = vunpack.c.h.b16 %v736
    %v924 = vunpack.c.l.b16 %v737
    %v925 = vunpack.c.h.b16 %v737
    %v926 = vunpack.c.l.b16 %v738
    %v927 = vunpack.c.h.b16 %v738
    %v928 = vunpack.c.l.b16 %v739
    %v929 = vunpack.c.h.b16 %v739
    %v930 = vunpack.c.l.b16 %v740
    %v931 = vunpack.c.h.b16 %v740
    %v932 = vunpack.c.l.b16 %v741
    %v933 = vunpack.c.h.b16 %v741
    %v934 = vunpack.c.l.b16 %v742
    %v935 = vunpack.c.h.b16 %v742
    %v936 = vunpack.c.l.b16 %v743
    %v937 = vunpack.c.h.b16 %v743
    %v938 = vunpack.c.l.b16 %v744
    %v939 = vunpack.c.h.b16 %v744
    %v940 = vunpack.c.l.b16 %v745
    %v941 = vunpack.c.h.b16 %v745
    %v942 = vunpack.c.l.b16 %v746
    %v943 = vunpack.c.h.b16 %v746
    %v944 = vunpack.c.l.b16 %v747
    %v945 = vunpack.c.h.b16 %v747
    %v946 = vunpack.c.l.b16 %v748
    %v947 = vunpack.c.h.b16 %v748
    %v948 = vpack.c.b16 %v822, %v820
    %v949 = vpack.c.b16 %v823, %v821
    %v950 = vpack.c.b16 %v826, %v824
    %v951 = vpack.c.b16 %v827, %v825
    %v952 = vpack.c.b16 %v830, %v828
    %v953 = vpack.c.b16 %v831, %v829
    %v954 = vpack.c.b16 %v834, %v832
    %v955 = vpack.c.b16 %v835, %v833
    %v956 = vpack.c.b16 %v838, %v836
    %v957 = vpack.c.b16 %v839, %v837
    %v958 = vpack.c.b16 %v842, %v840
    %v959 = vpack.c.b16 %v843, %v841
    %v960 = vpack.c.b16 %v846, %v844
    %v961 = vpack.c.b16 %v847, %v845
    %v962 = vpack.c.b16 %v850, %v848
    %v963 = vpack.c.b16 %v851, %v849
    %v964 = vpack.c.b16 %v854, %v852
    %v965 = vpack.c.b16 %v855, %v853
    %v966 = vpack.c.b16 %v858, %v856
    %v967 = vpack.c.b16 %v859, %v857
    %v968 = vpack.c.b16 %v862, %v860
    %v969 = vpack.c.b16 %v863, %v861
    %v970 = vpack.c.b16 %v866, %v864
    %v971 = vpack.c.b16 %v867, %v865
    %v972 = vpack.c.b16 %v870, %v868
    %v973 = vpack.c.b16 %v871, %v869
    %v974 = vpack.c.b16 %v874, %v872
    %v975 = vpack.c.b16 %v875, %v873
    %v976 = vpack.c.b16 %v878, %v876
    %v977 = vpack.c.b16 %v879, %v877
    %v978 = vpack.c.b16 %v882, %v880
    %v979 = vpack.c.b16 %v883, %v881
    %v980 = vpack.c.b16 %v886, %v884
    %v981 = vpack.c.b16 %v887, %v885
    %v982 = vpack.c.b16 %v890, %v888
    %v983 = vpack.c.b16 %v891, %v889
    %v984 = vpack.c.b16 %v894, %v892
    %v985 = vpack.c.b16 %v895, %v893
    %v986 = vpack.c.b16 %v898, %v896
    %v987 = vpack.c.b16 %v899, %v897
    %v988 = vpack.c.b16 %v902, %v900
    %v989 = vpack.c.b16 %v903, %v901
    %v990 = vpack.c.b16 %v906, %v904
    %v991 = vpack.c.b16 %v907, %v905
    %v992 = vpack.c.b16 %v910, %v908
    %v993 = vpack.c.b16 %v911, %v909
    %v994 = vpack.c.b16 %v914, %v912
    %v995 = vpack.c.b16 %v915, %v913
    %v996 = vpack.c.b16 %v918, %v916
    %v997 = vpack.c.b16 %v919, %v917
    %v998 = vpack.c.b16 %v922, %v920
    %v999 = vpack.c.b16 %v923, %v921
    %v1000 = vpack.c.b16 %v926, %v924
    %v1001 = vpack.c.b16 %v927, %v925
    %v1002 = vpack.c.b16 %v930, %v928
    %v1003 = vpack.c.b16 %v931, %v929
    %v1004 = vpack.c.b16 %v934, %v932
    %v1005 = vpack.c.b16 %v935, %v933
    %v1006 = vpack.c.b16 %v938, %v936
    %v1007 = vpack.c.b16 %v939, %v937
    %v1008 = vpack.c.b16 %v942, %v940
    %v1009 = vpack.c.b16 %v943, %v941
    %v1010 = vpack.c.b16 %v946, %v944
    %v1011 = vpack.c.b16 %v947, %v945
    %1076 = vmatpush.bf16.msra.mxu0 %v962
    %1077 = vmatpush.bf16.msra.mxu0 %v960
    %1078 = vmatpush.bf16.msra.mxu0 %v958
    %1079 = vmatpush.bf16.msra.mxu0 %v956
    %1080 = vmatpush.bf16.msra.mxu0 %v954
    %1081 = vmatpush.bf16.msra.mxu0 %v952
    %1082 = vmatpush.bf16.msra.mxu0 %v950
    %1083 = vmatpush.bf16.msra.mxu0 %v948
    %1084 = vmatmul.bf16.gmra.mxu0 %v681
    %v1085 = vpop.f32.mrf.mxu0
    %v1086 = vadd.f32 %v752, %v1085
    %v1087 = vpop.f32.mrf.mxu0
    %v1088 = vadd.f32 %v752, %v1087
    %1089 = vdwg.mxu0
    %1090 = vmatpush.bf16.msra.mxu0 %v978
    %1091 = vmatpush.bf16.msra.mxu0 %v976
    %1092 = vmatpush.bf16.msra.mxu0 %v974
    %1093 = vmatpush.bf16.msra.mxu0 %v972
    %1094 = vmatpush.bf16.msra.mxu0 %v970
    %1095 = vmatpush.bf16.msra.mxu0 %v968
    %1096 = vmatpush.bf16.msra.mxu0 %v966
    %1097 = vmatpush.bf16.msra.mxu0 %v964
    %1098 = vmatmul.bf16.gmra.mxu0 %v682
    %v1099 = vpop.f32.mrf.mxu0
    %v1100 = vadd.f32 %v1086, %v1099
    %v1101 = vpop.f32.mrf.mxu0
    %v1102 = vadd.f32 %v1088, %v1101
    %1103 = vdwg.mxu0
    %1104 = vmatpush.bf16.msra.mxu0 %v994
    %1105 = vmatpush.bf16.msra.mxu0 %v992
    %1106 = vmatpush.bf16.msra.mxu0 %v990
    %1107 = vmatpush.bf16.msra.mxu0 %v988
    %1108 = vmatpush.bf16.msra.mxu0 %v986
    %1109 = vmatpush.bf16.msra.mxu0 %v984
    %1110 = vmatpush.bf16.msra.mxu0 %v982
    %1111 = vmatpush.bf16.msra.mxu0 %v980
    %1112 = vmatmul.bf16.gmra.mxu0 %v683
    %v1113 = vpop.f32.mrf.mxu0
    %v1114 = vadd.f32 %v1100, %v1113
    %v1115 = vpop.f32.mrf.mxu0
    %v1116 = vadd.f32 %v1102, %v1115
    %1117 = vdwg.mxu0
    %1118 = vmatpush.bf16.msra.mxu0 %v1010
    %1119 = vmatpush.bf16.msra.mxu0 %v1008
    %1120 = vmatpush.bf16.msra.mxu0 %v1006
    %1121 = vmatpush.bf16.msra.mxu0 %v1004
    %1122 = vmatpush.bf16.msra.mxu0 %v1002
    %1123 = vmatpush.bf16.msra.mxu0 %v1000
    %1124 = vmatpush.bf16.msra.mxu0 %v998
    %1125 = vmatpush.bf16.msra.mxu0 %v996
    %1126 = vmatmul.bf16.gmra.mxu0 %v684
    %v1127 = vpop.f32.mrf.mxu0
    %v1128 = vadd.f32 %v1114, %v1127
    %v1129 = vpop.f32.mrf.mxu0
    %v1130 = vadd.f32 %v1116, %v1129
    %1131 = vdwg.mxu0
    %1132 = vmatpush.bf16.msra.mxu0 %v963
    %1133 = vmatpush.bf16.msra.mxu0 %v961
    %1134 = vmatpush.bf16.msra.mxu0 %v959
    %1135 = vmatpush.bf16.msra.mxu0 %v957
    %1136 = vmatpush.bf16.msra.mxu0 %v955
    %1137 = vmatpush.bf16.msra.mxu0 %v953
    %1138 = vmatpush.bf16.msra.mxu0 %v951
    %1139 = vmatpush.bf16.msra.mxu0 %v949
    %1140 = vmatmul.bf16.gmra.mxu0 %v681
    %v1141 = vpop.f32.mrf.mxu0
    %v1142 = vadd.f32 %v753, %v1141
    %v1143 = vpop.f32.mrf.mxu0
    %v1144 = vadd.f32 %v753, %v1143
    %1145 = vdwg.mxu0
    %1146 = vmatpush.bf16.msra.mxu0 %v979
    %1147 = vmatpush.bf16.msra.mxu0 %v977
    %1148 = vmatpush.bf16.msra.mxu0 %v975
    %1149 = vmatpush.bf16.msra.mxu0 %v973
    %1150 = vmatpush.bf16.msra.mxu0 %v971
    %1151 = vmatpush.bf16.msra.mxu0 %v969
    %1152 = vmatpush.bf16.msra.mxu0 %v967
    %1153 = vmatpush.bf16.msra.mxu0 %v965
    %1154 = vmatmul.bf16.gmra.mxu0 %v682
    %v1155 = vpop.f32.mrf.mxu0
    %v1156 = vadd.f32 %v1142, %v1155
    %v1157 = vpop.f32.mrf.mxu0
    %v1158 = vadd.f32 %v1144, %v1157
    %1159 = vdwg.mxu0
    %1160 = vmatpush.bf16.msra.mxu0 %v995
    %1161 = vmatpush.bf16.msra.mxu0 %v993
    %1162 = vmatpush.bf16.msra.mxu0 %v991
    %1163 = vmatpush.bf16.msra.mxu0 %v989
    %1164 = vmatpush.bf16.msra.mxu0 %v987
    %1165 = vmatpush.bf16.msra.mxu0 %v985
    %1166 = vmatpush.bf16.msra.mxu0 %v983
    %1167 = vmatpush.bf16.msra.mxu0 %v981
    %1168 = vmatmul.bf16.gmra.mxu0 %v683
    %v1169 = vpop.f32.mrf.mxu0
    %v1170 = vadd.f32 %v1156, %v1169
    %v1171 = vpop.f32.mrf.mxu0
    %v1172 = vadd.f32 %v1158, %v1171
    %1173 = vdwg.mxu0
    %1174 = vmatpush.bf16.msra.mxu0 %v1011
    %1175 = vmatpush.bf16.msra.mxu0 %v1009
    %1176 = vmatpush.bf16.msra.mxu0 %v1007
    %1177 = vmatpush.bf16.msra.mxu0 %v1005
    %1178 = vmatpush.bf16.msra.mxu0 %v1003
    %1179 = vmatpush.bf16.msra.mxu0 %v1001
    %1180 = vmatpush.bf16.msra.mxu0 %v999
    %1181 = vmatpush.bf16.msra.mxu0 %v997
    %1182 = vmatmul.bf16.gmra.mxu0 %v684
    %v1183 = vpop.f32.mrf.mxu0
    %v1184 = vadd.f32 %v1170, %v1183
    %v1185 = vpop.f32.mrf.mxu0
    %v1186 = vadd.f32 %v1172, %v1185
    %1187 = vdwg.mxu0
    %v1188 = vmax.f32 %v1128, 0.0
    %v1189 = vmax.f32 %v1184, 0.0
    %v1190 = vmax.f32 %v1130, 0.0
    %v1191 = vmax.f32 %v1186, 0.0
    %v1192 = vpack.c.bf16 %v1190, %v1188
    %v1193 = vpack.c.bf16 %v1191, %v1189
    %v1194 = vld [vmem:[#allocation11] sm:$0xf]
    %v1195 = vld [vmem:[#allocation11 + $0x14] sm:$0xf]
    %v1196 = vld [vmem:[#allocation11 + $0x28] sm:$0xf]
    %v1197 = vld [vmem:[#allocation11 + $0x3c] sm:$0xf]
    %v1198 = vld [vmem:[#allocation11 + $0x50] sm:$0xf]
    %v1199 = vld [vmem:[#allocation11 + $0x64] sm:$0xf]
    %v1200 = vld [vmem:[#allocation11 + $0x78] sm:$0xf]
    %v1201 = vld [vmem:[#allocation11 + $0x8c] sm:$0xf]
    %v1202 = vld [vmem:[#allocation11 + $0xa0] sm:$0xf]
    %v1203 = vld [vmem:[#allocation11 + $0xb4] sm:$0xf]
    %v1204 = vld [vmem:[#allocation11 + $0xc8] sm:$0xf]
    %v1205 = vld [vmem:[#allocation11 + $0xdc] sm:$0xf]
    %v1206 = vld [vmem:[#allocation11 + $0xf0] sm:$0xf]
    %v1207 = vld [vmem:[#allocation11 + $0x104] sm:$0xf]
    %v1208 = vld [vmem:[#allocation11 + $0x118] sm:$0xf]
    %v1209 = vld [vmem:[#allocation11 + $0x12c] sm:$0xf]
    %v1210 = vld [vmem:[#allocation11 + $0x140] sm:$0xf]
    %v1211 = vld [vmem:[#allocation11 + $0x154] sm:$0xf]
    %v1212 = vld [vmem:[#allocation11 + $0x168] sm:$0xf]
    %v1213 = vld [vmem:[#allocation11 + $0x17c] sm:$0xf]
    %v1214 = vld [vmem:[#allocation11 + $0x190] sm:$0xf]
    %v1215 = vld [vmem:[#allocation11 + $0x1a4] sm:$0xf]
    %v1216 = vld [vmem:[#allocation11 + $0x1b8] sm:$0xf]
    %v1217 = vld [vmem:[#allocation11 + $0x1cc] sm:$0xf]
    %v1218 = vld [vmem:[#allocation11 + $0x1e0] sm:$0xf]
    %v1219 = vld [vmem:[#allocation11 + $0x1f4] sm:$0xf]
    %v1220 = vld [vmem:[#allocation11 + $0x208] sm:$0xf]
    %v1221 = vld [vmem:[#allocation11 + $0x21c] sm:$0xf]
    %v1222 = vld [vmem:[#allocation11 + $0x230] sm:$0xf]
    %v1223 = vld [vmem:[#allocation11 + $0x244] sm:$0xf]
    %v1224 = vld [vmem:[#allocation11 + $0x258] sm:$0xf]
    %v1225 = vld [vmem:[#allocation11 + $0x26c] sm:$0xf]
    %v1226 = vld [vmem:[#allocation14 + $0x2] ss:$0 sm:$0xff]
    %v1259 = vunpack.c.l.b16 %v1194
    %v1260 = vunpack.c.l.b16 %v1195
    %v1261 = vunpack.c.l.b16 %v1196
    %v1262 = vunpack.c.l.b16 %v1197
    %v1263 = vunpack.c.l.b16 %v1198
    %v1264 = vunpack.c.l.b16 %v1199
    %v1265 = vunpack.c.l.b16 %v1200
    %v1266 = vunpack.c.l.b16 %v1201
    %v1267 = vunpack.c.l.b16 %v1202
    %v1268 = vunpack.c.l.b16 %v1203
    %v1269 = vunpack.c.l.b16 %v1204
    %v1270 = vunpack.c.l.b16 %v1205
    %v1271 = vunpack.c.l.b16 %v1206
    %v1272 = vunpack.c.l.b16 %v1207
    %v1273 = vunpack.c.l.b16 %v1208
    %v1274 = vunpack.c.l.b16 %v1209
    %v1275 = vunpack.c.l.b16 %v1210
    %v1276 = vunpack.c.l.b16 %v1211
    %v1277 = vunpack.c.l.b16 %v1212
    %v1278 = vunpack.c.l.b16 %v1213
    %v1279 = vunpack.c.l.b16 %v1214
    %v1280 = vunpack.c.l.b16 %v1215
    %v1281 = vunpack.c.l.b16 %v1216
    %v1282 = vunpack.c.l.b16 %v1217
    %v1283 = vunpack.c.l.b16 %v1218
    %v1284 = vunpack.c.l.b16 %v1219
    %v1285 = vunpack.c.l.b16 %v1220
    %v1286 = vunpack.c.l.b16 %v1221
    %v1287 = vunpack.c.l.b16 %v1222
    %v1288 = vunpack.c.l.b16 %v1223
    %v1289 = vunpack.c.l.b16 %v1224
    %v1290 = vunpack.c.l.b16 %v1225
    %v1291 = vpack.c.b16 %v1260, %v1259
    %v1292 = vpack.c.b16 %v1262, %v1261
    %v1293 = vpack.c.b16 %v1264, %v1263
    %v1294 = vpack.c.b16 %v1266, %v1265
    %v1295 = vpack.c.b16 %v1268, %v1267
    %v1296 = vpack.c.b16 %v1270, %v1269
    %v1297 = vpack.c.b16 %v1272, %v1271
    %v1298 = vpack.c.b16 %v1274, %v1273
    %v1299 = vpack.c.b16 %v1276, %v1275
    %v1300 = vpack.c.b16 %v1278, %v1277
    %v1301 = vpack.c.b16 %v1280, %v1279
    %v1302 = vpack.c.b16 %v1282, %v1281
    %v1303 = vpack.c.b16 %v1284, %v1283
    %v1304 = vpack.c.b16 %v1286, %v1285
    %v1305 = vpack.c.b16 %v1288, %v1287
    %v1306 = vpack.c.b16 %v1290, %v1289
    %1323 = vmatpush.bf16.msra.mxu0 %v1298
    %1324 = vmatpush.bf16.msra.mxu0 %v1297
    %1325 = vmatpush.bf16.msra.mxu0 %v1296
    %1326 = vmatpush.bf16.msra.mxu0 %v1295
    %1327 = vmatpush.bf16.msra.mxu0 %v1294
    %1328 = vmatpush.bf16.msra.mxu0 %v1293
    %1329 = vmatpush.bf16.msra.mxu0 %v1292
    %1330 = vmatpush.bf16.msra.mxu0 %v1291
    %1331 = vmatmul.bf16.gmra.mxu0 %v1192
    %v1332 = vpop.f32.mrf.mxu0
    %v1333 = vadd.f32 %v1226, %v1332
    %v1334 = vpop.f32.mrf.mxu0
    %v1335 = vadd.f32 %v1226, %v1334
    %1336 = vdwg.mxu0
    %1337 = vmatpush.bf16.msra.mxu0 %v1306
    %1338 = vmatpush.bf16.msra.mxu0 %v1305
    %1339 = vmatpush.bf16.msra.mxu0 %v1304
    %1340 = vmatpush.bf16.msra.mxu0 %v1303
    %1341 = vmatpush.bf16.msra.mxu0 %v1302
    %1342 = vmatpush.bf16.msra.mxu0 %v1301
    %1343 = vmatpush.bf16.msra.mxu0 %v1300
    %1344 = vmatpush.bf16.msra.mxu0 %v1299
    %1345 = vmatmul.bf16.gmra.mxu0 %v1193
    %v1346 = vpop.f32.mrf.mxu0
    %v1347 = vadd.f32 %v1333, %v1346
    %v1348 = vpop.f32.mrf.mxu0
    %v1349 = vadd.f32 %v1335, %v1348
    %1350 = vdwg.mxu0
    %v1351 = vmax.f32 %v1347, 0.0
    %v1352 = vmax.f32 %v1349, 0.0
    %v1353 = vpack.c.bf16 %v1351, %v1351
    %v1354 = vpack.c.bf16 %v1352, %v1352
    %v1355 = vld [vmem:[#allocation8] sm:$0xff]
    %v1356 = vld [vmem:[#allocation8 + $0x8] sm:$0xff]
    %v1357 = vld [vmem:[#allocation8 + $0x10] sm:$0xff]
    %v1358 = vld [vmem:[#allocation8 + $0x18] sm:$0xff]
    %v1359 = vld [vmem:[#allocation8 + $0x20] sm:$0xff]
    %v1360 = vld [vmem:[#allocation8 + $0x28] sm:$0xff]
    %v1361 = vld [vmem:[#allocation8 + $0x30] sm:$0xff]
    %v1362 = vld [vmem:[#allocation8 + $0x38] sm:$0xff]
    %v1363 = vld [vmem:[#allocation8 + $0x40] sm:$0xff]
    %v1364 = vld [vmem:[#allocation8 + $0x48] sm:$0xff]
    %v1365 = vld [vmem:[#allocation8 + $0x50] sm:$0xff]
    %v1366 = vld [vmem:[#allocation8 + $0x58] sm:$0xff]
    %v1367 = vld [vmem:[#allocation8 + $0x60] sm:$0xff]
    %v1368 = vld [vmem:[#allocation8 + $0x68] sm:$0xff]
    %v1369 = vld [vmem:[#allocation8 + $0x70] sm:$0xff]
    %v1370 = vld [vmem:[#allocation8 + $0x78] sm:$0xff]
    %v1371 = vld [vmem:[#allocation8 + $0x80] sm:$0xff]
    %v1372 = vld [vmem:[#allocation8 + $0x88] sm:$0xff]
    %v1373 = vld [vmem:[#allocation8 + $0x90] sm:$0xff]
    %v1374 = vld [vmem:[#allocation8 + $0x98] sm:$0xff]
    %v1375 = vld [vmem:[#allocation8 + $0xa0] sm:$0xff]
    %v1376 = vld [vmem:[#allocation8 + $0xa8] sm:$0xff]
    %v1377 = vld [vmem:[#allocation8 + $0xb0] sm:$0xff]
    %v1378 = vld [vmem:[#allocation8 + $0xb8] sm:$0xff]
    %v1379 = vld [vmem:[#allocation8 + $0xc0] sm:$0xff]
    %v1380 = vld [vmem:[#allocation8 + $0xc8] sm:$0xff]
    %v1381 = vld [vmem:[#allocation8 + $0xd0] sm:$0xff]
    %v1382 = vld [vmem:[#allocation8 + $0xd8] sm:$0xff]
    %v1383 = vld [vmem:[#allocation8 + $0xe0] sm:$0xff]
    %v1384 = vld [vmem:[#allocation8 + $0xe8] sm:$0xff]
    %v1385 = vld [vmem:[#allocation8 + $0xf0] sm:$0xff]
    %v1386 = vld [vmem:[#allocation8 + $0xf8] sm:$0xff]
    %v1387 = vld [vmem:[#allocation8 + $0x100] sm:$0xff]
    %v1388 = vld [vmem:[#allocation8 + $0x108] sm:$0xff]
    %v1389 = vld [vmem:[#allocation8 + $0x110] sm:$0xff]
    %v1390 = vld [vmem:[#allocation8 + $0x118] sm:$0xff]
    %v1391 = vld [vmem:[#allocation8 + $0x120] sm:$0xff]
    %v1392 = vld [vmem:[#allocation8 + $0x128] sm:$0xff]
    %v1393 = vld [vmem:[#allocation8 + $0x130] sm:$0xff]
    %v1394 = vld [vmem:[#allocation8 + $0x138] sm:$0xff]
    %v1395 = vld [vmem:[#allocation8 + $0x140] sm:$0xff]
    %v1396 = vld [vmem:[#allocation8 + $0x148] sm:$0xff]
    %v1397 = vld [vmem:[#allocation8 + $0x150] sm:$0xff]
    %v1398 = vld [vmem:[#allocation8 + $0x158] sm:$0xff]
    %v1399 = vld [vmem:[#allocation8 + $0x160] sm:$0xff]
    %v1400 = vld [vmem:[#allocation8 + $0x168] sm:$0xff]
    %v1401 = vld [vmem:[#allocation8 + $0x170] sm:$0xff]
    %v1402 = vld [vmem:[#allocation8 + $0x178] sm:$0xff]
    %v1403 = vld [vmem:[#allocation8 + $0x180] sm:$0xff]
    %v1404 = vld [vmem:[#allocation8 + $0x188] sm:$0xff]
    %v1405 = vld [vmem:[#allocation8 + $0x190] sm:$0xff]
    %v1406 = vld [vmem:[#allocation8 + $0x198] sm:$0xff]
    %v1407 = vld [vmem:[#allocation8 + $0x1a0] sm:$0xff]
    %v1408 = vld [vmem:[#allocation8 + $0x1a8] sm:$0xff]
    %v1409 = vld [vmem:[#allocation8 + $0x1b0] sm:$0xff]
    %v1410 = vld [vmem:[#allocation8 + $0x1b8] sm:$0xff]
    %v1411 = vld [vmem:[#allocation8 + $0x1c0] sm:$0xff]
    %v1412 = vld [vmem:[#allocation8 + $0x1c8] sm:$0xff]
    %v1413 = vld [vmem:[#allocation8 + $0x1d0] sm:$0xff]
    %v1414 = vld [vmem:[#allocation8 + $0x1d8] sm:$0xff]
    %v1415 = vld [vmem:[#allocation8 + $0x1e0] sm:$0xff]
    %v1416 = vld [vmem:[#allocation8 + $0x1e8] sm:$0xff]
    %v1417 = vld [vmem:[#allocation8 + $0x1f0] sm:$0xff]
    %v1418 = vld [vmem:[#allocation8 + $0x1f8] sm:$0xff]
    %v1419 = vld [vmem:[#allocation8 + $0x200] sm:$0xff]
    %v1420 = vld [vmem:[#allocation8 + $0x208] sm:$0xff]
    %v1421 = vld [vmem:[#allocation8 + $0x210] sm:$0xff]
    %v1422 = vld [vmem:[#allocation8 + $0x218] sm:$0xff]
    %v1423 = vld [vmem:[#allocation8 + $0x220] sm:$0xff]
    %v1424 = vld [vmem:[#allocation8 + $0x228] sm:$0xff]
    %v1425 = vld [vmem:[#allocation8 + $0x230] sm:$0xff]
    %v1426 = vld [vmem:[#allocation8 + $0x238] sm:$0xff]
    %v1427 = vld [vmem:[#allocation8 + $0x240] sm:$0xff]
    %v1428 = vld [vmem:[#allocation8 + $0x248] sm:$0xff]
    %v1429 = vld [vmem:[#allocation8 + $0x250] sm:$0xff]
    %v1430 = vld [vmem:[#allocation8 + $0x258] sm:$0xff]
    %v1431 = vld [vmem:[#allocation8 + $0x260] sm:$0xff]
    %v1432 = vld [vmem:[#allocation8 + $0x268] sm:$0xff]
    %v1433 = vld [vmem:[#allocation8 + $0x270] sm:$0xff]
    %v1434 = vld [vmem:[#allocation8 + $0x278] sm:$0xff]
    %v1435 = vld [vmem:[#allocation8 + $0x280] sm:$0xff]
    %v1436 = vld [vmem:[#allocation8 + $0x288] sm:$0xff]
    %v1437 = vld [vmem:[#allocation8 + $0x290] sm:$0xff]
    %v1438 = vld [vmem:[#allocation8 + $0x298] sm:$0xff]
    %v1439 = vld [vmem:[#allocation8 + $0x2a0] sm:$0xff]
    %v1440 = vld [vmem:[#allocation8 + $0x2a8] sm:$0xff]
    %v1441 = vld [vmem:[#allocation8 + $0x2b0] sm:$0xff]
    %v1442 = vld [vmem:[#allocation8 + $0x2b8] sm:$0xff]
    %v1443 = vld [vmem:[#allocation8 + $0x2c0] sm:$0xff]
    %v1444 = vld [vmem:[#allocation8 + $0x2c8] sm:$0xff]
    %v1445 = vld [vmem:[#allocation8 + $0x2d0] sm:$0xff]
    %v1446 = vld [vmem:[#allocation8 + $0x2d8] sm:$0xff]
    %v1447 = vld [vmem:[#allocation8 + $0x2e0] sm:$0xff]
    %v1448 = vld [vmem:[#allocation8 + $0x2e8] sm:$0xff]
    %v1449 = vld [vmem:[#allocation8 + $0x2f0] sm:$0xff]
    %v1450 = vld [vmem:[#allocation8 + $0x2f8] sm:$0xff]
    %v1451 = vld [vmem:[#allocation8 + $0x300] sm:$0xff]
    %v1452 = vld [vmem:[#allocation8 + $0x308] sm:$0xff]
    %v1453 = vld [vmem:[#allocation8 + $0x310] sm:$0xff]
    %v1454 = vld [vmem:[#allocation8 + $0x318] sm:$0xff]
    %v1455 = vld [vmem:[#allocation8 + $0x320] sm:$0xff]
    %v1456 = vld [vmem:[#allocation8 + $0x328] sm:$0xff]
    %v1457 = vld [vmem:[#allocation8 + $0x330] sm:$0xff]
    %v1458 = vld [vmem:[#allocation8 + $0x338] sm:$0xff]
    %v1459 = vld [vmem:[#allocation8 + $0x340] sm:$0xff]
    %v1460 = vld [vmem:[#allocation8 + $0x348] sm:$0xff]
    %v1461 = vld [vmem:[#allocation8 + $0x350] sm:$0xff]
    %v1462 = vld [vmem:[#allocation8 + $0x358] sm:$0xff]
    %v1463 = vld [vmem:[#allocation8 + $0x360] sm:$0xff]
    %v1464 = vld [vmem:[#allocation8 + $0x368] sm:$0xff]
    %v1465 = vld [vmem:[#allocation8 + $0x370] sm:$0xff]
    %v1466 = vld [vmem:[#allocation8 + $0x378] sm:$0xff]
    %v1467 = vld [vmem:[#allocation8 + $0x380] sm:$0xff]
    %v1468 = vld [vmem:[#allocation8 + $0x388] sm:$0xff]
    %v1469 = vld [vmem:[#allocation8 + $0x390] sm:$0xff]
    %v1470 = vld [vmem:[#allocation8 + $0x398] sm:$0xff]
    %v1471 = vld [vmem:[#allocation8 + $0x3a0] sm:$0xff]
    %v1472 = vld [vmem:[#allocation8 + $0x3a8] sm:$0xff]
    %v1473 = vld [vmem:[#allocation8 + $0x3b0] sm:$0xff]
    %v1474 = vld [vmem:[#allocation8 + $0x3b8] sm:$0xff]
    %v1475 = vld [vmem:[#allocation8 + $0x3c0] sm:$0xff]
    %v1476 = vld [vmem:[#allocation8 + $0x3c8] sm:$0xff]
    %v1477 = vld [vmem:[#allocation8 + $0x3d0] sm:$0xff]
    %v1478 = vld [vmem:[#allocation8 + $0x3d8] sm:$0xff]
    %v1479 = vld [vmem:[#allocation8 + $0x3e0] sm:$0xff]
    %v1480 = vld [vmem:[#allocation8 + $0x3e8] sm:$0xff]
    %v1481 = vld [vmem:[#allocation8 + $0x3f0] sm:$0xff]
    %v1482 = vld [vmem:[#allocation8 + $0x3f8] sm:$0xff]
    %s1483 = scalar_lea.vmem [#allocation14], 3
    %v1484 = vld [vmem:[%s1483] ss:$8 sm:$0xf]
    %v1485 = vld [vmem:[%s1483] ss:$8 sm:$0xf0]
    %v1486 = vor.u32 %v1484, %v1485
    %v1488 = vperm.slane %v1486, 0
    %v1489 = vperm.slane %v1486, 1
    %v1490 = vperm.slane %v1486, 2
    %v1491 = vperm.slane %v1486, 3
    %v1492 = vperm.slane %v1486, 4
    %v1493 = vperm.slane %v1486, 5
    %v1494 = vperm.slane %v1486, 6
    %v1495 = vperm.slane %v1486, 7
    %v1632 = vunpack.c.l.b16 %v1355
    %v1633 = vunpack.c.h.b16 %v1355
    %v1634 = vunpack.c.l.b16 %v1356
    %v1635 = vunpack.c.h.b16 %v1356
    %v1636 = vunpack.c.l.b16 %v1357
    %v1637 = vunpack.c.h.b16 %v1357
    %v1638 = vunpack.c.l.b16 %v1358
    %v1639 = vunpack.c.h.b16 %v1358
    %v1640 = vunpack.c.l.b16 %v1359
    %v1641 = vunpack.c.h.b16 %v1359
    %v1642 = vunpack.c.l.b16 %v1360
    %v1643 = vunpack.c.h.b16 %v1360
    %v1644 = vunpack.c.l.b16 %v1361
    %v1645 = vunpack.c.h.b16 %v1361
    %v1646 = vunpack.c.l.b16 %v1362
    %v1647 = vunpack.c.h.b16 %v1362
    %v1648 = vunpack.c.l.b16 %v1363
    %v1649 = vunpack.c.h.b16 %v1363
    %v1650 = vunpack.c.l.b16 %v1364
    %v1651 = vunpack.c.h.b16 %v1364
    %v1652 = vunpack.c.l.b16 %v1365
    %v1653 = vunpack.c.h.b16 %v1365
    %v1654 = vunpack.c.l.b16 %v1366
    %v1655 = vunpack.c.h.b16 %v1366
    %v1656 = vunpack.c.l.b16 %v1367
    %v1657 = vunpack.c.h.b16 %v1367
    %v1658 = vunpack.c.l.b16 %v1368
    %v1659 = vunpack.c.h.b16 %v1368
    %v1660 = vunpack.c.l.b16 %v1369
    %v1661 = vunpack.c.h.b16 %v1369
    %v1662 = vunpack.c.l.b16 %v1370
    %v1663 = vunpack.c.h.b16 %v1370
    %v1664 = vunpack.c.l.b16 %v1371
    %v1665 = vunpack.c.h.b16 %v1371
    %v1666 = vunpack.c.l.b16 %v1372
    %v1667 = vunpack.c.h.b16 %v1372
    %v1668 = vunpack.c.l.b16 %v1373
    %v1669 = vunpack.c.h.b16 %v1373
    %v1670 = vunpack.c.l.b16 %v1374
    %v1671 = vunpack.c.h.b16 %v1374
    %v1672 = vunpack.c.l.b16 %v1375
    %v1673 = vunpack.c.h.b16 %v1375
    %v1674 = vunpack.c.l.b16 %v1376
    %v1675 = vunpack.c.h.b16 %v1376
    %v1676 = vunpack.c.l.b16 %v1377
    %v1677 = vunpack.c.h.b16 %v1377
    %v1678 = vunpack.c.l.b16 %v1378
    %v1679 = vunpack.c.h.b16 %v1378
    %v1680 = vunpack.c.l.b16 %v1379
    %v1681 = vunpack.c.h.b16 %v1379
    %v1682 = vunpack.c.l.b16 %v1380
    %v1683 = vunpack.c.h.b16 %v1380
    %v1684 = vunpack.c.l.b16 %v1381
    %v1685 = vunpack.c.h.b16 %v1381
    %v1686 = vunpack.c.l.b16 %v1382
    %v1687 = vunpack.c.h.b16 %v1382
    %v1688 = vunpack.c.l.b16 %v1383
    %v1689 = vunpack.c.h.b16 %v1383
    %v1690 = vunpack.c.l.b16 %v1384
    %v1691 = vunpack.c.h.b16 %v1384
    %v1692 = vunpack.c.l.b16 %v1385
    %v1693 = vunpack.c.h.b16 %v1385
    %v1694 = vunpack.c.l.b16 %v1386
    %v1695 = vunpack.c.h.b16 %v1386
    %v1696 = vunpack.c.l.b16 %v1387
    %v1697 = vunpack.c.h.b16 %v1387
    %v1698 = vunpack.c.l.b16 %v1388
    %v1699 = vunpack.c.h.b16 %v1388
    %v1700 = vunpack.c.l.b16 %v1389
    %v1701 = vunpack.c.h.b16 %v1389
    %v1702 = vunpack.c.l.b16 %v1390
    %v1703 = vunpack.c.h.b16 %v1390
    %v1704 = vunpack.c.l.b16 %v1391
    %v1705 = vunpack.c.h.b16 %v1391
    %v1706 = vunpack.c.l.b16 %v1392
    %v1707 = vunpack.c.h.b16 %v1392
    %v1708 = vunpack.c.l.b16 %v1393
    %v1709 = vunpack.c.h.b16 %v1393
    %v1710 = vunpack.c.l.b16 %v1394
    %v1711 = vunpack.c.h.b16 %v1394
    %v1712 = vunpack.c.l.b16 %v1395
    %v1713 = vunpack.c.h.b16 %v1395
    %v1714 = vunpack.c.l.b16 %v1396
    %v1715 = vunpack.c.h.b16 %v1396
    %v1716 = vunpack.c.l.b16 %v1397
    %v1717 = vunpack.c.h.b16 %v1397
    %v1718 = vunpack.c.l.b16 %v1398
    %v1719 = vunpack.c.h.b16 %v1398
    %v1720 = vunpack.c.l.b16 %v1399
    %v1721 = vunpack.c.h.b16 %v1399
    %v1722 = vunpack.c.l.b16 %v1400
    %v1723 = vunpack.c.h.b16 %v1400
    %v1724 = vunpack.c.l.b16 %v1401
    %v1725 = vunpack.c.h.b16 %v1401
    %v1726 = vunpack.c.l.b16 %v1402
    %v1727 = vunpack.c.h.b16 %v1402
    %v1728 = vunpack.c.l.b16 %v1403
    %v1729 = vunpack.c.h.b16 %v1403
    %v1730 = vunpack.c.l.b16 %v1404
    %v1731 = vunpack.c.h.b16 %v1404
    %v1732 = vunpack.c.l.b16 %v1405
    %v1733 = vunpack.c.h.b16 %v1405
    %v1734 = vunpack.c.l.b16 %v1406
    %v1735 = vunpack.c.h.b16 %v1406
    %v1736 = vunpack.c.l.b16 %v1407
    %v1737 = vunpack.c.h.b16 %v1407
    %v1738 = vunpack.c.l.b16 %v1408
    %v1739 = vunpack.c.h.b16 %v1408
    %v1740 = vunpack.c.l.b16 %v1409
    %v1741 = vunpack.c.h.b16 %v1409
    %v1742 = vunpack.c.l.b16 %v1410
    %v1743 = vunpack.c.h.b16 %v1410
    %v1744 = vunpack.c.l.b16 %v1411
    %v1745 = vunpack.c.h.b16 %v1411
    %v1746 = vunpack.c.l.b16 %v1412
    %v1747 = vunpack.c.h.b16 %v1412
    %v1748 = vunpack.c.l.b16 %v1413
    %v1749 = vunpack.c.h.b16 %v1413
    %v1750 = vunpack.c.l.b16 %v1414
    %v1751 = vunpack.c.h.b16 %v1414
    %v1752 = vunpack.c.l.b16 %v1415
    %v1753 = vunpack.c.h.b16 %v1415
    %v1754 = vunpack.c.l.b16 %v1416
    %v1755 = vunpack.c.h.b16 %v1416
    %v1756 = vunpack.c.l.b16 %v1417
    %v1757 = vunpack.c.h.b16 %v1417
    %v1758 = vunpack.c.l.b16 %v1418
    %v1759 = vunpack.c.h.b16 %v1418
    %v1760 = vunpack.c.l.b16 %v1419
    %v1761 = vunpack.c.h.b16 %v1419
    %v1762 = vunpack.c.l.b16 %v1420
    %v1763 = vunpack.c.h.b16 %v1420
    %v1764 = vunpack.c.l.b16 %v1421
    %v1765 = vunpack.c.h.b16 %v1421
    %v1766 = vunpack.c.l.b16 %v1422
    %v1767 = vunpack.c.h.b16 %v1422
    %v1768 = vunpack.c.l.b16 %v1423
    %v1769 = vunpack.c.h.b16 %v1423
    %v1770 = vunpack.c.l.b16 %v1424
    %v1771 = vunpack.c.h.b16 %v1424
    %v1772 = vunpack.c.l.b16 %v1425
    %v1773 = vunpack.c.h.b16 %v1425
    %v1774 = vunpack.c.l.b16 %v1426
    %v1775 = vunpack.c.h.b16 %v1426
    %v1776 = vunpack.c.l.b16 %v1427
    %v1777 = vunpack.c.h.b16 %v1427
    %v1778 = vunpack.c.l.b16 %v1428
    %v1779 = vunpack.c.h.b16 %v1428
    %v1780 = vunpack.c.l.b16 %v1429
    %v1781 = vunpack.c.h.b16 %v1429
    %v1782 = vunpack.c.l.b16 %v1430
    %v1783 = vunpack.c.h.b16 %v1430
    %v1784 = vunpack.c.l.b16 %v1431
    %v1785 = vunpack.c.h.b16 %v1431
    %v1786 = vunpack.c.l.b16 %v1432
    %v1787 = vunpack.c.h.b16 %v1432
    %v1788 = vunpack.c.l.b16 %v1433
    %v1789 = vunpack.c.h.b16 %v1433
    %v1790 = vunpack.c.l.b16 %v1434
    %v1791 = vunpack.c.h.b16 %v1434
    %v1792 = vunpack.c.l.b16 %v1435
    %v1793 = vunpack.c.h.b16 %v1435
    %v1794 = vunpack.c.l.b16 %v1436
    %v1795 = vunpack.c.h.b16 %v1436
    %v1796 = vunpack.c.l.b16 %v1437
    %v1797 = vunpack.c.h.b16 %v1437
    %v1798 = vunpack.c.l.b16 %v1438
    %v1799 = vunpack.c.h.b16 %v1438
    %v1800 = vunpack.c.l.b16 %v1439
    %v1801 = vunpack.c.h.b16 %v1439
    %v1802 = vunpack.c.l.b16 %v1440
    %v1803 = vunpack.c.h.b16 %v1440
    %v1804 = vunpack.c.l.b16 %v1441
    %v1805 = vunpack.c.h.b16 %v1441
    %v1806 = vunpack.c.l.b16 %v1442
    %v1807 = vunpack.c.h.b16 %v1442
    %v1808 = vunpack.c.l.b16 %v1443
    %v1809 = vunpack.c.h.b16 %v1443
    %v1810 = vunpack.c.l.b16 %v1444
    %v1811 = vunpack.c.h.b16 %v1444
    %v1812 = vunpack.c.l.b16 %v1445
    %v1813 = vunpack.c.h.b16 %v1445
    %v1814 = vunpack.c.l.b16 %v1446
    %v1815 = vunpack.c.h.b16 %v1446
    %v1816 = vunpack.c.l.b16 %v1447
    %v1817 = vunpack.c.h.b16 %v1447
    %v1818 = vunpack.c.l.b16 %v1448
    %v1819 = vunpack.c.h.b16 %v1448
    %v1820 = vunpack.c.l.b16 %v1449
    %v1821 = vunpack.c.h.b16 %v1449
    %v1822 = vunpack.c.l.b16 %v1450
    %v1823 = vunpack.c.h.b16 %v1450
    %v1824 = vunpack.c.l.b16 %v1451
    %v1825 = vunpack.c.h.b16 %v1451
    %v1826 = vunpack.c.l.b16 %v1452
    %v1827 = vunpack.c.h.b16 %v1452
    %v1828 = vunpack.c.l.b16 %v1453
    %v1829 = vunpack.c.h.b16 %v1453
    %v1830 = vunpack.c.l.b16 %v1454
    %v1831 = vunpack.c.h.b16 %v1454
    %v1832 = vunpack.c.l.b16 %v1455
    %v1833 = vunpack.c.h.b16 %v1455
    %v1834 = vunpack.c.l.b16 %v1456
    %v1835 = vunpack.c.h.b16 %v1456
    %v1836 = vunpack.c.l.b16 %v1457
    %v1837 = vunpack.c.h.b16 %v1457
    %v1838 = vunpack.c.l.b16 %v1458
    %v1839 = vunpack.c.h.b16 %v1458
    %v1840 = vunpack.c.l.b16 %v1459
    %v1841 = vunpack.c.h.b16 %v1459
    %v1842 = vunpack.c.l.b16 %v1460
    %v1843 = vunpack.c.h.b16 %v1460
    %v1844 = vunpack.c.l.b16 %v1461
    %v1845 = vunpack.c.h.b16 %v1461
    %v1846 = vunpack.c.l.b16 %v1462
    %v1847 = vunpack.c.h.b16 %v1462
    %v1848 = vunpack.c.l.b16 %v1463
    %v1849 = vunpack.c.h.b16 %v1463
    %v1850 = vunpack.c.l.b16 %v1464
    %v1851 = vunpack.c.h.b16 %v1464
    %v1852 = vunpack.c.l.b16 %v1465
    %v1853 = vunpack.c.h.b16 %v1465
    %v1854 = vunpack.c.l.b16 %v1466
    %v1855 = vunpack.c.h.b16 %v1466
    %v1856 = vunpack.c.l.b16 %v1467
    %v1857 = vunpack.c.h.b16 %v1467
    %v1858 = vunpack.c.l.b16 %v1468
    %v1859 = vunpack.c.h.b16 %v1468
    %v1860 = vunpack.c.l.b16 %v1469
    %v1861 = vunpack.c.h.b16 %v1469
    %v1862 = vunpack.c.l.b16 %v1470
    %v1863 = vunpack.c.h.b16 %v1470
    %v1864 = vunpack.c.l.b16 %v1471
    %v1865 = vunpack.c.h.b16 %v1471
    %v1866 = vunpack.c.l.b16 %v1472
    %v1867 = vunpack.c.h.b16 %v1472
    %v1868 = vunpack.c.l.b16 %v1473
    %v1869 = vunpack.c.h.b16 %v1473
    %v1870 = vunpack.c.l.b16 %v1474
    %v1871 = vunpack.c.h.b16 %v1474
    %v1872 = vunpack.c.l.b16 %v1475
    %v1873 = vunpack.c.h.b16 %v1475
    %v1874 = vunpack.c.l.b16 %v1476
    %v1875 = vunpack.c.h.b16 %v1476
    %v1876 = vunpack.c.l.b16 %v1477
    %v1877 = vunpack.c.h.b16 %v1477
    %v1878 = vunpack.c.l.b16 %v1478
    %v1879 = vunpack.c.h.b16 %v1478
    %v1880 = vunpack.c.l.b16 %v1479
    %v1881 = vunpack.c.h.b16 %v1479
    %v1882 = vunpack.c.l.b16 %v1480
    %v1883 = vunpack.c.h.b16 %v1480
    %v1884 = vunpack.c.l.b16 %v1481
    %v1885 = vunpack.c.h.b16 %v1481
    %v1886 = vunpack.c.l.b16 %v1482
    %v1887 = vunpack.c.h.b16 %v1482
    %v1888 = vpack.c.b16 %v1640, %v1632
    %v1889 = vpack.c.b16 %v1641, %v1633
    %v1890 = vpack.c.b16 %v1642, %v1634
    %v1891 = vpack.c.b16 %v1643, %v1635
    %v1892 = vpack.c.b16 %v1644, %v1636
    %v1893 = vpack.c.b16 %v1645, %v1637
    %v1894 = vpack.c.b16 %v1646, %v1638
    %v1895 = vpack.c.b16 %v1647, %v1639
    %v1896 = vpack.c.b16 %v1656, %v1648
    %v1897 = vpack.c.b16 %v1657, %v1649
    %v1898 = vpack.c.b16 %v1658, %v1650
    %v1899 = vpack.c.b16 %v1659, %v1651
    %v1900 = vpack.c.b16 %v1660, %v1652
    %v1901 = vpack.c.b16 %v1661, %v1653
    %v1902 = vpack.c.b16 %v1662, %v1654
    %v1903 = vpack.c.b16 %v1663, %v1655
    %v1904 = vpack.c.b16 %v1672, %v1664
    %v1905 = vpack.c.b16 %v1673, %v1665
    %v1906 = vpack.c.b16 %v1674, %v1666
    %v1907 = vpack.c.b16 %v1675, %v1667
    %v1908 = vpack.c.b16 %v1676, %v1668
    %v1909 = vpack.c.b16 %v1677, %v1669
    %v1910 = vpack.c.b16 %v1678, %v1670
    %v1911 = vpack.c.b16 %v1679, %v1671
    %v1912 = vpack.c.b16 %v1688, %v1680
    %v1913 = vpack.c.b16 %v1689, %v1681
    %v1914 = vpack.c.b16 %v1690, %v1682
    %v1915 = vpack.c.b16 %v1691, %v1683
    %v1916 = vpack.c.b16 %v1692, %v1684
    %v1917 = vpack.c.b16 %v1693, %v1685
    %v1918 = vpack.c.b16 %v1694, %v1686
    %v1919 = vpack.c.b16 %v1695, %v1687
    %v1920 = vpack.c.b16 %v1704, %v1696
    %v1921 = vpack.c.b16 %v1705, %v1697
    %v1922 = vpack.c.b16 %v1706, %v1698
    %v1923 = vpack.c.b16 %v1707, %v1699
    %v1924 = vpack.c.b16 %v1708, %v1700
    %v1925 = vpack.c.b16 %v1709, %v1701
    %v1926 = vpack.c.b16 %v1710, %v1702
    %v1927 = vpack.c.b16 %v1711, %v1703
    %v1928 = vpack.c.b16 %v1720, %v1712
    %v1929 = vpack.c.b16 %v1721, %v1713
    %v1930 = vpack.c.b16 %v1722, %v1714
    %v1931 = vpack.c.b16 %v1723, %v1715
    %v1932 = vpack.c.b16 %v1724, %v1716
    %v1933 = vpack.c.b16 %v1725, %v1717
    %v1934 = vpack.c.b16 %v1726, %v1718
    %v1935 = vpack.c.b16 %v1727, %v1719
    %v1936 = vpack.c.b16 %v1736, %v1728
    %v1937 = vpack.c.b16 %v1737, %v1729
    %v1938 = vpack.c.b16 %v1738, %v1730
    %v1939 = vpack.c.b16 %v1739, %v1731
    %v1940 = vpack.c.b16 %v1740, %v1732
    %v1941 = vpack.c.b16 %v1741, %v1733
    %v1942 = vpack.c.b16 %v1742, %v1734
    %v1943 = vpack.c.b16 %v1743, %v1735
    %v1944 = vpack.c.b16 %v1752, %v1744
    %v1945 = vpack.c.b16 %v1753, %v1745
    %v1946 = vpack.c.b16 %v1754, %v1746
    %v1947 = vpack.c.b16 %v1755, %v1747
    %v1948 = vpack.c.b16 %v1756, %v1748
    %v1949 = vpack.c.b16 %v1757, %v1749
    %v1950 = vpack.c.b16 %v1758, %v1750
    %v1951 = vpack.c.b16 %v1759, %v1751
    %v1952 = vpack.c.b16 %v1768, %v1760
    %v1953 = vpack.c.b16 %v1769, %v1761
    %v1954 = vpack.c.b16 %v1770, %v1762
    %v1955 = vpack.c.b16 %v1771, %v1763
    %v1956 = vpack.c.b16 %v1772, %v1764
    %v1957 = vpack.c.b16 %v1773, %v1765
    %v1958 = vpack.c.b16 %v1774, %v1766
    %v1959 = vpack.c.b16 %v1775, %v1767
    %v1960 = vpack.c.b16 %v1784, %v1776
    %v1961 = vpack.c.b16 %v1785, %v1777
    %v1962 = vpack.c.b16 %v1786, %v1778
    %v1963 = vpack.c.b16 %v1787, %v1779
    %v1964 = vpack.c.b16 %v1788, %v1780
    %v1965 = vpack.c.b16 %v1789, %v1781
    %v1966 = vpack.c.b16 %v1790, %v1782
    %v1967 = vpack.c.b16 %v1791, %v1783
    %v1968 = vpack.c.b16 %v1800, %v1792
    %v1969 = vpack.c.b16 %v1801, %v1793
    %v1970 = vpack.c.b16 %v1802, %v1794
    %v1971 = vpack.c.b16 %v1803, %v1795
    %v1972 = vpack.c.b16 %v1804, %v1796
    %v1973 = vpack.c.b16 %v1805, %v1797
    %v1974 = vpack.c.b16 %v1806, %v1798
    %v1975 = vpack.c.b16 %v1807, %v1799
    %v1976 = vpack.c.b16 %v1816, %v1808
    %v1977 = vpack.c.b16 %v1817, %v1809
    %v1978 = vpack.c.b16 %v1818, %v1810
    %v1979 = vpack.c.b16 %v1819, %v1811
    %v1980 = vpack.c.b16 %v1820, %v1812
    %v1981 = vpack.c.b16 %v1821, %v1813
    %v1982 = vpack.c.b16 %v1822, %v1814
    %v1983 = vpack.c.b16 %v1823, %v1815
    %v1984 = vpack.c.b16 %v1832, %v1824
    %v1985 = vpack.c.b16 %v1833, %v1825
    %v1986 = vpack.c.b16 %v1834, %v1826
    %v1987 = vpack.c.b16 %v1835, %v1827
    %v1988 = vpack.c.b16 %v1836, %v1828
    %v1989 = vpack.c.b16 %v1837, %v1829
    %v1990 = vpack.c.b16 %v1838, %v1830
    %v1991 = vpack.c.b16 %v1839, %v1831
    %v1992 = vpack.c.b16 %v1848, %v1840
    %v1993 = vpack.c.b16 %v1849, %v1841
    %v1994 = vpack.c.b16 %v1850, %v1842
    %v1995 = vpack.c.b16 %v1851, %v1843
    %v1996 = vpack.c.b16 %v1852, %v1844
    %v1997 = vpack.c.b16 %v1853, %v1845
    %v1998 = vpack.c.b16 %v1854, %v1846
    %v1999 = vpack.c.b16 %v1855, %v1847
    %v2000 = vpack.c.b16 %v1864, %v1856
    %v2001 = vpack.c.b16 %v1865, %v1857
    %v2002 = vpack.c.b16 %v1866, %v1858
    %v2003 = vpack.c.b16 %v1867, %v1859
    %v2004 = vpack.c.b16 %v1868, %v1860
    %v2005 = vpack.c.b16 %v1869, %v1861
    %v2006 = vpack.c.b16 %v1870, %v1862
    %v2007 = vpack.c.b16 %v1871, %v1863
    %v2008 = vpack.c.b16 %v1880, %v1872
    %v2009 = vpack.c.b16 %v1881, %v1873
    %v2010 = vpack.c.b16 %v1882, %v1874
    %v2011 = vpack.c.b16 %v1883, %v1875
    %v2012 = vpack.c.b16 %v1884, %v1876
    %v2013 = vpack.c.b16 %v1885, %v1877
    %v2014 = vpack.c.b16 %v1886, %v1878
    %v2015 = vpack.c.b16 %v1887, %v1879
    %2144 = vmatpush.bf16.msra.mxu0 %v1944
    %2145 = vmatpush.bf16.msra.mxu0 %v1936
    %2146 = vmatpush.bf16.msra.mxu0 %v1928
    %2147 = vmatpush.bf16.msra.mxu0 %v1920
    %2148 = vmatpush.bf16.msra.mxu0 %v1912
    %2149 = vmatpush.bf16.msra.mxu0 %v1904
    %2150 = vmatpush.bf16.msra.mxu0 %v1896
    %2151 = vmatpush.bf16.msra.mxu0 %v1888
    %2152 = vmatmul.bf16.gmra.mxu0 %v165
    %v2153 = vpop.f32.mrf.mxu0
    %v2154 = vadd.f32 %v1488, %v2153
    %v2155 = vpop.f32.mrf.mxu0
    %v2156 = vadd.f32 %v1488, %v2155
    %2157 = vdwg.mxu0
    %2158 = vmatpush.bf16.msra.mxu0 %v2008
    %2159 = vmatpush.bf16.msra.mxu0 %v2000
    %2160 = vmatpush.bf16.msra.mxu0 %v1992
    %2161 = vmatpush.bf16.msra.mxu0 %v1984
    %2162 = vmatpush.bf16.msra.mxu0 %v1976
    %2163 = vmatpush.bf16.msra.mxu0 %v1968
    %2164 = vmatpush.bf16.msra.mxu0 %v1960
    %2165 = vmatpush.bf16.msra.mxu0 %v1952
    %2166 = vmatmul.bf16.gmra.mxu0 %v166
    %v2167 = vpop.f32.mrf.mxu0
    %v2168 = vadd.f32 %v2154, %v2167
    %v2169 = vpop.f32.mrf.mxu0
    %v2170 = vadd.f32 %v2156, %v2169
    %2171 = vdwg.mxu0
    %2172 = vmatpush.bf16.msra.mxu0 %v1945
    %2173 = vmatpush.bf16.msra.mxu0 %v1937
    %2174 = vmatpush.bf16.msra.mxu0 %v1929
    %2175 = vmatpush.bf16.msra.mxu0 %v1921
    %2176 = vmatpush.bf16.msra.mxu0 %v1913
    %2177 = vmatpush.bf16.msra.mxu0 %v1905
    %2178 = vmatpush.bf16.msra.mxu0 %v1897
    %2179 = vmatpush.bf16.msra.mxu0 %v1889
    %2180 = vmatmul.bf16.gmra.mxu0 %v165
    %v2181 = vpop.f32.mrf.mxu0
    %v2182 = vadd.f32 %v1489, %v2181
    %v2183 = vpop.f32.mrf.mxu0
    %v2184 = vadd.f32 %v1489, %v2183
    %2185 = vdwg.mxu0
    %2186 = vmatpush.bf16.msra.mxu0 %v2009
    %2187 = vmatpush.bf16.msra.mxu0 %v2001
    %2188 = vmatpush.bf16.msra.mxu0 %v1993
    %2189 = vmatpush.bf16.msra.mxu0 %v1985
    %2190 = vmatpush.bf16.msra.mxu0 %v1977
    %2191 = vmatpush.bf16.msra.mxu0 %v1969
    %2192 = vmatpush.bf16.msra.mxu0 %v1961
    %2193 = vmatpush.bf16.msra.mxu0 %v1953
    %2194 = vmatmul.bf16.gmra.mxu0 %v166
    %v2195 = vpop.f32.mrf.mxu0
    %v2196 = vadd.f32 %v2182, %v2195
    %v2197 = vpop.f32.mrf.mxu0
    %v2198 = vadd.f32 %v2184, %v2197
    %2199 = vdwg.mxu0
    %2200 = vmatpush.bf16.msra.mxu0 %v1946
    %2201 = vmatpush.bf16.msra.mxu0 %v1938
    %2202 = vmatpush.bf16.msra.mxu0 %v1930
    %2203 = vmatpush.bf16.msra.mxu0 %v1922
    %2204 = vmatpush.bf16.msra.mxu0 %v1914
    %2205 = vmatpush.bf16.msra.mxu0 %v1906
    %2206 = vmatpush.bf16.msra.mxu0 %v1898
    %2207 = vmatpush.bf16.msra.mxu0 %v1890
    %2208 = vmatmul.bf16.gmra.mxu0 %v165
    %v2209 = vpop.f32.mrf.mxu0
    %v2210 = vadd.f32 %v1490, %v2209
    %v2211 = vpop.f32.mrf.mxu0
    %v2212 = vadd.f32 %v1490, %v2211
    %2213 = vdwg.mxu0
    %2214 = vmatpush.bf16.msra.mxu0 %v2010
    %2215 = vmatpush.bf16.msra.mxu0 %v2002
    %2216 = vmatpush.bf16.msra.mxu0 %v1994
    %2217 = vmatpush.bf16.msra.mxu0 %v1986
    %2218 = vmatpush.bf16.msra.mxu0 %v1978
    %2219 = vmatpush.bf16.msra.mxu0 %v1970
    %2220 = vmatpush.bf16.msra.mxu0 %v1962
    %2221 = vmatpush.bf16.msra.mxu0 %v1954
    %2222 = vmatmul.bf16.gmra.mxu0 %v166
    %v2223 = vpop.f32.mrf.mxu0
    %v2224 = vadd.f32 %v2210, %v2223
    %v2225 = vpop.f32.mrf.mxu0
    %v2226 = vadd.f32 %v2212, %v2225
    %2227 = vdwg.mxu0
    %2228 = vmatpush.bf16.msra.mxu0 %v1947
    %2229 = vmatpush.bf16.msra.mxu0 %v1939
    %2230 = vmatpush.bf16.msra.mxu0 %v1931
    %2231 = vmatpush.bf16.msra.mxu0 %v1923
    %2232 = vmatpush.bf16.msra.mxu0 %v1915
    %2233 = vmatpush.bf16.msra.mxu0 %v1907
    %2234 = vmatpush.bf16.msra.mxu0 %v1899
    %2235 = vmatpush.bf16.msra.mxu0 %v1891
    %2236 = vmatmul.bf16.gmra.mxu0 %v165
    %v2237 = vpop.f32.mrf.mxu0
    %v2238 = vadd.f32 %v1491, %v2237
    %v2239 = vpop.f32.mrf.mxu0
    %v2240 = vadd.f32 %v1491, %v2239
    %2241 = vdwg.mxu0
    %2242 = vmatpush.bf16.msra.mxu0 %v2011
    %2243 = vmatpush.bf16.msra.mxu0 %v2003
    %2244 = vmatpush.bf16.msra.mxu0 %v1995
    %2245 = vmatpush.bf16.msra.mxu0 %v1987
    %2246 = vmatpush.bf16.msra.mxu0 %v1979
    %2247 = vmatpush.bf16.msra.mxu0 %v1971
    %2248 = vmatpush.bf16.msra.mxu0 %v1963
    %2249 = vmatpush.bf16.msra.mxu0 %v1955
    %2250 = vmatmul.bf16.gmra.mxu0 %v166
    %v2251 = vpop.f32.mrf.mxu0
    %v2252 = vadd.f32 %v2238, %v2251
    %v2253 = vpop.f32.mrf.mxu0
    %v2254 = vadd.f32 %v2240, %v2253
    %2255 = vdwg.mxu0
    %2256 = vmatpush.bf16.msra.mxu0 %v1948
    %2257 = vmatpush.bf16.msra.mxu0 %v1940
    %2258 = vmatpush.bf16.msra.mxu0 %v1932
    %2259 = vmatpush.bf16.msra.mxu0 %v1924
    %2260 = vmatpush.bf16.msra.mxu0 %v1916
    %2261 = vmatpush.bf16.msra.mxu0 %v1908
    %2262 = vmatpush.bf16.msra.mxu0 %v1900
    %2263 = vmatpush.bf16.msra.mxu0 %v1892
    %2264 = vmatmul.bf16.gmra.mxu0 %v165
    %v2265 = vpop.f32.mrf.mxu0
    %v2266 = vadd.f32 %v1492, %v2265
    %v2267 = vpop.f32.mrf.mxu0
    %v2268 = vadd.f32 %v1492, %v2267
    %2269 = vdwg.mxu0
    %2270 = vmatpush.bf16.msra.mxu0 %v2012
    %2271 = vmatpush.bf16.msra.mxu0 %v2004
    %2272 = vmatpush.bf16.msra.mxu0 %v1996
    %2273 = vmatpush.bf16.msra.mxu0 %v1988
    %2274 = vmatpush.bf16.msra.mxu0 %v1980
    %2275 = vmatpush.bf16.msra.mxu0 %v1972
    %2276 = vmatpush.bf16.msra.mxu0 %v1964
    %2277 = vmatpush.bf16.msra.mxu0 %v1956
    %2278 = vmatmul.bf16.gmra.mxu0 %v166
    %v2279 = vpop.f32.mrf.mxu0
    %v2280 = vadd.f32 %v2266, %v2279
    %v2281 = vpop.f32.mrf.mxu0
    %v2282 = vadd.f32 %v2268, %v2281
    %2283 = vdwg.mxu0
    %2284 = vmatpush.bf16.msra.mxu0 %v1949
    %2285 = vmatpush.bf16.msra.mxu0 %v1941
    %2286 = vmatpush.bf16.msra.mxu0 %v1933
    %2287 = vmatpush.bf16.msra.mxu0 %v1925
    %2288 = vmatpush.bf16.msra.mxu0 %v1917
    %2289 = vmatpush.bf16.msra.mxu0 %v1909
    %2290 = vmatpush.bf16.msra.mxu0 %v1901
    %2291 = vmatpush.bf16.msra.mxu0 %v1893
    %2292 = vmatmul.bf16.gmra.mxu0 %v165
    %v2293 = vpop.f32.mrf.mxu0
    %v2294 = vadd.f32 %v1493, %v2293
    %v2295 = vpop.f32.mrf.mxu0
    %v2296 = vadd.f32 %v1493, %v2295
    %2297 = vdwg.mxu0
    %2298 = vmatpush.bf16.msra.mxu0 %v2013
    %2299 = vmatpush.bf16.msra.mxu0 %v2005
    %2300 = vmatpush.bf16.msra.mxu0 %v1997
    %2301 = vmatpush.bf16.msra.mxu0 %v1989
    %2302 = vmatpush.bf16.msra.mxu0 %v1981
    %2303 = vmatpush.bf16.msra.mxu0 %v1973
    %2304 = vmatpush.bf16.msra.mxu0 %v1965
    %2305 = vmatpush.bf16.msra.mxu0 %v1957
    %2306 = vmatmul.bf16.gmra.mxu0 %v166
    %v2307 = vpop.f32.mrf.mxu0
    %v2308 = vadd.f32 %v2294, %v2307
    %v2309 = vpop.f32.mrf.mxu0
    %v2310 = vadd.f32 %v2296, %v2309
    %2311 = vdwg.mxu0
    %2312 = vmatpush.bf16.msra.mxu0 %v1950
    %2313 = vmatpush.bf16.msra.mxu0 %v1942
    %2314 = vmatpush.bf16.msra.mxu0 %v1934
    %2315 = vmatpush.bf16.msra.mxu0 %v1926
    %2316 = vmatpush.bf16.msra.mxu0 %v1918
    %2317 = vmatpush.bf16.msra.mxu0 %v1910
    %2318 = vmatpush.bf16.msra.mxu0 %v1902
    %2319 = vmatpush.bf16.msra.mxu0 %v1894
    %2320 = vmatmul.bf16.gmra.mxu0 %v165
    %v2321 = vpop.f32.mrf.mxu0
    %v2322 = vadd.f32 %v1494, %v2321
    %v2323 = vpop.f32.mrf.mxu0
    %v2324 = vadd.f32 %v1494, %v2323
    %2325 = vdwg.mxu0
    %2326 = vmatpush.bf16.msra.mxu0 %v2014
    %2327 = vmatpush.bf16.msra.mxu0 %v2006
    %2328 = vmatpush.bf16.msra.mxu0 %v1998
    %2329 = vmatpush.bf16.msra.mxu0 %v1990
    %2330 = vmatpush.bf16.msra.mxu0 %v1982
    %2331 = vmatpush.bf16.msra.mxu0 %v1974
    %2332 = vmatpush.bf16.msra.mxu0 %v1966
    %2333 = vmatpush.bf16.msra.mxu0 %v1958
    %2334 = vmatmul.bf16.gmra.mxu0 %v166
    %v2335 = vpop.f32.mrf.mxu0
    %v2336 = vadd.f32 %v2322, %v2335
    %v2337 = vpop.f32.mrf.mxu0
    %v2338 = vadd.f32 %v2324, %v2337
    %2339 = vdwg.mxu0
    %2340 = vmatpush.bf16.msra.mxu0 %v1951
    %2341 = vmatpush.bf16.msra.mxu0 %v1943
    %2342 = vmatpush.bf16.msra.mxu0 %v1935
    %2343 = vmatpush.bf16.msra.mxu0 %v1927
    %2344 = vmatpush.bf16.msra.mxu0 %v1919
    %2345 = vmatpush.bf16.msra.mxu0 %v1911
    %2346 = vmatpush.bf16.msra.mxu0 %v1903
    %2347 = vmatpush.bf16.msra.mxu0 %v1895
    %2348 = vmatmul.bf16.gmra.mxu0 %v165
    %v2349 = vpop.f32.mrf.mxu0
    %v2350 = vadd.f32 %v1495, %v2349
    %v2351 = vpop.f32.mrf.mxu0
    %v2352 = vadd.f32 %v1495, %v2351
    %2353 = vdwg.mxu0
    %2354 = vmatpush.bf16.msra.mxu0 %v2015
    %2355 = vmatpush.bf16.msra.mxu0 %v2007
    %2356 = vmatpush.bf16.msra.mxu0 %v1999
    %2357 = vmatpush.bf16.msra.mxu0 %v1991
    %2358 = vmatpush.bf16.msra.mxu0 %v1983
    %2359 = vmatpush.bf16.msra.mxu0 %v1975
    %2360 = vmatpush.bf16.msra.mxu0 %v1967
    %2361 = vmatpush.bf16.msra.mxu0 %v1959
    %2362 = vmatmul.bf16.gmra.mxu0 %v166
    %v2363 = vpop.f32.mrf.mxu0
    %v2364 = vadd.f32 %v2350, %v2363
    %v2365 = vpop.f32.mrf.mxu0
    %v2366 = vadd.f32 %v2352, %v2365
    %2367 = vdwg.mxu0
    %v2368 = vmax.f32 %v2168, 0.0
    %v2369 = vmax.f32 %v2196, 0.0
    %v2370 = vmax.f32 %v2224, 0.0
    %v2371 = vmax.f32 %v2252, 0.0
    %v2372 = vmax.f32 %v2280, 0.0
    %v2373 = vmax.f32 %v2308, 0.0
    %v2374 = vmax.f32 %v2336, 0.0
    %v2375 = vmax.f32 %v2364, 0.0
    %v2376 = vmax.f32 %v2170, 0.0
    %v2377 = vmax.f32 %v2198, 0.0
    %v2378 = vmax.f32 %v2226, 0.0
    %v2379 = vmax.f32 %v2254, 0.0
    %v2380 = vmax.f32 %v2282, 0.0
    %v2381 = vmax.f32 %v2310, 0.0
    %v2382 = vmax.f32 %v2338, 0.0
    %v2383 = vmax.f32 %v2366, 0.0
    %v2384 = vpack.c.bf16 %v2376, %v2368
    %v2385 = vpack.c.bf16 %v2377, %v2369
    %v2386 = vpack.c.bf16 %v2378, %v2370
    %v2387 = vpack.c.bf16 %v2379, %v2371
    %v2388 = vpack.c.bf16 %v2380, %v2372
    %v2389 = vpack.c.bf16 %v2381, %v2373
    %v2390 = vpack.c.bf16 %v2382, %v2374
    %v2391 = vpack.c.bf16 %v2383, %v2375
    %v2392 = vld [vmem:[#allocation10 + $0x200] sm:$0xff]
    %v2393 = vld [vmem:[#allocation10 + $0x208] sm:$0xff]
    %v2394 = vld [vmem:[#allocation10 + $0x210] sm:$0xff]
    %v2395 = vld [vmem:[#allocation10 + $0x218] sm:$0xff]
    %v2396 = vld [vmem:[#allocation10 + $0x220] sm:$0xff]
    %v2397 = vld [vmem:[#allocation10 + $0x228] sm:$0xff]
    %v2398 = vld [vmem:[#allocation10 + $0x230] sm:$0xff]
    %v2399 = vld [vmem:[#allocation10 + $0x238] sm:$0xff]
    %v2400 = vld [vmem:[#allocation10 + $0x240] sm:$0xff]
    %v2401 = vld [vmem:[#allocation10 + $0x248] sm:$0xff]
    %v2402 = vld [vmem:[#allocation10 + $0x250] sm:$0xff]
    %v2403 = vld [vmem:[#allocation10 + $0x258] sm:$0xff]
    %v2404 = vld [vmem:[#allocation10 + $0x260] sm:$0xff]
    %v2405 = vld [vmem:[#allocation10 + $0x268] sm:$0xff]
    %v2406 = vld [vmem:[#allocation10 + $0x270] sm:$0xff]
    %v2407 = vld [vmem:[#allocation10 + $0x278] sm:$0xff]
    %v2408 = vld [vmem:[#allocation10 + $0x280] sm:$0xff]
    %v2409 = vld [vmem:[#allocation10 + $0x288] sm:$0xff]
    %v2410 = vld [vmem:[#allocation10 + $0x290] sm:$0xff]
    %v2411 = vld [vmem:[#allocation10 + $0x298] sm:$0xff]
    %v2412 = vld [vmem:[#allocation10 + $0x2a0] sm:$0xff]
    %v2413 = vld [vmem:[#allocation10 + $0x2a8] sm:$0xff]
    %v2414 = vld [vmem:[#allocation10 + $0x2b0] sm:$0xff]
    %v2415 = vld [vmem:[#allocation10 + $0x2b8] sm:$0xff]
    %v2416 = vld [vmem:[#allocation10 + $0x2c0] sm:$0xff]
    %v2417 = vld [vmem:[#allocation10 + $0x2c8] sm:$0xff]
    %v2418 = vld [vmem:[#allocation10 + $0x2d0] sm:$0xff]
    %v2419 = vld [vmem:[#allocation10 + $0x2d8] sm:$0xff]
    %v2420 = vld [vmem:[#allocation10 + $0x2e0] sm:$0xff]
    %v2421 = vld [vmem:[#allocation10 + $0x2e8] sm:$0xff]
    %v2422 = vld [vmem:[#allocation10 + $0x2f0] sm:$0xff]
    %v2423 = vld [vmem:[#allocation10 + $0x2f8] sm:$0xff]
    %v2424 = vld [vmem:[#allocation10 + $0x300] sm:$0xff]
    %v2425 = vld [vmem:[#allocation10 + $0x308] sm:$0xff]
    %v2426 = vld [vmem:[#allocation10 + $0x310] sm:$0xff]
    %v2427 = vld [vmem:[#allocation10 + $0x318] sm:$0xff]
    %v2428 = vld [vmem:[#allocation10 + $0x320] sm:$0xff]
    %v2429 = vld [vmem:[#allocation10 + $0x328] sm:$0xff]
    %v2430 = vld [vmem:[#allocation10 + $0x330] sm:$0xff]
    %v2431 = vld [vmem:[#allocation10 + $0x338] sm:$0xff]
    %v2432 = vld [vmem:[#allocation10 + $0x340] sm:$0xff]
    %v2433 = vld [vmem:[#allocation10 + $0x348] sm:$0xff]
    %v2434 = vld [vmem:[#allocation10 + $0x350] sm:$0xff]
    %v2435 = vld [vmem:[#allocation10 + $0x358] sm:$0xff]
    %v2436 = vld [vmem:[#allocation10 + $0x360] sm:$0xff]
    %v2437 = vld [vmem:[#allocation10 + $0x368] sm:$0xff]
    %v2438 = vld [vmem:[#allocation10 + $0x370] sm:$0xff]
    %v2439 = vld [vmem:[#allocation10 + $0x378] sm:$0xff]
    %v2440 = vld [vmem:[#allocation10 + $0x380] sm:$0xff]
    %v2441 = vld [vmem:[#allocation10 + $0x388] sm:$0xff]
    %v2442 = vld [vmem:[#allocation10 + $0x390] sm:$0xff]
    %v2443 = vld [vmem:[#allocation10 + $0x398] sm:$0xff]
    %v2444 = vld [vmem:[#allocation10 + $0x3a0] sm:$0xff]
    %v2445 = vld [vmem:[#allocation10 + $0x3a8] sm:$0xff]
    %v2446 = vld [vmem:[#allocation10 + $0x3b0] sm:$0xff]
    %v2447 = vld [vmem:[#allocation10 + $0x3b8] sm:$0xff]
    %v2448 = vld [vmem:[#allocation10 + $0x3c0] sm:$0xff]
    %v2449 = vld [vmem:[#allocation10 + $0x3c8] sm:$0xff]
    %v2450 = vld [vmem:[#allocation10 + $0x3d0] sm:$0xff]
    %v2451 = vld [vmem:[#allocation10 + $0x3d8] sm:$0xff]
    %v2452 = vld [vmem:[#allocation10 + $0x3e0] sm:$0xff]
    %v2453 = vld [vmem:[#allocation10 + $0x3e8] sm:$0xff]
    %v2454 = vld [vmem:[#allocation10 + $0x3f0] sm:$0xff]
    %v2455 = vld [vmem:[#allocation10 + $0x3f8] sm:$0xff]
    %v2456 = vld [vmem:[#allocation10 + $0x400] sm:$0xff]
    %v2457 = vld [vmem:[#allocation10 + $0x408] sm:$0xff]
    %v2458 = vld [vmem:[#allocation10 + $0x410] sm:$0xff]
    %v2459 = vld [vmem:[#allocation10 + $0x418] sm:$0xff]
    %v2460 = vld [vmem:[#allocation10 + $0x420] sm:$0xff]
    %v2461 = vld [vmem:[#allocation10 + $0x428] sm:$0xff]
    %v2462 = vld [vmem:[#allocation10 + $0x430] sm:$0xff]
    %v2463 = vld [vmem:[#allocation10 + $0x438] sm:$0xff]
    %v2464 = vld [vmem:[#allocation10 + $0x440] sm:$0xff]
    %v2465 = vld [vmem:[#allocation10 + $0x448] sm:$0xff]
    %v2466 = vld [vmem:[#allocation10 + $0x450] sm:$0xff]
    %v2467 = vld [vmem:[#allocation10 + $0x458] sm:$0xff]
    %v2468 = vld [vmem:[#allocation10 + $0x460] sm:$0xff]
    %v2469 = vld [vmem:[#allocation10 + $0x468] sm:$0xff]
    %v2470 = vld [vmem:[#allocation10 + $0x470] sm:$0xff]
    %v2471 = vld [vmem:[#allocation10 + $0x478] sm:$0xff]
    %v2472 = vld [vmem:[#allocation10 + $0x480] sm:$0xff]
    %v2473 = vld [vmem:[#allocation10 + $0x488] sm:$0xff]
    %v2474 = vld [vmem:[#allocation10 + $0x490] sm:$0xff]
    %v2475 = vld [vmem:[#allocation10 + $0x498] sm:$0xff]
    %v2476 = vld [vmem:[#allocation10 + $0x4a0] sm:$0xff]
    %v2477 = vld [vmem:[#allocation10 + $0x4a8] sm:$0xff]
    %v2478 = vld [vmem:[#allocation10 + $0x4b0] sm:$0xff]
    %v2479 = vld [vmem:[#allocation10 + $0x4b8] sm:$0xff]
    %v2480 = vld [vmem:[#allocation10 + $0x4c0] sm:$0xff]
    %v2481 = vld [vmem:[#allocation10 + $0x4c8] sm:$0xff]
    %v2482 = vld [vmem:[#allocation10 + $0x4d0] sm:$0xff]
    %v2483 = vld [vmem:[#allocation10 + $0x4d8] sm:$0xff]
    %v2484 = vld [vmem:[#allocation10 + $0x4e0] sm:$0xff]
    %v2485 = vld [vmem:[#allocation10 + $0x4e8] sm:$0xff]
    %v2486 = vld [vmem:[#allocation10 + $0x4f0] sm:$0xff]
    %v2487 = vld [vmem:[#allocation10 + $0x4f8] sm:$0xff]
    %v2488 = vld [vmem:[#allocation10 + $0x500] sm:$0xff]
    %v2489 = vld [vmem:[#allocation10 + $0x508] sm:$0xff]
    %v2490 = vld [vmem:[#allocation10 + $0x510] sm:$0xff]
    %v2491 = vld [vmem:[#allocation10 + $0x518] sm:$0xff]
    %v2492 = vld [vmem:[#allocation10 + $0x520] sm:$0xff]
    %v2493 = vld [vmem:[#allocation10 + $0x528] sm:$0xff]
    %v2494 = vld [vmem:[#allocation10 + $0x530] sm:$0xff]
    %v2495 = vld [vmem:[#allocation10 + $0x538] sm:$0xff]
    %v2496 = vld [vmem:[#allocation10 + $0x540] sm:$0xff]
    %v2497 = vld [vmem:[#allocation10 + $0x548] sm:$0xff]
    %v2498 = vld [vmem:[#allocation10 + $0x550] sm:$0xff]
    %v2499 = vld [vmem:[#allocation10 + $0x558] sm:$0xff]
    %v2500 = vld [vmem:[#allocation10 + $0x560] sm:$0xff]
    %v2501 = vld [vmem:[#allocation10 + $0x568] sm:$0xff]
    %v2502 = vld [vmem:[#allocation10 + $0x570] sm:$0xff]
    %v2503 = vld [vmem:[#allocation10 + $0x578] sm:$0xff]
    %v2504 = vld [vmem:[#allocation10 + $0x580] sm:$0xff]
    %v2505 = vld [vmem:[#allocation10 + $0x588] sm:$0xff]
    %v2506 = vld [vmem:[#allocation10 + $0x590] sm:$0xff]
    %v2507 = vld [vmem:[#allocation10 + $0x598] sm:$0xff]
    %v2508 = vld [vmem:[#allocation10 + $0x5a0] sm:$0xff]
    %v2509 = vld [vmem:[#allocation10 + $0x5a8] sm:$0xff]
    %v2510 = vld [vmem:[#allocation10 + $0x5b0] sm:$0xff]
    %v2511 = vld [vmem:[#allocation10 + $0x5b8] sm:$0xff]
    %v2512 = vld [vmem:[#allocation10 + $0x5c0] sm:$0xff]
    %v2513 = vld [vmem:[#allocation10 + $0x5c8] sm:$0xff]
    %v2514 = vld [vmem:[#allocation10 + $0x5d0] sm:$0xff]
    %v2515 = vld [vmem:[#allocation10 + $0x5d8] sm:$0xff]
    %v2516 = vld [vmem:[#allocation10 + $0x5e0] sm:$0xff]
    %v2517 = vld [vmem:[#allocation10 + $0x5e8] sm:$0xff]
    %v2518 = vld [vmem:[#allocation10 + $0x5f0] sm:$0xff]
    %v2519 = vld [vmem:[#allocation10 + $0x5f8] sm:$0xff]
    %s2520 = scalar_lea.vmem [#allocation14], 4
    %v2521 = vld [vmem:[%s2520] ss:$8 sm:$0x3]
    %v2523 = vperm.slane %v2521, 0
    %v2524 = vperm.slane %v2521, 1
    %v2655 = vunpack.c.l.b16 %v2392
    %v2656 = vunpack.c.h.b16 %v2392
    %v2657 = vunpack.c.l.b16 %v2393
    %v2658 = vunpack.c.h.b16 %v2393
    %v2659 = vunpack.c.l.b16 %v2394
    %v2660 = vunpack.c.h.b16 %v2394
    %v2661 = vunpack.c.l.b16 %v2395
    %v2662 = vunpack.c.h.b16 %v2395
    %v2663 = vunpack.c.l.b16 %v2396
    %v2664 = vunpack.c.h.b16 %v2396
    %v2665 = vunpack.c.l.b16 %v2397
    %v2666 = vunpack.c.h.b16 %v2397
    %v2667 = vunpack.c.l.b16 %v2398
    %v2668 = vunpack.c.h.b16 %v2398
    %v2669 = vunpack.c.l.b16 %v2399
    %v2670 = vunpack.c.h.b16 %v2399
    %v2671 = vunpack.c.l.b16 %v2400
    %v2672 = vunpack.c.h.b16 %v2400
    %v2673 = vunpack.c.l.b16 %v2401
    %v2674 = vunpack.c.h.b16 %v2401
    %v2675 = vunpack.c.l.b16 %v2402
    %v2676 = vunpack.c.h.b16 %v2402
    %v2677 = vunpack.c.l.b16 %v2403
    %v2678 = vunpack.c.h.b16 %v2403
    %v2679 = vunpack.c.l.b16 %v2404
    %v2680 = vunpack.c.h.b16 %v2404
    %v2681 = vunpack.c.l.b16 %v2405
    %v2682 = vunpack.c.h.b16 %v2405
    %v2683 = vunpack.c.l.b16 %v2406
    %v2684 = vunpack.c.h.b16 %v2406
    %v2685 = vunpack.c.l.b16 %v2407
    %v2686 = vunpack.c.h.b16 %v2407
    %v2687 = vunpack.c.l.b16 %v2408
    %v2688 = vunpack.c.h.b16 %v2408
    %v2689 = vunpack.c.l.b16 %v2409
    %v2690 = vunpack.c.h.b16 %v2409
    %v2691 = vunpack.c.l.b16 %v2410
    %v2692 = vunpack.c.h.b16 %v2410
    %v2693 = vunpack.c.l.b16 %v2411
    %v2694 = vunpack.c.h.b16 %v2411
    %v2695 = vunpack.c.l.b16 %v2412
    %v2696 = vunpack.c.h.b16 %v2412
    %v2697 = vunpack.c.l.b16 %v2413
    %v2698 = vunpack.c.h.b16 %v2413
    %v2699 = vunpack.c.l.b16 %v2414
    %v2700 = vunpack.c.h.b16 %v2414
    %v2701 = vunpack.c.l.b16 %v2415
    %v2702 = vunpack.c.h.b16 %v2415
    %v2703 = vunpack.c.l.b16 %v2416
    %v2704 = vunpack.c.h.b16 %v2416
    %v2705 = vunpack.c.l.b16 %v2417
    %v2706 = vunpack.c.h.b16 %v2417
    %v2707 = vunpack.c.l.b16 %v2418
    %v2708 = vunpack.c.h.b16 %v2418
    %v2709 = vunpack.c.l.b16 %v2419
    %v2710 = vunpack.c.h.b16 %v2419
    %v2711 = vunpack.c.l.b16 %v2420
    %v2712 = vunpack.c.h.b16 %v2420
    %v2713 = vunpack.c.l.b16 %v2421
    %v2714 = vunpack.c.h.b16 %v2421
    %v2715 = vunpack.c.l.b16 %v2422
    %v2716 = vunpack.c.h.b16 %v2422
    %v2717 = vunpack.c.l.b16 %v2423
    %v2718 = vunpack.c.h.b16 %v2423
    %v2719 = vunpack.c.l.b16 %v2424
    %v2720 = vunpack.c.h.b16 %v2424
    %v2721 = vunpack.c.l.b16 %v2425
    %v2722 = vunpack.c.h.b16 %v2425
    %v2723 = vunpack.c.l.b16 %v2426
    %v2724 = vunpack.c.h.b16 %v2426
    %v2725 = vunpack.c.l.b16 %v2427
    %v2726 = vunpack.c.h.b16 %v2427
    %v2727 = vunpack.c.l.b16 %v2428
    %v2728 = vunpack.c.h.b16 %v2428
    %v2729 = vunpack.c.l.b16 %v2429
    %v2730 = vunpack.c.h.b16 %v2429
    %v2731 = vunpack.c.l.b16 %v2430
    %v2732 = vunpack.c.h.b16 %v2430
    %v2733 = vunpack.c.l.b16 %v2431
    %v2734 = vunpack.c.h.b16 %v2431
    %v2735 = vunpack.c.l.b16 %v2432
    %v2736 = vunpack.c.h.b16 %v2432
    %v2737 = vunpack.c.l.b16 %v2433
    %v2738 = vunpack.c.h.b16 %v2433
    %v2739 = vunpack.c.l.b16 %v2434
    %v2740 = vunpack.c.h.b16 %v2434
    %v2741 = vunpack.c.l.b16 %v2435
    %v2742 = vunpack.c.h.b16 %v2435
    %v2743 = vunpack.c.l.b16 %v2436
    %v2744 = vunpack.c.h.b16 %v2436
    %v2745 = vunpack.c.l.b16 %v2437
    %v2746 = vunpack.c.h.b16 %v2437
    %v2747 = vunpack.c.l.b16 %v2438
    %v2748 = vunpack.c.h.b16 %v2438
    %v2749 = vunpack.c.l.b16 %v2439
    %v2750 = vunpack.c.h.b16 %v2439
    %v2751 = vunpack.c.l.b16 %v2440
    %v2752 = vunpack.c.h.b16 %v2440
    %v2753 = vunpack.c.l.b16 %v2441
    %v2754 = vunpack.c.h.b16 %v2441
    %v2755 = vunpack.c.l.b16 %v2442
    %v2756 = vunpack.c.h.b16 %v2442
    %v2757 = vunpack.c.l.b16 %v2443
    %v2758 = vunpack.c.h.b16 %v2443
    %v2759 = vunpack.c.l.b16 %v2444
    %v2760 = vunpack.c.h.b16 %v2444
    %v2761 = vunpack.c.l.b16 %v2445
    %v2762 = vunpack.c.h.b16 %v2445
    %v2763 = vunpack.c.l.b16 %v2446
    %v2764 = vunpack.c.h.b16 %v2446
    %v2765 = vunpack.c.l.b16 %v2447
    %v2766 = vunpack.c.h.b16 %v2447
    %v2767 = vunpack.c.l.b16 %v2448
    %v2768 = vunpack.c.h.b16 %v2448
    %v2769 = vunpack.c.l.b16 %v2449
    %v2770 = vunpack.c.h.b16 %v2449
    %v2771 = vunpack.c.l.b16 %v2450
    %v2772 = vunpack.c.h.b16 %v2450
    %v2773 = vunpack.c.l.b16 %v2451
    %v2774 = vunpack.c.h.b16 %v2451
    %v2775 = vunpack.c.l.b16 %v2452
    %v2776 = vunpack.c.h.b16 %v2452
    %v2777 = vunpack.c.l.b16 %v2453
    %v2778 = vunpack.c.h.b16 %v2453
    %v2779 = vunpack.c.l.b16 %v2454
    %v2780 = vunpack.c.h.b16 %v2454
    %v2781 = vunpack.c.l.b16 %v2455
    %v2782 = vunpack.c.h.b16 %v2455
    %v2783 = vunpack.c.l.b16 %v2456
    %v2784 = vunpack.c.h.b16 %v2456
    %v2785 = vunpack.c.l.b16 %v2457
    %v2786 = vunpack.c.h.b16 %v2457
    %v2787 = vunpack.c.l.b16 %v2458
    %v2788 = vunpack.c.h.b16 %v2458
    %v2789 = vunpack.c.l.b16 %v2459
    %v2790 = vunpack.c.h.b16 %v2459
    %v2791 = vunpack.c.l.b16 %v2460
    %v2792 = vunpack.c.h.b16 %v2460
    %v2793 = vunpack.c.l.b16 %v2461
    %v2794 = vunpack.c.h.b16 %v2461
    %v2795 = vunpack.c.l.b16 %v2462
    %v2796 = vunpack.c.h.b16 %v2462
    %v2797 = vunpack.c.l.b16 %v2463
    %v2798 = vunpack.c.h.b16 %v2463
    %v2799 = vunpack.c.l.b16 %v2464
    %v2800 = vunpack.c.h.b16 %v2464
    %v2801 = vunpack.c.l.b16 %v2465
    %v2802 = vunpack.c.h.b16 %v2465
    %v2803 = vunpack.c.l.b16 %v2466
    %v2804 = vunpack.c.h.b16 %v2466
    %v2805 = vunpack.c.l.b16 %v2467
    %v2806 = vunpack.c.h.b16 %v2467
    %v2807 = vunpack.c.l.b16 %v2468
    %v2808 = vunpack.c.h.b16 %v2468
    %v2809 = vunpack.c.l.b16 %v2469
    %v2810 = vunpack.c.h.b16 %v2469
    %v2811 = vunpack.c.l.b16 %v2470
    %v2812 = vunpack.c.h.b16 %v2470
    %v2813 = vunpack.c.l.b16 %v2471
    %v2814 = vunpack.c.h.b16 %v2471
    %v2815 = vunpack.c.l.b16 %v2472
    %v2816 = vunpack.c.h.b16 %v2472
    %v2817 = vunpack.c.l.b16 %v2473
    %v2818 = vunpack.c.h.b16 %v2473
    %v2819 = vunpack.c.l.b16 %v2474
    %v2820 = vunpack.c.h.b16 %v2474
    %v2821 = vunpack.c.l.b16 %v2475
    %v2822 = vunpack.c.h.b16 %v2475
    %v2823 = vunpack.c.l.b16 %v2476
    %v2824 = vunpack.c.h.b16 %v2476
    %v2825 = vunpack.c.l.b16 %v2477
    %v2826 = vunpack.c.h.b16 %v2477
    %v2827 = vunpack.c.l.b16 %v2478
    %v2828 = vunpack.c.h.b16 %v2478
    %v2829 = vunpack.c.l.b16 %v2479
    %v2830 = vunpack.c.h.b16 %v2479
    %v2831 = vunpack.c.l.b16 %v2480
    %v2832 = vunpack.c.h.b16 %v2480
    %v2833 = vunpack.c.l.b16 %v2481
    %v2834 = vunpack.c.h.b16 %v2481
    %v2835 = vunpack.c.l.b16 %v2482
    %v2836 = vunpack.c.h.b16 %v2482
    %v2837 = vunpack.c.l.b16 %v2483
    %v2838 = vunpack.c.h.b16 %v2483
    %v2839 = vunpack.c.l.b16 %v2484
    %v2840 = vunpack.c.h.b16 %v2484
    %v2841 = vunpack.c.l.b16 %v2485
    %v2842 = vunpack.c.h.b16 %v2485
    %v2843 = vunpack.c.l.b16 %v2486
    %v2844 = vunpack.c.h.b16 %v2486
    %v2845 = vunpack.c.l.b16 %v2487
    %v2846 = vunpack.c.h.b16 %v2487
    %v2847 = vunpack.c.l.b16 %v2488
    %v2848 = vunpack.c.h.b16 %v2488
    %v2849 = vunpack.c.l.b16 %v2489
    %v2850 = vunpack.c.h.b16 %v2489
    %v2851 = vunpack.c.l.b16 %v2490
    %v2852 = vunpack.c.h.b16 %v2490
    %v2853 = vunpack.c.l.b16 %v2491
    %v2854 = vunpack.c.h.b16 %v2491
    %v2855 = vunpack.c.l.b16 %v2492
    %v2856 = vunpack.c.h.b16 %v2492
    %v2857 = vunpack.c.l.b16 %v2493
    %v2858 = vunpack.c.h.b16 %v2493
    %v2859 = vunpack.c.l.b16 %v2494
    %v2860 = vunpack.c.h.b16 %v2494
    %v2861 = vunpack.c.l.b16 %v2495
    %v2862 = vunpack.c.h.b16 %v2495
    %v2863 = vunpack.c.l.b16 %v2496
    %v2864 = vunpack.c.h.b16 %v2496
    %v2865 = vunpack.c.l.b16 %v2497
    %v2866 = vunpack.c.h.b16 %v2497
    %v2867 = vunpack.c.l.b16 %v2498
    %v2868 = vunpack.c.h.b16 %v2498
    %v2869 = vunpack.c.l.b16 %v2499
    %v2870 = vunpack.c.h.b16 %v2499
    %v2871 = vunpack.c.l.b16 %v2500
    %v2872 = vunpack.c.h.b16 %v2500
    %v2873 = vunpack.c.l.b16 %v2501
    %v2874 = vunpack.c.h.b16 %v2501
    %v2875 = vunpack.c.l.b16 %v2502
    %v2876 = vunpack.c.h.b16 %v2502
    %v2877 = vunpack.c.l.b16 %v2503
    %v2878 = vunpack.c.h.b16 %v2503
    %v2879 = vunpack.c.l.b16 %v2504
    %v2880 = vunpack.c.h.b16 %v2504
    %v2881 = vunpack.c.l.b16 %v2505
    %v2882 = vunpack.c.h.b16 %v2505
    %v2883 = vunpack.c.l.b16 %v2506
    %v2884 = vunpack.c.h.b16 %v2506
    %v2885 = vunpack.c.l.b16 %v2507
    %v2886 = vunpack.c.h.b16 %v2507
    %v2887 = vunpack.c.l.b16 %v2508
    %v2888 = vunpack.c.h.b16 %v2508
    %v2889 = vunpack.c.l.b16 %v2509
    %v2890 = vunpack.c.h.b16 %v2509
    %v2891 = vunpack.c.l.b16 %v2510
    %v2892 = vunpack.c.h.b16 %v2510
    %v2893 = vunpack.c.l.b16 %v2511
    %v2894 = vunpack.c.h.b16 %v2511
    %v2895 = vunpack.c.l.b16 %v2512
    %v2896 = vunpack.c.h.b16 %v2512
    %v2897 = vunpack.c.l.b16 %v2513
    %v2898 = vunpack.c.h.b16 %v2513
    %v2899 = vunpack.c.l.b16 %v2514
    %v2900 = vunpack.c.h.b16 %v2514
    %v2901 = vunpack.c.l.b16 %v2515
    %v2902 = vunpack.c.h.b16 %v2515
    %v2903 = vunpack.c.l.b16 %v2516
    %v2904 = vunpack.c.h.b16 %v2516
    %v2905 = vunpack.c.l.b16 %v2517
    %v2906 = vunpack.c.h.b16 %v2517
    %v2907 = vunpack.c.l.b16 %v2518
    %v2908 = vunpack.c.h.b16 %v2518
    %v2909 = vunpack.c.l.b16 %v2519
    %v2910 = vunpack.c.h.b16 %v2519
    %v2911 = vpack.c.b16 %v2657, %v2655
    %v2912 = vpack.c.b16 %v2658, %v2656
    %v2913 = vpack.c.b16 %v2661, %v2659
    %v2914 = vpack.c.b16 %v2662, %v2660
    %v2915 = vpack.c.b16 %v2665, %v2663
    %v2916 = vpack.c.b16 %v2666, %v2664
    %v2917 = vpack.c.b16 %v2669, %v2667
    %v2918 = vpack.c.b16 %v2670, %v2668
    %v2919 = vpack.c.b16 %v2673, %v2671
    %v2920 = vpack.c.b16 %v2674, %v2672
    %v2921 = vpack.c.b16 %v2677, %v2675
    %v2922 = vpack.c.b16 %v2678, %v2676
    %v2923 = vpack.c.b16 %v2681, %v2679
    %v2924 = vpack.c.b16 %v2682, %v2680
    %v2925 = vpack.c.b16 %v2685, %v2683
    %v2926 = vpack.c.b16 %v2686, %v2684
    %v2927 = vpack.c.b16 %v2689, %v2687
    %v2928 = vpack.c.b16 %v2690, %v2688
    %v2929 = vpack.c.b16 %v2693, %v2691
    %v2930 = vpack.c.b16 %v2694, %v2692
    %v2931 = vpack.c.b16 %v2697, %v2695
    %v2932 = vpack.c.b16 %v2698, %v2696
    %v2933 = vpack.c.b16 %v2701, %v2699
    %v2934 = vpack.c.b16 %v2702, %v2700
    %v2935 = vpack.c.b16 %v2705, %v2703
    %v2936 = vpack.c.b16 %v2706, %v2704
    %v2937 = vpack.c.b16 %v2709, %v2707
    %v2938 = vpack.c.b16 %v2710, %v2708
    %v2939 = vpack.c.b16 %v2713, %v2711
    %v2940 = vpack.c.b16 %v2714, %v2712
    %v2941 = vpack.c.b16 %v2717, %v2715
    %v2942 = vpack.c.b16 %v2718, %v2716
    %v2943 = vpack.c.b16 %v2721, %v2719
    %v2944 = vpack.c.b16 %v2722, %v2720
    %v2945 = vpack.c.b16 %v2725, %v2723
    %v2946 = vpack.c.b16 %v2726, %v2724
    %v2947 = vpack.c.b16 %v2729, %v2727
    %v2948 = vpack.c.b16 %v2730, %v2728
    %v2949 = vpack.c.b16 %v2733, %v2731
    %v2950 = vpack.c.b16 %v2734, %v2732
    %v2951 = vpack.c.b16 %v2737, %v2735
    %v2952 = vpack.c.b16 %v2738, %v2736
    %v2953 = vpack.c.b16 %v2741, %v2739
    %v2954 = vpack.c.b16 %v2742, %v2740
    %v2955 = vpack.c.b16 %v2745, %v2743
    %v2956 = vpack.c.b16 %v2746, %v2744
    %v2957 = vpack.c.b16 %v2749, %v2747
    %v2958 = vpack.c.b16 %v2750, %v2748
    %v2959 = vpack.c.b16 %v2753, %v2751
    %v2960 = vpack.c.b16 %v2754, %v2752
    %v2961 = vpack.c.b16 %v2757, %v2755
    %v2962 = vpack.c.b16 %v2758, %v2756
    %v2963 = vpack.c.b16 %v2761, %v2759
    %v2964 = vpack.c.b16 %v2762, %v2760
    %v2965 = vpack.c.b16 %v2765, %v2763
    %v2966 = vpack.c.b16 %v2766, %v2764
    %v2967 = vpack.c.b16 %v2769, %v2767
    %v2968 = vpack.c.b16 %v2770, %v2768
    %v2969 = vpack.c.b16 %v2773, %v2771
    %v2970 = vpack.c.b16 %v2774, %v2772
    %v2971 = vpack.c.b16 %v2777, %v2775
    %v2972 = vpack.c.b16 %v2778, %v2776
    %v2973 = vpack.c.b16 %v2781, %v2779
    %v2974 = vpack.c.b16 %v2782, %v2780
    %v2975 = vpack.c.b16 %v2785, %v2783
    %v2976 = vpack.c.b16 %v2786, %v2784
    %v2977 = vpack.c.b16 %v2789, %v2787
    %v2978 = vpack.c.b16 %v2790, %v2788
    %v2979 = vpack.c.b16 %v2793, %v2791
    %v2980 = vpack.c.b16 %v2794, %v2792
    %v2981 = vpack.c.b16 %v2797, %v2795
    %v2982 = vpack.c.b16 %v2798, %v2796
    %v2983 = vpack.c.b16 %v2801, %v2799
    %v2984 = vpack.c.b16 %v2802, %v2800
    %v2985 = vpack.c.b16 %v2805, %v2803
    %v2986 = vpack.c.b16 %v2806, %v2804
    %v2987 = vpack.c.b16 %v2809, %v2807
    %v2988 = vpack.c.b16 %v2810, %v2808
    %v2989 = vpack.c.b16 %v2813, %v2811
    %v2990 = vpack.c.b16 %v2814, %v2812
    %v2991 = vpack.c.b16 %v2817, %v2815
    %v2992 = vpack.c.b16 %v2818, %v2816
    %v2993 = vpack.c.b16 %v2821, %v2819
    %v2994 = vpack.c.b16 %v2822, %v2820
    %v2995 = vpack.c.b16 %v2825, %v2823
    %v2996 = vpack.c.b16 %v2826, %v2824
    %v2997 = vpack.c.b16 %v2829, %v2827
    %v2998 = vpack.c.b16 %v2830, %v2828
    %v2999 = vpack.c.b16 %v2833, %v2831
    %v3000 = vpack.c.b16 %v2834, %v2832
    %v3001 = vpack.c.b16 %v2837, %v2835
    %v3002 = vpack.c.b16 %v2838, %v2836
    %v3003 = vpack.c.b16 %v2841, %v2839
    %v3004 = vpack.c.b16 %v2842, %v2840
    %v3005 = vpack.c.b16 %v2845, %v2843
    %v3006 = vpack.c.b16 %v2846, %v2844
    %v3007 = vpack.c.b16 %v2849, %v2847
    %v3008 = vpack.c.b16 %v2850, %v2848
    %v3009 = vpack.c.b16 %v2853, %v2851
    %v3010 = vpack.c.b16 %v2854, %v2852
    %v3011 = vpack.c.b16 %v2857, %v2855
    %v3012 = vpack.c.b16 %v2858, %v2856
    %v3013 = vpack.c.b16 %v2861, %v2859
    %v3014 = vpack.c.b16 %v2862, %v2860
    %v3015 = vpack.c.b16 %v2865, %v2863
    %v3016 = vpack.c.b16 %v2866, %v2864
    %v3017 = vpack.c.b16 %v2869, %v2867
    %v3018 = vpack.c.b16 %v2870, %v2868
    %v3019 = vpack.c.b16 %v2873, %v2871
    %v3020 = vpack.c.b16 %v2874, %v2872
    %v3021 = vpack.c.b16 %v2877, %v2875
    %v3022 = vpack.c.b16 %v2878, %v2876
    %v3023 = vpack.c.b16 %v2881, %v2879
    %v3024 = vpack.c.b16 %v2882, %v2880
    %v3025 = vpack.c.b16 %v2885, %v2883
    %v3026 = vpack.c.b16 %v2886, %v2884
    %v3027 = vpack.c.b16 %v2889, %v2887
    %v3028 = vpack.c.b16 %v2890, %v2888
    %v3029 = vpack.c.b16 %v2893, %v2891
    %v3030 = vpack.c.b16 %v2894, %v2892
    %v3031 = vpack.c.b16 %v2897, %v2895
    %v3032 = vpack.c.b16 %v2898, %v2896
    %v3033 = vpack.c.b16 %v2901, %v2899
    %v3034 = vpack.c.b16 %v2902, %v2900
    %v3035 = vpack.c.b16 %v2905, %v2903
    %v3036 = vpack.c.b16 %v2906, %v2904
    %v3037 = vpack.c.b16 %v2909, %v2907
    %v3038 = vpack.c.b16 %v2910, %v2908
    %3167 = vmatpush.bf16.msra.mxu0 %v2925
    %3168 = vmatpush.bf16.msra.mxu0 %v2923
    %3169 = vmatpush.bf16.msra.mxu0 %v2921
    %3170 = vmatpush.bf16.msra.mxu0 %v2919
    %3171 = vmatpush.bf16.msra.mxu0 %v2917
    %3172 = vmatpush.bf16.msra.mxu0 %v2915
    %3173 = vmatpush.bf16.msra.mxu0 %v2913
    %3174 = vmatpush.bf16.msra.mxu0 %v2911
    %3175 = vmatmul.bf16.gmra.mxu0 %v2384
    %v3176 = vpop.f32.mrf.mxu0
    %v3177 = vadd.f32 %v2523, %v3176
    %v3178 = vpop.f32.mrf.mxu0
    %v3179 = vadd.f32 %v2523, %v3178
    %3180 = vdwg.mxu0
    %3181 = vmatpush.bf16.msra.mxu0 %v2941
    %3182 = vmatpush.bf16.msra.mxu0 %v2939
    %3183 = vmatpush.bf16.msra.mxu0 %v2937
    %3184 = vmatpush.bf16.msra.mxu0 %v2935
    %3185 = vmatpush.bf16.msra.mxu0 %v2933
    %3186 = vmatpush.bf16.msra.mxu0 %v2931
    %3187 = vmatpush.bf16.msra.mxu0 %v2929
    %3188 = vmatpush.bf16.msra.mxu0 %v2927
    %3189 = vmatmul.bf16.gmra.mxu0 %v2385
    %v3190 = vpop.f32.mrf.mxu0
    %v3191 = vadd.f32 %v3177, %v3190
    %v3192 = vpop.f32.mrf.mxu0
    %v3193 = vadd.f32 %v3179, %v3192
    %3194 = vdwg.mxu0
    %3195 = vmatpush.bf16.msra.mxu0 %v2957
    %3196 = vmatpush.bf16.msra.mxu0 %v2955
    %3197 = vmatpush.bf16.msra.mxu0 %v2953
    %3198 = vmatpush.bf16.msra.mxu0 %v2951
    %3199 = vmatpush.bf16.msra.mxu0 %v2949
    %3200 = vmatpush.bf16.msra.mxu0 %v2947
    %3201 = vmatpush.bf16.msra.mxu0 %v2945
    %3202 = vmatpush.bf16.msra.mxu0 %v2943
    %3203 = vmatmul.bf16.gmra.mxu0 %v2386
    %v3204 = vpop.f32.mrf.mxu0
    %v3205 = vadd.f32 %v3191, %v3204
    %v3206 = vpop.f32.mrf.mxu0
    %v3207 = vadd.f32 %v3193, %v3206
    %3208 = vdwg.mxu0
    %3209 = vmatpush.bf16.msra.mxu0 %v2973
    %3210 = vmatpush.bf16.msra.mxu0 %v2971
    %3211 = vmatpush.bf16.msra.mxu0 %v2969
    %3212 = vmatpush.bf16.msra.mxu0 %v2967
    %3213 = vmatpush.bf16.msra.mxu0 %v2965
    %3214 = vmatpush.bf16.msra.mxu0 %v2963
    %3215 = vmatpush.bf16.msra.mxu0 %v2961
    %3216 = vmatpush.bf16.msra.mxu0 %v2959
    %3217 = vmatmul.bf16.gmra.mxu0 %v2387
    %v3218 = vpop.f32.mrf.mxu0
    %v3219 = vadd.f32 %v3205, %v3218
    %v3220 = vpop.f32.mrf.mxu0
    %v3221 = vadd.f32 %v3207, %v3220
    %3222 = vdwg.mxu0
    %3223 = vmatpush.bf16.msra.mxu0 %v2989
    %3224 = vmatpush.bf16.msra.mxu0 %v2987
    %3225 = vmatpush.bf16.msra.mxu0 %v2985
    %3226 = vmatpush.bf16.msra.mxu0 %v2983
    %3227 = vmatpush.bf16.msra.mxu0 %v2981
    %3228 = vmatpush.bf16.msra.mxu0 %v2979
    %3229 = vmatpush.bf16.msra.mxu0 %v2977
    %3230 = vmatpush.bf16.msra.mxu0 %v2975
    %3231 = vmatmul.bf16.gmra.mxu0 %v2388
    %v3232 = vpop.f32.mrf.mxu0
    %v3233 = vadd.f32 %v3219, %v3232
    %v3234 = vpop.f32.mrf.mxu0
    %v3235 = vadd.f32 %v3221, %v3234
    %3236 = vdwg.mxu0
    %3237 = vmatpush.bf16.msra.mxu0 %v3005
    %3238 = vmatpush.bf16.msra.mxu0 %v3003
    %3239 = vmatpush.bf16.msra.mxu0 %v3001
    %3240 = vmatpush.bf16.msra.mxu0 %v2999
    %3241 = vmatpush.bf16.msra.mxu0 %v2997
    %3242 = vmatpush.bf16.msra.mxu0 %v2995
    %3243 = vmatpush.bf16.msra.mxu0 %v2993
    %3244 = vmatpush.bf16.msra.mxu0 %v2991
    %3245 = vmatmul.bf16.gmra.mxu0 %v2389
    %v3246 = vpop.f32.mrf.mxu0
    %v3247 = vadd.f32 %v3233, %v3246
    %v3248 = vpop.f32.mrf.mxu0
    %v3249 = vadd.f32 %v3235, %v3248
    %3250 = vdwg.mxu0
    %3251 = vmatpush.bf16.msra.mxu0 %v3021
    %3252 = vmatpush.bf16.msra.mxu0 %v3019
    %3253 = vmatpush.bf16.msra.mxu0 %v3017
    %3254 = vmatpush.bf16.msra.mxu0 %v3015
    %3255 = vmatpush.bf16.msra.mxu0 %v3013
    %3256 = vmatpush.bf16.msra.mxu0 %v3011
    %3257 = vmatpush.bf16.msra.mxu0 %v3009
    %3258 = vmatpush.bf16.msra.mxu0 %v3007
    %3259 = vmatmul.bf16.gmra.mxu0 %v2390
    %v3260 = vpop.f32.mrf.mxu0
    %v3261 = vadd.f32 %v3247, %v3260
    %v3262 = vpop.f32.mrf.mxu0
    %v3263 = vadd.f32 %v3249, %v3262
    %3264 = vdwg.mxu0
    %3265 = vmatpush.bf16.msra.mxu0 %v3037
    %3266 = vmatpush.bf16.msra.mxu0 %v3035
    %3267 = vmatpush.bf16.msra.mxu0 %v3033
    %3268 = vmatpush.bf16.msra.mxu0 %v3031
    %3269 = vmatpush.bf16.msra.mxu0 %v3029
    %3270 = vmatpush.bf16.msra.mxu0 %v3027
    %3271 = vmatpush.bf16.msra.mxu0 %v3025
    %3272 = vmatpush.bf16.msra.mxu0 %v3023
    %3273 = vmatmul.bf16.gmra.mxu0 %v2391
    %v3274 = vpop.f32.mrf.mxu0
    %v3275 = vadd.f32 %v3261, %v3274
    %v3276 = vpop.f32.mrf.mxu0
    %v3277 = vadd.f32 %v3263, %v3276
    %3278 = vdwg.mxu0
    %3279 = vmatpush.bf16.msra.mxu0 %v2926
    %3280 = vmatpush.bf16.msra.mxu0 %v2924
    %3281 = vmatpush.bf16.msra.mxu0 %v2922
    %3282 = vmatpush.bf16.msra.mxu0 %v2920
    %3283 = vmatpush.bf16.msra.mxu0 %v2918
    %3284 = vmatpush.bf16.msra.mxu0 %v2916
    %3285 = vmatpush.bf16.msra.mxu0 %v2914
    %3286 = vmatpush.bf16.msra.mxu0 %v2912
    %3287 = vmatmul.bf16.gmra.mxu0 %v2384
    %v3288 = vpop.f32.mrf.mxu0
    %v3289 = vadd.f32 %v2524, %v3288
    %v3290 = vpop.f32.mrf.mxu0
    %v3291 = vadd.f32 %v2524, %v3290
    %3292 = vdwg.mxu0
    %3293 = vmatpush.bf16.msra.mxu0 %v2942
    %3294 = vmatpush.bf16.msra.mxu0 %v2940
    %3295 = vmatpush.bf16.msra.mxu0 %v2938
    %3296 = vmatpush.bf16.msra.mxu0 %v2936
    %3297 = vmatpush.bf16.msra.mxu0 %v2934
    %3298 = vmatpush.bf16.msra.mxu0 %v2932
    %3299 = vmatpush.bf16.msra.mxu0 %v2930
    %3300 = vmatpush.bf16.msra.mxu0 %v2928
    %3301 = vmatmul.bf16.gmra.mxu0 %v2385
    %v3302 = vpop.f32.mrf.mxu0
    %v3303 = vadd.f32 %v3289, %v3302
    %v3304 = vpop.f32.mrf.mxu0
    %v3305 = vadd.f32 %v3291, %v3304
    %3306 = vdwg.mxu0
    %3307 = vmatpush.bf16.msra.mxu0 %v2958
    %3308 = vmatpush.bf16.msra.mxu0 %v2956
    %3309 = vmatpush.bf16.msra.mxu0 %v2954
    %3310 = vmatpush.bf16.msra.mxu0 %v2952
    %3311 = vmatpush.bf16.msra.mxu0 %v2950
    %3312 = vmatpush.bf16.msra.mxu0 %v2948
    %3313 = vmatpush.bf16.msra.mxu0 %v2946
    %3314 = vmatpush.bf16.msra.mxu0 %v2944
    %3315 = vmatmul.bf16.gmra.mxu0 %v2386
    %v3316 = vpop.f32.mrf.mxu0
    %v3317 = vadd.f32 %v3303, %v3316
    %v3318 = vpop.f32.mrf.mxu0
    %v3319 = vadd.f32 %v3305, %v3318
    %3320 = vdwg.mxu0
    %3321 = vmatpush.bf16.msra.mxu0 %v2974
    %3322 = vmatpush.bf16.msra.mxu0 %v2972
    %3323 = vmatpush.bf16.msra.mxu0 %v2970
    %3324 = vmatpush.bf16.msra.mxu0 %v2968
    %3325 = vmatpush.bf16.msra.mxu0 %v2966
    %3326 = vmatpush.bf16.msra.mxu0 %v2964
    %3327 = vmatpush.bf16.msra.mxu0 %v2962
    %3328 = vmatpush.bf16.msra.mxu0 %v2960
    %3329 = vmatmul.bf16.gmra.mxu0 %v2387
    %v3330 = vpop.f32.mrf.mxu0
    %v3331 = vadd.f32 %v3317, %v3330
    %v3332 = vpop.f32.mrf.mxu0
    %v3333 = vadd.f32 %v3319, %v3332
    %3334 = vdwg.mxu0
    %3335 = vmatpush.bf16.msra.mxu0 %v2990
    %3336 = vmatpush.bf16.msra.mxu0 %v2988
    %3337 = vmatpush.bf16.msra.mxu0 %v2986
    %3338 = vmatpush.bf16.msra.mxu0 %v2984
    %3339 = vmatpush.bf16.msra.mxu0 %v2982
    %3340 = vmatpush.bf16.msra.mxu0 %v2980
    %3341 = vmatpush.bf16.msra.mxu0 %v2978
    %3342 = vmatpush.bf16.msra.mxu0 %v2976
    %3343 = vmatmul.bf16.gmra.mxu0 %v2388
    %v3344 = vpop.f32.mrf.mxu0
    %v3345 = vadd.f32 %v3331, %v3344
    %v3346 = vpop.f32.mrf.mxu0
    %v3347 = vadd.f32 %v3333, %v3346
    %3348 = vdwg.mxu0
    %3349 = vmatpush.bf16.msra.mxu0 %v3006
    %3350 = vmatpush.bf16.msra.mxu0 %v3004
    %3351 = vmatpush.bf16.msra.mxu0 %v3002
    %3352 = vmatpush.bf16.msra.mxu0 %v3000
    %3353 = vmatpush.bf16.msra.mxu0 %v2998
    %3354 = vmatpush.bf16.msra.mxu0 %v2996
    %3355 = vmatpush.bf16.msra.mxu0 %v2994
    %3356 = vmatpush.bf16.msra.mxu0 %v2992
    %3357 = vmatmul.bf16.gmra.mxu0 %v2389
    %v3358 = vpop.f32.mrf.mxu0
    %v3359 = vadd.f32 %v3345, %v3358
    %v3360 = vpop.f32.mrf.mxu0
    %v3361 = vadd.f32 %v3347, %v3360
    %3362 = vdwg.mxu0
    %3363 = vmatpush.bf16.msra.mxu0 %v3022
    %3364 = vmatpush.bf16.msra.mxu0 %v3020
    %3365 = vmatpush.bf16.msra.mxu0 %v3018
    %3366 = vmatpush.bf16.msra.mxu0 %v3016
    %3367 = vmatpush.bf16.msra.mxu0 %v3014
    %3368 = vmatpush.bf16.msra.mxu0 %v3012
    %3369 = vmatpush.bf16.msra.mxu0 %v3010
    %3370 = vmatpush.bf16.msra.mxu0 %v3008
    %3371 = vmatmul.bf16.gmra.mxu0 %v2390
    %v3372 = vpop.f32.mrf.mxu0
    %v3373 = vadd.f32 %v3359, %v3372
    %v3374 = vpop.f32.mrf.mxu0
    %v3375 = vadd.f32 %v3361, %v3374
    %3376 = vdwg.mxu0
    %3377 = vmatpush.bf16.msra.mxu0 %v3038
    %3378 = vmatpush.bf16.msra.mxu0 %v3036
    %3379 = vmatpush.bf16.msra.mxu0 %v3034
    %3380 = vmatpush.bf16.msra.mxu0 %v3032
    %3381 = vmatpush.bf16.msra.mxu0 %v3030
    %3382 = vmatpush.bf16.msra.mxu0 %v3028
    %3383 = vmatpush.bf16.msra.mxu0 %v3026
    %3384 = vmatpush.bf16.msra.mxu0 %v3024
    %3385 = vmatmul.bf16.gmra.mxu0 %v2391
    %v3386 = vpop.f32.mrf.mxu0
    %v3387 = vadd.f32 %v3373, %v3386
    %v3388 = vpop.f32.mrf.mxu0
    %v3389 = vadd.f32 %v3375, %v3388
    %3390 = vdwg.mxu0
    %v3391 = vmax.f32 %v3275, 0.0
    %v3392 = vmax.f32 %v3387, 0.0
    %v3393 = vmax.f32 %v3277, 0.0
    %v3394 = vmax.f32 %v3389, 0.0
    %v3395 = vpack.c.bf16 %v3393, %v3391
    %v3396 = vpack.c.bf16 %v3394, %v3392
    %v3397 = vld [vmem:[#allocation11 + $0x4] sm:$0xf]
    %v3398 = vld [vmem:[#allocation11 + $0x18] sm:$0xf]
    %v3399 = vld [vmem:[#allocation11 + $0x2c] sm:$0xf]
    %v3400 = vld [vmem:[#allocation11 + $0x40] sm:$0xf]
    %v3401 = vld [vmem:[#allocation11 + $0x54] sm:$0xf]
    %v3402 = vld [vmem:[#allocation11 + $0x68] sm:$0xf]
    %v3403 = vld [vmem:[#allocation11 + $0x7c] sm:$0xf]
    %v3404 = vld [vmem:[#allocation11 + $0x90] sm:$0xf]
    %v3405 = vld [vmem:[#allocation11 + $0xa4] sm:$0xf]
    %v3406 = vld [vmem:[#allocation11 + $0xb8] sm:$0xf]
    %v3407 = vld [vmem:[#allocation11 + $0xcc] sm:$0xf]
    %v3408 = vld [vmem:[#allocation11 + $0xe0] sm:$0xf]
    %v3409 = vld [vmem:[#allocation11 + $0xf4] sm:$0xf]
    %v3410 = vld [vmem:[#allocation11 + $0x108] sm:$0xf]
    %v3411 = vld [vmem:[#allocation11 + $0x11c] sm:$0xf]
    %v3412 = vld [vmem:[#allocation11 + $0x130] sm:$0xf]
    %v3413 = vld [vmem:[#allocation11 + $0x144] sm:$0xf]
    %v3414 = vld [vmem:[#allocation11 + $0x158] sm:$0xf]
    %v3415 = vld [vmem:[#allocation11 + $0x16c] sm:$0xf]
    %v3416 = vld [vmem:[#allocation11 + $0x180] sm:$0xf]
    %v3417 = vld [vmem:[#allocation11 + $0x194] sm:$0xf]
    %v3418 = vld [vmem:[#allocation11 + $0x1a8] sm:$0xf]
    %v3419 = vld [vmem:[#allocation11 + $0x1bc] sm:$0xf]
    %v3420 = vld [vmem:[#allocation11 + $0x1d0] sm:$0xf]
    %v3421 = vld [vmem:[#allocation11 + $0x1e4] sm:$0xf]
    %v3422 = vld [vmem:[#allocation11 + $0x1f8] sm:$0xf]
    %v3423 = vld [vmem:[#allocation11 + $0x20c] sm:$0xf]
    %v3424 = vld [vmem:[#allocation11 + $0x220] sm:$0xf]
    %v3425 = vld [vmem:[#allocation11 + $0x234] sm:$0xf]
    %v3426 = vld [vmem:[#allocation11 + $0x248] sm:$0xf]
    %v3427 = vld [vmem:[#allocation11 + $0x25c] sm:$0xf]
    %v3428 = vld [vmem:[#allocation11 + $0x270] sm:$0xf]
    %v3429 = vld [vmem:[#allocation14 + $0x5] ss:$0 sm:$0xff]
    %v3462 = vunpack.c.l.b16 %v3397
    %v3463 = vunpack.c.l.b16 %v3398
    %v3464 = vunpack.c.l.b16 %v3399
    %v3465 = vunpack.c.l.b16 %v3400
    %v3466 = vunpack.c.l.b16 %v3401
    %v3467 = vunpack.c.l.b16 %v3402
    %v3468 = vunpack.c.l.b16 %v3403
    %v3469 = vunpack.c.l.b16 %v3404
    %v3470 = vunpack.c.l.b16 %v3405
    %v3471 = vunpack.c.l.b16 %v3406
    %v3472 = vunpack.c.l.b16 %v3407
    %v3473 = vunpack.c.l.b16 %v3408
    %v3474 = vunpack.c.l.b16 %v3409
    %v3475 = vunpack.c.l.b16 %v3410
    %v3476 = vunpack.c.l.b16 %v3411
    %v3477 = vunpack.c.l.b16 %v3412
    %v3478 = vunpack.c.l.b16 %v3413
    %v3479 = vunpack.c.l.b16 %v3414
    %v3480 = vunpack.c.l.b16 %v3415
    %v3481 = vunpack.c.l.b16 %v3416
    %v3482 = vunpack.c.l.b16 %v3417
    %v3483 = vunpack.c.l.b16 %v3418
    %v3484 = vunpack.c.l.b16 %v3419
    %v3485 = vunpack.c.l.b16 %v3420
    %v3486 = vunpack.c.l.b16 %v3421
    %v3487 = vunpack.c.l.b16 %v3422
    %v3488 = vunpack.c.l.b16 %v3423
    %v3489 = vunpack.c.l.b16 %v3424
    %v3490 = vunpack.c.l.b16 %v3425
    %v3491 = vunpack.c.l.b16 %v3426
    %v3492 = vunpack.c.l.b16 %v3427
    %v3493 = vunpack.c.l.b16 %v3428
    %v3494 = vpack.c.b16 %v3463, %v3462
    %v3495 = vpack.c.b16 %v3465, %v3464
    %v3496 = vpack.c.b16 %v3467, %v3466
    %v3497 = vpack.c.b16 %v3469, %v3468
    %v3498 = vpack.c.b16 %v3471, %v3470
    %v3499 = vpack.c.b16 %v3473, %v3472
    %v3500 = vpack.c.b16 %v3475, %v3474
    %v3501 = vpack.c.b16 %v3477, %v3476
    %v3502 = vpack.c.b16 %v3479, %v3478
    %v3503 = vpack.c.b16 %v3481, %v3480
    %v3504 = vpack.c.b16 %v3483, %v3482
    %v3505 = vpack.c.b16 %v3485, %v3484
    %v3506 = vpack.c.b16 %v3487, %v3486
    %v3507 = vpack.c.b16 %v3489, %v3488
    %v3508 = vpack.c.b16 %v3491, %v3490
    %v3509 = vpack.c.b16 %v3493, %v3492
    %3526 = vmatpush.bf16.msra.mxu0 %v3501
    %3527 = vmatpush.bf16.msra.mxu0 %v3500
    %3528 = vmatpush.bf16.msra.mxu0 %v3499
    %3529 = vmatpush.bf16.msra.mxu0 %v3498
    %3530 = vmatpush.bf16.msra.mxu0 %v3497
    %3531 = vmatpush.bf16.msra.mxu0 %v3496
    %3532 = vmatpush.bf16.msra.mxu0 %v3495
    %3533 = vmatpush.bf16.msra.mxu0 %v3494
    %3534 = vmatmul.bf16.gmra.mxu0 %v3395
    %v3535 = vpop.f32.mrf.mxu0
    %v3536 = vadd.f32 %v3429, %v3535
    %v3537 = vpop.f32.mrf.mxu0
    %v3538 = vadd.f32 %v3429, %v3537
    %3539 = vdwg.mxu0
    %3540 = vmatpush.bf16.msra.mxu0 %v3509
    %3541 = vmatpush.bf16.msra.mxu0 %v3508
    %3542 = vmatpush.bf16.msra.mxu0 %v3507
    %3543 = vmatpush.bf16.msra.mxu0 %v3506
    %3544 = vmatpush.bf16.msra.mxu0 %v3505
    %3545 = vmatpush.bf16.msra.mxu0 %v3504
    %3546 = vmatpush.bf16.msra.mxu0 %v3503
    %3547 = vmatpush.bf16.msra.mxu0 %v3502
    %3548 = vmatmul.bf16.gmra.mxu0 %v3396
    %v3549 = vpop.f32.mrf.mxu0
    %v3550 = vadd.f32 %v3536, %v3549
    %v3551 = vpop.f32.mrf.mxu0
    %v3552 = vadd.f32 %v3538, %v3551
    %3553 = vdwg.mxu0
    %v3554 = vmax.f32 %v3550, 0.0
    %v3555 = vmax.f32 %v3552, 0.0
    %v3556 = vpack.c.bf16 %v3554, %v3554
    %v3557 = vpack.c.bf16 %v3555, %v3555
    %v3560 = vunpack.c.l.b16 %v1353
    %v3561 = vunpack.c.l.b16 %v1354
    %v3562 = vpack.c.b16 %v3561, %v3560
    %v3566 = vunpack.c.l.b16 %v3556
    %v3567 = vunpack.c.l.b16 %v3557
    %v3568 = vpack.c.b16 %v3567, %v3566
    %v3570 = vld [vmem:[#allocation11 + $0x8] sm:$0xff]
    %v3571 = vld [vmem:[#allocation11 + $0x1c] sm:$0xff]
    %v3572 = vld [vmem:[#allocation11 + $0x30] sm:$0xff]
    %v3573 = vld [vmem:[#allocation11 + $0x44] sm:$0xff]
    %v3574 = vld [vmem:[#allocation11 + $0x58] sm:$0xff]
    %v3575 = vld [vmem:[#allocation11 + $0x6c] sm:$0xff]
    %v3576 = vld [vmem:[#allocation11 + $0x80] sm:$0xff]
    %v3577 = vld [vmem:[#allocation11 + $0x94] sm:$0xff]
    %v3578 = vld [vmem:[#allocation11 + $0xa8] sm:$0xff]
    %v3579 = vld [vmem:[#allocation11 + $0xbc] sm:$0xff]
    %v3580 = vld [vmem:[#allocation11 + $0xd0] sm:$0xff]
    %v3581 = vld [vmem:[#allocation11 + $0xe4] sm:$0xff]
    %v3582 = vld [vmem:[#allocation11 + $0xf8] sm:$0xff]
    %v3583 = vld [vmem:[#allocation11 + $0x10c] sm:$0xff]
    %v3584 = vld [vmem:[#allocation11 + $0x120] sm:$0xff]
    %v3585 = vld [vmem:[#allocation11 + $0x134] sm:$0xff]
    %v3586 = vld [vmem:[#allocation11 + $0x148] sm:$0xff]
    %v3587 = vld [vmem:[#allocation11 + $0x15c] sm:$0xff]
    %v3588 = vld [vmem:[#allocation11 + $0x170] sm:$0xff]
    %v3589 = vld [vmem:[#allocation11 + $0x184] sm:$0xff]
    %v3590 = vld [vmem:[#allocation11 + $0x198] sm:$0xff]
    %v3591 = vld [vmem:[#allocation11 + $0x1ac] sm:$0xff]
    %v3592 = vld [vmem:[#allocation11 + $0x1c0] sm:$0xff]
    %v3593 = vld [vmem:[#allocation11 + $0x1d4] sm:$0xff]
    %v3594 = vld [vmem:[#allocation11 + $0x1e8] sm:$0xff]
    %v3595 = vld [vmem:[#allocation11 + $0x1fc] sm:$0xff]
    %v3596 = vld [vmem:[#allocation11 + $0x210] sm:$0xff]
    %v3597 = vld [vmem:[#allocation11 + $0x224] sm:$0xff]
    %v3598 = vld [vmem:[#allocation11 + $0x238] sm:$0xff]
    %v3599 = vld [vmem:[#allocation11 + $0x24c] sm:$0xff]
    %v3600 = vld [vmem:[#allocation11 + $0x260] sm:$0xff]
    %v3601 = vld [vmem:[#allocation11 + $0x274] sm:$0xff]
    %s3602 = scalar_lea.vmem [#allocation14], 6
    %v3603 = vld [vmem:[%s3602] ss:$8 sm:$0x3]
    %v3605 = vperm.slane %v3603, 0
    %v3606 = vperm.slane %v3603, 1
    %v3641 = vunpack.c.l.b16 %v3570
    %v3642 = vunpack.c.h.b16 %v3570
    %v3643 = vunpack.c.l.b16 %v3571
    %v3644 = vunpack.c.h.b16 %v3571
    %v3645 = vunpack.c.l.b16 %v3572
    %v3646 = vunpack.c.h.b16 %v3572
    %v3647 = vunpack.c.l.b16 %v3573
    %v3648 = vunpack.c.h.b16 %v3573
    %v3649 = vunpack.c.l.b16 %v3574
    %v3650 = vunpack.c.h.b16 %v3574
    %v3651 = vunpack.c.l.b16 %v3575
    %v3652 = vunpack.c.h.b16 %v3575
    %v3653 = vunpack.c.l.b16 %v3576
    %v3654 = vunpack.c.h.b16 %v3576
    %v3655 = vunpack.c.l.b16 %v3577
    %v3656 = vunpack.c.h.b16 %v3577
    %v3657 = vunpack.c.l.b16 %v3578
    %v3658 = vunpack.c.h.b16 %v3578
    %v3659 = vunpack.c.l.b16 %v3579
    %v3660 = vunpack.c.h.b16 %v3579
    %v3661 = vunpack.c.l.b16 %v3580
    %v3662 = vunpack.c.h.b16 %v3580
    %v3663 = vunpack.c.l.b16 %v3581
    %v3664 = vunpack.c.h.b16 %v3581
    %v3665 = vunpack.c.l.b16 %v3582
    %v3666 = vunpack.c.h.b16 %v3582
    %v3667 = vunpack.c.l.b16 %v3583
    %v3668 = vunpack.c.h.b16 %v3583
    %v3669 = vunpack.c.l.b16 %v3584
    %v3670 = vunpack.c.h.b16 %v3584
    %v3671 = vunpack.c.l.b16 %v3585
    %v3672 = vunpack.c.h.b16 %v3585
    %v3673 = vunpack.c.l.b16 %v3586
    %v3674 = vunpack.c.h.b16 %v3586
    %v3675 = vunpack.c.l.b16 %v3587
    %v3676 = vunpack.c.h.b16 %v3587
    %v3677 = vunpack.c.l.b16 %v3588
    %v3678 = vunpack.c.h.b16 %v3588
    %v3679 = vunpack.c.l.b16 %v3589
    %v3680 = vunpack.c.h.b16 %v3589
    %v3681 = vunpack.c.l.b16 %v3590
    %v3682 = vunpack.c.h.b16 %v3590
    %v3683 = vunpack.c.l.b16 %v3591
    %v3684 = vunpack.c.h.b16 %v3591
    %v3685 = vunpack.c.l.b16 %v3592
    %v3686 = vunpack.c.h.b16 %v3592
    %v3687 = vunpack.c.l.b16 %v3593
    %v3688 = vunpack.c.h.b16 %v3593
    %v3689 = vunpack.c.l.b16 %v3594
    %v3690 = vunpack.c.h.b16 %v3594
    %v3691 = vunpack.c.l.b16 %v3595
    %v3692 = vunpack.c.h.b16 %v3595
    %v3693 = vunpack.c.l.b16 %v3596
    %v3694 = vunpack.c.h.b16 %v3596
    %v3695 = vunpack.c.l.b16 %v3597
    %v3696 = vunpack.c.h.b16 %v3597
    %v3697 = vunpack.c.l.b16 %v3598
    %v3698 = vunpack.c.h.b16 %v3598
    %v3699 = vunpack.c.l.b16 %v3599
    %v3700 = vunpack.c.h.b16 %v3599
    %v3701 = vunpack.c.l.b16 %v3600
    %v3702 = vunpack.c.h.b16 %v3600
    %v3703 = vunpack.c.l.b16 %v3601
    %v3704 = vunpack.c.h.b16 %v3601
    %v3705 = vpack.c.b16 %v3643, %v3641
    %v3706 = vpack.c.b16 %v3644, %v3642
    %v3707 = vpack.c.b16 %v3647, %v3645
    %v3708 = vpack.c.b16 %v3648, %v3646
    %v3709 = vpack.c.b16 %v3651, %v3649
    %v3710 = vpack.c.b16 %v3652, %v3650
    %v3711 = vpack.c.b16 %v3655, %v3653
    %v3712 = vpack.c.b16 %v3656, %v3654
    %v3713 = vpack.c.b16 %v3659, %v3657
    %v3714 = vpack.c.b16 %v3660, %v3658
    %v3715 = vpack.c.b16 %v3663, %v3661
    %v3716 = vpack.c.b16 %v3664, %v3662
    %v3717 = vpack.c.b16 %v3667, %v3665
    %v3718 = vpack.c.b16 %v3668, %v3666
    %v3719 = vpack.c.b16 %v3671, %v3669
    %v3720 = vpack.c.b16 %v3672, %v3670
    %v3721 = vpack.c.b16 %v3675, %v3673
    %v3722 = vpack.c.b16 %v3676, %v3674
    %v3723 = vpack.c.b16 %v3679, %v3677
    %v3724 = vpack.c.b16 %v3680, %v3678
    %v3725 = vpack.c.b16 %v3683, %v3681
    %v3726 = vpack.c.b16 %v3684, %v3682
    %v3727 = vpack.c.b16 %v3687, %v3685
    %v3728 = vpack.c.b16 %v3688, %v3686
    %v3729 = vpack.c.b16 %v3691, %v3689
    %v3730 = vpack.c.b16 %v3692, %v3690
    %v3731 = vpack.c.b16 %v3695, %v3693
    %v3732 = vpack.c.b16 %v3696, %v3694
    %v3733 = vpack.c.b16 %v3699, %v3697
    %v3734 = vpack.c.b16 %v3700, %v3698
    %v3735 = vpack.c.b16 %v3703, %v3701
    %v3736 = vpack.c.b16 %v3704, %v3702
    %3769 = vmatpush.bf16.msra.mxu0 %v3719
    %3770 = vmatpush.bf16.msra.mxu0 %v3717
    %3771 = vmatpush.bf16.msra.mxu0 %v3715
    %3772 = vmatpush.bf16.msra.mxu0 %v3713
    %3773 = vmatpush.bf16.msra.mxu0 %v3711
    %3774 = vmatpush.bf16.msra.mxu0 %v3709
    %3775 = vmatpush.bf16.msra.mxu0 %v3707
    %3776 = vmatpush.bf16.msra.mxu0 %v3705
    %3777 = vmatmul.bf16.gmra.mxu0 %v3562
    %v3778 = vpop.f32.mrf.mxu0
    %v3779 = vadd.f32 %v3605, %v3778
    %v3780 = vpop.f32.mrf.mxu0
    %v3781 = vadd.f32 %v3605, %v3780
    %3782 = vdwg.mxu0
    %3783 = vmatpush.bf16.msra.mxu0 %v3735
    %3784 = vmatpush.bf16.msra.mxu0 %v3733
    %3785 = vmatpush.bf16.msra.mxu0 %v3731
    %3786 = vmatpush.bf16.msra.mxu0 %v3729
    %3787 = vmatpush.bf16.msra.mxu0 %v3727
    %3788 = vmatpush.bf16.msra.mxu0 %v3725
    %3789 = vmatpush.bf16.msra.mxu0 %v3723
    %3790 = vmatpush.bf16.msra.mxu0 %v3721
    %3791 = vmatmul.bf16.gmra.mxu0 %v3568
    %v3792 = vpop.f32.mrf.mxu0
    %v3793 = vadd.f32 %v3779, %v3792
    %v3794 = vpop.f32.mrf.mxu0
    %v3795 = vadd.f32 %v3781, %v3794
    %3796 = vdwg.mxu0
    %3797 = vmatpush.bf16.msra.mxu0 %v3720
    %3798 = vmatpush.bf16.msra.mxu0 %v3718
    %3799 = vmatpush.bf16.msra.mxu0 %v3716
    %3800 = vmatpush.bf16.msra.mxu0 %v3714
    %3801 = vmatpush.bf16.msra.mxu0 %v3712
    %3802 = vmatpush.bf16.msra.mxu0 %v3710
    %3803 = vmatpush.bf16.msra.mxu0 %v3708
    %3804 = vmatpush.bf16.msra.mxu0 %v3706
    %3805 = vmatmul.bf16.gmra.mxu0 %v3562
    %v3806 = vpop.f32.mrf.mxu0
    %v3807 = vadd.f32 %v3606, %v3806
    %v3808 = vpop.f32.mrf.mxu0
    %v3809 = vadd.f32 %v3606, %v3808
    %3810 = vdwg.mxu0
    %3811 = vmatpush.bf16.msra.mxu0 %v3736
    %3812 = vmatpush.bf16.msra.mxu0 %v3734
    %3813 = vmatpush.bf16.msra.mxu0 %v3732
    %3814 = vmatpush.bf16.msra.mxu0 %v3730
    %3815 = vmatpush.bf16.msra.mxu0 %v3728
    %3816 = vmatpush.bf16.msra.mxu0 %v3726
    %3817 = vmatpush.bf16.msra.mxu0 %v3724
    %3818 = vmatpush.bf16.msra.mxu0 %v3722
    %3819 = vmatmul.bf16.gmra.mxu0 %v3568
    %v3820 = vpop.f32.mrf.mxu0
    %v3821 = vadd.f32 %v3807, %v3820
    %v3822 = vpop.f32.mrf.mxu0
    %v3823 = vadd.f32 %v3809, %v3822
    %3824 = vdwg.mxu0
    %v3825 = vmax.f32 %v3793, 0.0
    %v3826 = vmax.f32 %v3821, 0.0
    %v3827 = vmax.f32 %v3795, 0.0
    %v3828 = vmax.f32 %v3823, 0.0
    %v3829 = vpack.c.bf16 %v3827, %v3825
    %v3830 = vpack.c.bf16 %v3828, %v3826
    %v3831 = vld [vmem:[#allocation11 + $0x10] sm:$0xf]
    %v3832 = vld [vmem:[#allocation11 + $0x24] sm:$0xf]
    %v3833 = vld [vmem:[#allocation11 + $0x38] sm:$0xf]
    %v3834 = vld [vmem:[#allocation11 + $0x4c] sm:$0xf]
    %v3835 = vld [vmem:[#allocation11 + $0x60] sm:$0xf]
    %v3836 = vld [vmem:[#allocation11 + $0x74] sm:$0xf]
    %v3837 = vld [vmem:[#allocation11 + $0x88] sm:$0xf]
    %v3838 = vld [vmem:[#allocation11 + $0x9c] sm:$0xf]
    %v3839 = vld [vmem:[#allocation11 + $0xb0] sm:$0xf]
    %v3840 = vld [vmem:[#allocation11 + $0xc4] sm:$0xf]
    %v3841 = vld [vmem:[#allocation11 + $0xd8] sm:$0xf]
    %v3842 = vld [vmem:[#allocation11 + $0xec] sm:$0xf]
    %v3843 = vld [vmem:[#allocation11 + $0x100] sm:$0xf]
    %v3844 = vld [vmem:[#allocation11 + $0x114] sm:$0xf]
    %v3845 = vld [vmem:[#allocation11 + $0x128] sm:$0xf]
    %v3846 = vld [vmem:[#allocation11 + $0x13c] sm:$0xf]
    %v3847 = vld [vmem:[#allocation11 + $0x150] sm:$0xf]
    %v3848 = vld [vmem:[#allocation11 + $0x164] sm:$0xf]
    %v3849 = vld [vmem:[#allocation11 + $0x178] sm:$0xf]
    %v3850 = vld [vmem:[#allocation11 + $0x18c] sm:$0xf]
    %v3851 = vld [vmem:[#allocation11 + $0x1a0] sm:$0xf]
    %v3852 = vld [vmem:[#allocation11 + $0x1b4] sm:$0xf]
    %v3853 = vld [vmem:[#allocation11 + $0x1c8] sm:$0xf]
    %v3854 = vld [vmem:[#allocation11 + $0x1dc] sm:$0xf]
    %v3855 = vld [vmem:[#allocation11 + $0x1f0] sm:$0xf]
    %v3856 = vld [vmem:[#allocation11 + $0x204] sm:$0xf]
    %v3857 = vld [vmem:[#allocation11 + $0x218] sm:$0xf]
    %v3858 = vld [vmem:[#allocation11 + $0x22c] sm:$0xf]
    %v3859 = vld [vmem:[#allocation11 + $0x240] sm:$0xf]
    %v3860 = vld [vmem:[#allocation11 + $0x254] sm:$0xf]
    %v3861 = vld [vmem:[#allocation11 + $0x268] sm:$0xf]
    %v3862 = vld [vmem:[#allocation11 + $0x27c] sm:$0xf]
    %v3863 = vld [vmem:[#allocation14 + $0x7] ss:$0 sm:$0xff]
    %v3896 = vunpack.c.l.b16 %v3831
    %v3897 = vunpack.c.l.b16 %v3832
    %v3898 = vunpack.c.l.b16 %v3833
    %v3899 = vunpack.c.l.b16 %v3834
    %v3900 = vunpack.c.l.b16 %v3835
    %v3901 = vunpack.c.l.b16 %v3836
    %v3902 = vunpack.c.l.b16 %v3837
    %v3903 = vunpack.c.l.b16 %v3838
    %v3904 = vunpack.c.l.b16 %v3839
    %v3905 = vunpack.c.l.b16 %v3840
    %v3906 = vunpack.c.l.b16 %v3841
    %v3907 = vunpack.c.l.b16 %v3842
    %v3908 = vunpack.c.l.b16 %v3843
    %v3909 = vunpack.c.l.b16 %v3844
    %v3910 = vunpack.c.l.b16 %v3845
    %v3911 = vunpack.c.l.b16 %v3846
    %v3912 = vunpack.c.l.b16 %v3847
    %v3913 = vunpack.c.l.b16 %v3848
    %v3914 = vunpack.c.l.b16 %v3849
    %v3915 = vunpack.c.l.b16 %v3850
    %v3916 = vunpack.c.l.b16 %v3851
    %v3917 = vunpack.c.l.b16 %v3852
    %v3918 = vunpack.c.l.b16 %v3853
    %v3919 = vunpack.c.l.b16 %v3854
    %v3920 = vunpack.c.l.b16 %v3855
    %v3921 = vunpack.c.l.b16 %v3856
    %v3922 = vunpack.c.l.b16 %v3857
    %v3923 = vunpack.c.l.b16 %v3858
    %v3924 = vunpack.c.l.b16 %v3859
    %v3925 = vunpack.c.l.b16 %v3860
    %v3926 = vunpack.c.l.b16 %v3861
    %v3927 = vunpack.c.l.b16 %v3862
    %v3928 = vpack.c.b16 %v3897, %v3896
    %v3929 = vpack.c.b16 %v3899, %v3898
    %v3930 = vpack.c.b16 %v3901, %v3900
    %v3931 = vpack.c.b16 %v3903, %v3902
    %v3932 = vpack.c.b16 %v3905, %v3904
    %v3933 = vpack.c.b16 %v3907, %v3906
    %v3934 = vpack.c.b16 %v3909, %v3908
    %v3935 = vpack.c.b16 %v3911, %v3910
    %v3936 = vpack.c.b16 %v3913, %v3912
    %v3937 = vpack.c.b16 %v3915, %v3914
    %v3938 = vpack.c.b16 %v3917, %v3916
    %v3939 = vpack.c.b16 %v3919, %v3918
    %v3940 = vpack.c.b16 %v3921, %v3920
    %v3941 = vpack.c.b16 %v3923, %v3922
    %v3942 = vpack.c.b16 %v3925, %v3924
    %v3943 = vpack.c.b16 %v3927, %v3926
    %3960 = vmatpush.bf16.msra.mxu0 %v3935
    %3961 = vmatpush.bf16.msra.mxu0 %v3934
    %3962 = vmatpush.bf16.msra.mxu0 %v3933
    %3963 = vmatpush.bf16.msra.mxu0 %v3932
    %3964 = vmatpush.bf16.msra.mxu0 %v3931
    %3965 = vmatpush.bf16.msra.mxu0 %v3930
    %3966 = vmatpush.bf16.msra.mxu0 %v3929
    %3967 = vmatpush.bf16.msra.mxu0 %v3928
    %3968 = vmatmul.bf16.gmra.mxu0 %v3829
    %v3969 = vpop.f32.mrf.mxu0
    %v3970 = vadd.f32 %v3863, %v3969
    %v3971 = vpop.f32.mrf.mxu0
    %v3972 = vadd.f32 %v3863, %v3971
    %3973 = vdwg.mxu0
    %3974 = vmatpush.bf16.msra.mxu0 %v3943
    %3975 = vmatpush.bf16.msra.mxu0 %v3942
    %3976 = vmatpush.bf16.msra.mxu0 %v3941
    %3977 = vmatpush.bf16.msra.mxu0 %v3940
    %3978 = vmatpush.bf16.msra.mxu0 %v3939
    %3979 = vmatpush.bf16.msra.mxu0 %v3938
    %3980 = vmatpush.bf16.msra.mxu0 %v3937
    %3981 = vmatpush.bf16.msra.mxu0 %v3936
    %3982 = vmatmul.bf16.gmra.mxu0 %v3830
    %v3983 = vpop.f32.mrf.mxu0
    %v3984 = vadd.f32 %v3970, %v3983
    %v3985 = vpop.f32.mrf.mxu0
    %v3986 = vadd.f32 %v3972, %v3985
    %3987 = vdwg.mxu0
    %v3988 = vmax.f32 %v3984, 0.0
    %v3989 = vmax.f32 %v3986, 0.0
    %v3990 = vpack.c.bf16 %v3989, %v3988
    %v3991 = vld [vmem:[#allocation13] sm:$0xf]
    %v3992 = vld [vmem:[#allocation13 + $0x8] sm:$0xf]
    %v3993 = vld [vmem:[#allocation13 + $0x10] sm:$0xf]
    %v3994 = vld [vmem:[#allocation13 + $0x18] sm:$0xf]
    %v3995 = vld [vmem:[#allocation13 + $0x20] sm:$0xf]
    %v3996 = vld [vmem:[#allocation13 + $0x28] sm:$0xf]
    %v3997 = vld [vmem:[#allocation13 + $0x30] sm:$0xf]
    %v3998 = vld [vmem:[#allocation13 + $0x38] sm:$0xf]
    %v3999 = vld [vmem:[#allocation13 + $0x40] sm:$0xf]
    %v4000 = vld [vmem:[#allocation13 + $0x48] sm:$0xf]
    %v4001 = vld [vmem:[#allocation13 + $0x50] sm:$0xf]
    %v4002 = vld [vmem:[#allocation13 + $0x58] sm:$0xf]
    %v4003 = vld [vmem:[#allocation13 + $0x60] sm:$0xf]
    %v4004 = vld [vmem:[#allocation13 + $0x68] sm:$0xf]
    %v4005 = vld [vmem:[#allocation13 + $0x70] sm:$0xf]
    %v4006 = vld [vmem:[#allocation13 + $0x78] sm:$0xf]
    %v4007 = vld [vmem:[#allocation14 + $0x40] ss:$0 sm:$0xff]
    %v4024 = vunpack.c.l.b16 %v3991
    %v4025 = vunpack.c.l.b16 %v3992
    %v4026 = vunpack.c.l.b16 %v3993
    %v4027 = vunpack.c.l.b16 %v3994
    %v4028 = vunpack.c.l.b16 %v3995
    %v4029 = vunpack.c.l.b16 %v3996
    %v4030 = vunpack.c.l.b16 %v3997
    %v4031 = vunpack.c.l.b16 %v3998
    %v4032 = vunpack.c.l.b16 %v3999
    %v4033 = vunpack.c.l.b16 %v4000
    %v4034 = vunpack.c.l.b16 %v4001
    %v4035 = vunpack.c.l.b16 %v4002
    %v4036 = vunpack.c.l.b16 %v4003
    %v4037 = vunpack.c.l.b16 %v4004
    %v4038 = vunpack.c.l.b16 %v4005
    %v4039 = vunpack.c.l.b16 %v4006
    %v4040 = vpack.c.b16 %v4025, %v4024
    %v4041 = vpack.c.b16 %v4027, %v4026
    %v4042 = vpack.c.b16 %v4029, %v4028
    %v4043 = vpack.c.b16 %v4031, %v4030
    %v4044 = vpack.c.b16 %v4033, %v4032
    %v4045 = vpack.c.b16 %v4035, %v4034
    %v4046 = vpack.c.b16 %v4037, %v4036
    %v4047 = vpack.c.b16 %v4039, %v4038
    %4056 = vmatpush.bf16.msra.mxu0 %v4047
    %4057 = vmatpush.bf16.msra.mxu0 %v4046
    %4058 = vmatpush.bf16.msra.mxu0 %v4045
    %4059 = vmatpush.bf16.msra.mxu0 %v4044
    %4060 = vmatpush.bf16.msra.mxu0 %v4043
    %4061 = vmatpush.bf16.msra.mxu0 %v4042
    %4062 = vmatpush.bf16.msra.mxu0 %v4041
    %4063 = vmatpush.bf16.msra.mxu0 %v4040
    %4064 = vmatmul.bf16.gmra.mxu0 %v3990
    %v4065 = vpop.f32.mrf.mxu0
    %v4066 = vadd.f32 %v4007, %v4065
    %v4067 = vpop.f32.mrf.mxu0
    %v4068 = vadd.f32 %v4007, %v4067
    %4069 = vdwg.mxu0
    %v4070 = vmax.f32 %v4066, 0.0
    %v4071 = vmax.f32 %v4068, 0.0
    %v4072 = vpack.c.bf16 %v4071, %v4070
    %v4073 = vld [vmem:[#allocation13 + $0x4] sm:$0xf]
    %v4074 = vld [vmem:[#allocation13 + $0xc] sm:$0xf]
    %v4075 = vld [vmem:[#allocation13 + $0x14] sm:$0xf]
    %v4076 = vld [vmem:[#allocation13 + $0x1c] sm:$0xf]
    %v4077 = vld [vmem:[#allocation13 + $0x24] sm:$0xf]
    %v4078 = vld [vmem:[#allocation13 + $0x2c] sm:$0xf]
    %v4079 = vld [vmem:[#allocation13 + $0x34] sm:$0xf]
    %v4080 = vld [vmem:[#allocation13 + $0x3c] sm:$0xf]
    %v4081 = vld [vmem:[#allocation13 + $0x44] sm:$0xf]
    %v4082 = vld [vmem:[#allocation13 + $0x4c] sm:$0xf]
    %v4083 = vld [vmem:[#allocation13 + $0x54] sm:$0xf]
    %v4084 = vld [vmem:[#allocation13 + $0x5c] sm:$0xf]
    %v4085 = vld [vmem:[#allocation13 + $0x64] sm:$0xf]
    %v4086 = vld [vmem:[#allocation13 + $0x6c] sm:$0xf]
    %v4087 = vld [vmem:[#allocation13 + $0x74] sm:$0xf]
    %v4088 = vld [vmem:[#allocation13 + $0x7c] sm:$0xf]
    %v4089 = vld [vmem:[#allocation14 + $0x41] ss:$0 sm:$0xff]
    %v4106 = vunpack.c.l.b16 %v4073
    %v4107 = vunpack.c.l.b16 %v4074
    %v4108 = vunpack.c.l.b16 %v4075
    %v4109 = vunpack.c.l.b16 %v4076
    %v4110 = vunpack.c.l.b16 %v4077
    %v4111 = vunpack.c.l.b16 %v4078
    %v4112 = vunpack.c.l.b16 %v4079
    %v4113 = vunpack.c.l.b16 %v4080
    %v4114 = vunpack.c.l.b16 %v4081
    %v4115 = vunpack.c.l.b16 %v4082
    %v4116 = vunpack.c.l.b16 %v4083
    %v4117 = vunpack.c.l.b16 %v4084
    %v4118 = vunpack.c.l.b16 %v4085
    %v4119 = vunpack.c.l.b16 %v4086
    %v4120 = vunpack.c.l.b16 %v4087
    %v4121 = vunpack.c.l.b16 %v4088
    %v4122 = vpack.c.b16 %v4107, %v4106
    %v4123 = vpack.c.b16 %v4109, %v4108
    %v4124 = vpack.c.b16 %v4111, %v4110
    %v4125 = vpack.c.b16 %v4113, %v4112
    %v4126 = vpack.c.b16 %v4115, %v4114
    %v4127 = vpack.c.b16 %v4117, %v4116
    %v4128 = vpack.c.b16 %v4119, %v4118
    %v4129 = vpack.c.b16 %v4121, %v4120
    %4138 = vmatpush.bf16.msra.mxu0 %v4129
    %4139 = vmatpush.bf16.msra.mxu0 %v4128
    %4140 = vmatpush.bf16.msra.mxu0 %v4127
    %4141 = vmatpush.bf16.msra.mxu0 %v4126
    %4142 = vmatpush.bf16.msra.mxu0 %v4125
    %4143 = vmatpush.bf16.msra.mxu0 %v4124
    %4144 = vmatpush.bf16.msra.mxu0 %v4123
    %4145 = vmatpush.bf16.msra.mxu0 %v4122
    %4146 = vmatmul.bf16.gmra.mxu0 %v4072
    %v4147 = vpop.f32.mrf.mxu0
    %v4148 = vadd.f32 %v4089, %v4147
    %v4149 = vpop.f32.mrf.mxu0
    %v4150 = vadd.f32 %v4089, %v4149
    %4151 = vdwg.mxu0
    %4152 = vst [vmem:[#allocation16] sm:$0xff] %v4148
    %4153 = vst [vmem:[#allocation16 + $0x8] sm:$0xff] %v4150
    // Predicated region
    $region66: #{tpu_custom_call.1} parent=1 // pred_check
      _
    $region67: #{tpu_custom_call.1} parent=1 // pred_check_branch
      %4155 = sbr.rel (0) target = $region69
    $region68: #{tpu_custom_call.1} parent=1 // pred_region
      %4157 = vsyncadd [#allocation4], 0
      %s4158 = sshll.u32 [#allocation16], 4
      %s4159 = int_to_ptr.vmem [resolvable:$true] %s4158
      %s4160 = sshll.u32 %s8, 4
      %s4161 = int_to_ptr.hbm [resolvable:$true] %s4160
      %4166 = dma.vmem_to_hbm [thread:$0]  %s4159, 256, %s4161, [#allocation4], 128, 128, 8
    $region69: #{tpu_custom_call.1} parent=1 // pred_fallthru
      _
    // Predicated region
    $region70: #{tpu_custom_call.1} parent=1 // pred_check
      _
    $region71: #{tpu_custom_call.1} parent=1 // pred_check_branch
      %4168 = sbr.rel (0) target = $region73
    $region72: #{tpu_custom_call.1} parent=1 // pred_region
      %4170 = dma.done [#allocation4], 256
    $region73: #{tpu_custom_call.1} parent=1 // pred_fallthru
      _
    %4171 = vsyncpa [#allocation3], 1
    %4172 = vsyncpa [#allocation6], 1
    %4173 = vsyncpa [#allocation9], 1
    %4174 = vsyncpa [#allocation12], 1
    %4175 = vsyncpa [#allocation15], 1
    %4176 = vsyncpa [#allocation4], 1

</llo_original>
